<compile_context>
chip_gen: v6e
topology: v6e:2x2x1
jax: 0.10.0
libtpu: 0.0.40
codegen_flags: <defaults>
</compile_context>

<pallas_src>
import functools

import jax
import jax.numpy as jnp
from jax import lax
from jax.experimental import pallas as pl
from jax.experimental.pallas import tpu as pltpu


def cbam_kernel(x_ref, w1a_ref, w1m_ref, w2_ref, tile_ref, pool_ref,
                expand_ref, wtab_ref, o_ref, conv_buf, shift_buf,
                *, W, ksize):
    Nb = x_ref.shape[0]          # images in this block
    H = x_ref.shape[1]
    CW = x_ref.shape[2]          # lane axis = c*W + w
    pad = (ksize - 1) // 2
    Wp = W + 2 * pad             # horizontally padded map width
    PACKW = Nb * 2 * Wp          # packed [avg|max] maps of all images
    SLICE_W = PACKW - 2 * pad    # width of one shifted conv slice
    f32 = jnp.float32

    # ---------------- channel attention -------------------------------------
    sum_rows, max_rows = [], []
    for i in range(Nb):
        xi = x_ref[i].astype(f32)                                   # (H, CW)
        sum_rows.append(jnp.sum(xi, axis=0, keepdims=True))         # (1, CW)
        max_rows.append(jnp.max(xi, axis=0, keepdims=True))         # (1, CW)
    col_sum = jnp.concatenate(sum_rows, axis=0)                     # (Nb, CW)
    col_max = jnp.concatenate(max_rows, axis=0)                     # (Nb, CW)

    # Max over the W contiguous lanes of each channel group (tiny operand):
    # cyclic shift-max tree; the group max lands at lane c*W, which the
    # host-folded fc1-max weight picks out.
    m = col_max
    s = 1
    while s < W:
        m = jnp.maximum(m, jnp.concatenate([m[:, s:], m[:, :s]], axis=1))
        s *= 2

    # Global avg-pool (sum over w, 1/(H*W)) and max-pick are folded into fc1.
    hid_avg = jnp.maximum(
        jnp.dot(col_sum, w1a_ref[...], preferred_element_type=f32), 0.0)
    hid_max = jnp.maximum(
        jnp.dot(m, w1m_ref[...], preferred_element_type=f32), 0.0)   # (Nb, Cr)
    mlp = jnp.dot(hid_avg + hid_max, w2_ref[...],
                  preferred_element_type=f32)                        # (Nb, C)
    ca = jax.nn.sigmoid(mlp)                                         # (Nb, C)
    # Broadcast the per-channel gate to the C*W lane axis via a 0/1 matmul.
    ca_cw = jnp.dot(ca, tile_ref[...], preferred_element_type=f32)   # (Nb, CW)

    # Apply the channel gate; stash the gated activations in the output block
    # (re-read later instead of keeping image-sized values live).
    for i in range(Nb):
        o_ref[i] = (x_ref[i].astype(f32) * ca_cw[i:i + 1, :]).astype(o_ref.dtype)

    # ---------------- spatial attention: channel pooling --------------------
    conv_buf[...] = jnp.zeros((H + 2 * pad, PACKW), f32)

    xg = o_ref[...].astype(f32).reshape(Nb * H, CW)   # channel-gated block
    # Per-pixel channel mean: one batched matmul (1/C and zero horizontal
    # borders are NOT needed here because pool_m maps straight to W columns).
    avg_all = jnp.dot(xg, pool_ref[...], preferred_element_type=f32)  # (Nb*H, W)
    # Per-pixel channel max: halving fold over the stride-W lane classes
    # (log2(C) steps, first folds fully vreg-aligned).
    mx = xg
    width = CW
    while width > W:
        half = width // 2
        mx = jnp.maximum(mx[:, :half], mx[:, half:width])
        width = half
    max_all = mx                                                       # (Nb*H, W)

    # Pack the padded [avg | max] maps of all images side by side along lanes.
    # conv_buf is zeroed, so the pad rows/columns come for free.
    for i in range(Nb):
        base = i * 2 * Wp
        conv_buf[pad:pad + H, base + pad:base + pad + W] = \
            avg_all[i * H:(i + 1) * H, :]
        conv_buf[pad:pad + H, base + Wp + pad:base + Wp + pad + W] = \
            max_all[i * H:(i + 1) * H, :]

    # ---------------- spatial attention: 7x7 conv ---------------------------
    # Hoist the ksize lane shifts once into VMEM so every tap below is a plain
    # address-offset load (no per-tap lane rotation).
    for dj in range(ksize):
        shift_buf[dj] = conv_buf[:, dj:dj + SLICE_W]

    n_acc = 4
    accs = [jnp.zeros((H, SLICE_W), f32) for _ in range(n_acc)]
    t = 0
    for di in range(ksize):
        for dj in range(ksize):
            tap = shift_buf[dj, di:di + H, :]            # (H, SLICE_W) load
            wrow = wtab_ref[t:t + 1, :]                  # per-tap weight lanes
            accs[t % n_acc] = accs[t % n_acc] + tap * wrow
            t += 1
    conv_full = (accs[0] + accs[1]) + (accs[2] + accs[3])

    # Per image: avg-channel and max-channel contributions live in disjoint
    # lane ranges of the packed accumulator; add them and apply the gate.
    parts = []
    for i in range(Nb):
        base = i * 2 * Wp
        parts.append(conv_full[:, base:base + W] +
                     conv_full[:, base + Wp:base + Wp + W])
    sa = jax.nn.sigmoid(jnp.concatenate(parts, axis=0))               # (Nb*H, W)
    # Broadcast the spatial gate across the C channel lanes with the MXU.
    sa_cw = jnp.dot(sa, expand_ref[...], preferred_element_type=f32)  # (Nb*H, CW)

    for i in range(Nb):
        o_ref[i] = (o_ref[i].astype(f32) *
                    sa_cw[i * H:(i + 1) * H, :]).astype(o_ref.dtype)


def _pick_block_n(n, *, max_block=8, min_steps=4):
    """Largest divisor of n (capped) that keeps >= min_steps grid steps
    (>= 2 per TensorCore on dual-TC chips); falls back to >= 2, then 1."""
    divs = [d for d in range(1, n + 1) if n % d == 0]
    for want_steps in (min_steps, 2, 1):
        cands = [d for d in divs if d <= max_block and n // d >= want_steps]
        if cands:
            return max(cands)
    return 1


def cbam_pallas(x_nchw, w1, w2, wconv, block_n=None):
    """x_nchw: (N,C,H,W); w1: (Cr,C) fc1; w2: (C,Cr) fc2; wconv: (1,2,k,k)."""
    N, C, H, W = x_nchw.shape
    Cr = w1.shape[0]
    ksize = wconv.shape[-1]
    pad = (ksize - 1) // 2
    Wp = W + 2 * pad
    CW = C * W
    f32 = jnp.float32

    assert (C & (C - 1)) == 0 and (W & (W - 1)) == 0, "C, W must be powers of 2"
    assert CW % 128 == 0, "C*W should be a multiple of 128 for lane density"

    if block_n is None:
        block_n = _pick_block_n(N)
    assert N % block_n == 0
    PACKW = block_n * 2 * Wp
    SLICE_W = PACKW - 2 * pad
    kk = ksize * ksize

    # (N,C,H,W) -> (N,H,C,W) -> (N,H,C*W): lane axis is c*W + w.
    x = jnp.transpose(x_nchw, (0, 2, 1, 3)).reshape(N, H, CW)

    eyeC = jnp.eye(C, dtype=f32)
    eyeW = jnp.eye(W, dtype=f32)
    # Fold global avg-pool (sum over w, 1/(H*W)) and the max-pick (lane c*W)
    # into the fc1 weights.
    sum_pick = jnp.repeat(eyeC, W, axis=0) / float(H * W)        # (CW, C)
    max_pick = jnp.zeros((CW, C), f32).at[
        jnp.arange(C) * W, jnp.arange(C)].set(1.0)               # (CW, C)
    w1a = sum_pick @ w1.T.astype(f32)                            # (CW, Cr)
    w1m = max_pick @ w1.T.astype(f32)                            # (CW, Cr)
    w2t = w2.T.astype(f32)                                       # (Cr, C)
    tile_m = jnp.repeat(eyeC, W, axis=1)                         # (C, CW)
    pool_m = jnp.tile(eyeW, (C, 1)) / float(C)                   # (CW, W)
    expand_m = jnp.tile(eyeW, (1, C))                            # (W, CW)

    # Per-tap weight table for the packed conv: for each of the k*k taps, the
    # lanes of every image block are [w_avg]*W, 0*2pad, [w_max]*W, 0*2pad.
    w_avg = wconv[0, 0].reshape(kk, 1).astype(f32)
    w_max = wconv[0, 1].reshape(kk, 1).astype(f32)
    onesW = jnp.ones((1, W), f32)
    zpadc = jnp.zeros((kk, Wp - W), f32)
    blockw = jnp.concatenate([w_avg * onesW, zpadc, w_max * onesW, zpadc],
                             axis=1)                             # (kk, 2*Wp)
    wtab = jnp.concatenate([blockw] * block_n, axis=1)[:, :SLICE_W]

    kernel = functools.partial(cbam_kernel, W=W, ksize=ksize)
    out = pl.pallas_call(
        kernel,
        out_shape=jax.ShapeDtypeStruct((N, H, CW), x.dtype),
        grid=(N // block_n,),
        in_specs=[
            pl.BlockSpec((block_n, H, CW), lambda n: (n, 0, 0)),   # x
            pl.BlockSpec((CW, Cr), lambda n: (0, 0)),              # w1a
            pl.BlockSpec((CW, Cr), lambda n: (0, 0)),              # w1m
            pl.BlockSpec((Cr, C), lambda n: (0, 0)),               # w2t
            pl.BlockSpec((C, CW), lambda n: (0, 0)),               # tile_m
            pl.BlockSpec((CW, W), lambda n: (0, 0)),               # pool_m
            pl.BlockSpec((W, CW), lambda n: (0, 0)),               # expand_m
            pl.BlockSpec((kk, SLICE_W), lambda n: (0, 0)),         # wtab
        ],
        out_specs=pl.BlockSpec((block_n, H, CW), lambda n: (n, 0, 0)),
        scratch_shapes=[
            pltpu.VMEM((H + 2 * pad, PACKW), f32),                 # packed maps
            pltpu.VMEM((ksize, H + 2 * pad, SLICE_W), f32),        # lane shifts
        ],
        compiler_params=pltpu.CompilerParams(
            dimension_semantics=("parallel",),
        ),
    )(x, w1a, w1m, w2t, tile_m, pool_m, expand_m, wtab)

    # (N,H,C*W) -> (N,H,C,W) -> NCHW
    return jnp.transpose(out.reshape(N, H, C, W), (0, 2, 1, 3))


def cbam_reference(x, w1, w2, wconv):
    """Pure-JAX reference mirroring the PyTorch module semantics (NCHW)."""
    avg = x.mean(axis=(2, 3))
    mx = x.max(axis=(2, 3))

    def mlp(v):
        return jnp.maximum(v @ w1.T, 0.0) @ w2.T

    ca = jax.nn.sigmoid(mlp(avg) + mlp(mx))
    xc = x * ca[:, :, None, None]
    avg_s = xc.mean(axis=1, keepdims=True)
    max_s = xc.max(axis=1, keepdims=True)
    m = jnp.concatenate([avg_s, max_s], axis=1)
    p = (wconv.shape[-1] - 1) // 2
    sa = lax.conv_general_dilated(
        m, wconv, (1, 1), ((p, p), (p, p)),
        dimension_numbers=("NCHW", "OIHW", "NCHW"))
    return xc * jax.nn.sigmoid(sa)


if __name__ == "__main__":
    N, C, H, W = 16, 32, 16, 16
    reduction = 16
    Cr = C // reduction

    key = jax.random.PRNGKey(0)
    kx, k1, k2, k3 = jax.random.split(key, 4)
    x = jax.random.normal(kx, (N, C, H, W), dtype=jnp.float32)
    # Conv2d(C, Cr, 1, bias=False) weight, squeezed to (Cr, C)
    w1 = 0.2 * jax.random.normal(k1, (Cr, C), dtype=jnp.float32)
    # Conv2d(Cr, C, 1, bias=False) weight, squeezed to (C, Cr)
    w2 = 0.2 * jax.random.normal(k2, (C, Cr), dtype=jnp.float32)
    # Conv2d(2, 1, 7, padding=3, bias=False) weight: (1, 2, 7, 7)
    wconv = 0.1 * jax.random.normal(k3, (1, 2, 7, 7), dtype=jnp.float32)

    out = jax.block_until_ready(cbam_pallas(x, w1, w2, wconv))
    ref = cbam_reference(x, w1, w2, wconv)

    assert out.shape == (N, C, H, W)
    assert jnp.allclose(out, ref, atol=1e-4, rtol=1e-4), "mismatch vs reference"

    print("KERNEL_OK")
</pallas_src>

<mosaic_0001>
module attributes {stable_mosaic.version = 11 : i64} {
  func.func @cbam_kernel(%arg0: i32, %arg1: memref<4x16x512xf32, #tpu.memory_space<vmem>>, %arg2: memref<512x2xf32, #tpu.memory_space<vmem>>, %arg3: memref<512x2xf32, #tpu.memory_space<vmem>>, %arg4: memref<2x32xf32, #tpu.memory_space<vmem>>, %arg5: memref<32x512xf32, #tpu.memory_space<vmem>>, %arg6: memref<512x16xf32, #tpu.memory_space<vmem>>, %arg7: memref<16x512xf32, #tpu.memory_space<vmem>>, %arg8: memref<49x170xf32, #tpu.memory_space<vmem>>, %arg9: memref<4x16x512xf32, #tpu.memory_space<vmem>>, %arg10: memref<22x176xf32, #tpu.memory_space<vmem>>, %arg11: memref<7x22x170xf32, #tpu.memory_space<vmem>>) attributes {dimension_semantics = [#tpu.dimension_semantics<parallel>], iteration_bounds = array<i64: 4>, scalar_prefetch = 0 : i64, scratch_operands = 2 : i64, tpu.core_type = #tpu.core_type<tc>, window_params = [{transform_indices = @transform_0, window_bounds = array<i64: 4, 16, 512>}, {pipeline_mode = #tpu.pipeline_mode<synchronous>, transform_indices = @transform_1, window_bounds = array<i64: 512, 2>}, {pipeline_mode = #tpu.pipeline_mode<synchronous>, transform_indices = @transform_2, window_bounds = array<i64: 512, 2>}, {pipeline_mode = #tpu.pipeline_mode<synchronous>, transform_indices = @transform_3, window_bounds = array<i64: 2, 32>}, {pipeline_mode = #tpu.pipeline_mode<synchronous>, transform_indices = @transform_4, window_bounds = array<i64: 32, 512>}, {pipeline_mode = #tpu.pipeline_mode<synchronous>, transform_indices = @transform_5, window_bounds = array<i64: 512, 16>}, {pipeline_mode = #tpu.pipeline_mode<synchronous>, transform_indices = @transform_6, window_bounds = array<i64: 16, 512>}, {pipeline_mode = #tpu.pipeline_mode<synchronous>, transform_indices = @transform_7, window_bounds = array<i64: 49, 170>}, {transform_indices = @transform_8, window_bounds = array<i64: 4, 16, 512>}]} {
    %c0 = arith.constant 0 : index
    %c0_0 = arith.constant 0 : index
    %c0_1 = arith.constant 0 : index
    %0 = vector.load %arg1[%c0, %c0_0, %c0_1] : memref<4x16x512xf32, #tpu.memory_space<vmem>>, vector<1x16x512xf32>
    %1 = vector.shape_cast %0 : vector<1x16x512xf32> to vector<16x512xf32>
    %cst = arith.constant dense<0.000000e+00> : vector<512xf32>
    %2 = vector.multi_reduction <add>, %1, %cst [0] : vector<16x512xf32> to vector<512xf32>
    %3 = vector.shape_cast %2 : vector<512xf32> to vector<1x512xf32>
    %cst_2 = arith.constant dense<0xFF800000> : vector<512xf32>
    %4 = vector.multi_reduction <maximumf>, %1, %cst_2 [0] : vector<16x512xf32> to vector<512xf32>
    %5 = vector.shape_cast %4 : vector<512xf32> to vector<1x512xf32>
    %c1 = arith.constant 1 : index
    %c0_3 = arith.constant 0 : index
    %c0_4 = arith.constant 0 : index
    %6 = vector.load %arg1[%c1, %c0_3, %c0_4] : memref<4x16x512xf32, #tpu.memory_space<vmem>>, vector<1x16x512xf32>
    %7 = vector.shape_cast %6 : vector<1x16x512xf32> to vector<16x512xf32>
    %cst_5 = arith.constant dense<0.000000e+00> : vector<512xf32>
    %8 = vector.multi_reduction <add>, %7, %cst_5 [0] : vector<16x512xf32> to vector<512xf32>
    %9 = vector.shape_cast %8 : vector<512xf32> to vector<1x512xf32>
    %cst_6 = arith.constant dense<0xFF800000> : vector<512xf32>
    %10 = vector.multi_reduction <maximumf>, %7, %cst_6 [0] : vector<16x512xf32> to vector<512xf32>
    %11 = vector.shape_cast %10 : vector<512xf32> to vector<1x512xf32>
    %c2 = arith.constant 2 : index
    %c0_7 = arith.constant 0 : index
    %c0_8 = arith.constant 0 : index
    %12 = vector.load %arg1[%c2, %c0_7, %c0_8] : memref<4x16x512xf32, #tpu.memory_space<vmem>>, vector<1x16x512xf32>
    %13 = vector.shape_cast %12 : vector<1x16x512xf32> to vector<16x512xf32>
    %cst_9 = arith.constant dense<0.000000e+00> : vector<512xf32>
    %14 = vector.multi_reduction <add>, %13, %cst_9 [0] : vector<16x512xf32> to vector<512xf32>
    %15 = vector.shape_cast %14 : vector<512xf32> to vector<1x512xf32>
    %cst_10 = arith.constant dense<0xFF800000> : vector<512xf32>
    %16 = vector.multi_reduction <maximumf>, %13, %cst_10 [0] : vector<16x512xf32> to vector<512xf32>
    %17 = vector.shape_cast %16 : vector<512xf32> to vector<1x512xf32>
    %c3 = arith.constant 3 : index
    %c0_11 = arith.constant 0 : index
    %c0_12 = arith.constant 0 : index
    %18 = vector.load %arg1[%c3, %c0_11, %c0_12] : memref<4x16x512xf32, #tpu.memory_space<vmem>>, vector<1x16x512xf32>
    %19 = vector.shape_cast %18 : vector<1x16x512xf32> to vector<16x512xf32>
    %cst_13 = arith.constant dense<0.000000e+00> : vector<512xf32>
    %20 = vector.multi_reduction <add>, %19, %cst_13 [0] : vector<16x512xf32> to vector<512xf32>
    %21 = vector.shape_cast %20 : vector<512xf32> to vector<1x512xf32>
    %cst_14 = arith.constant dense<0xFF800000> : vector<512xf32>
    %22 = vector.multi_reduction <maximumf>, %19, %cst_14 [0] : vector<16x512xf32> to vector<512xf32>
    %23 = vector.shape_cast %22 : vector<512xf32> to vector<1x512xf32>
    %24 = tpu.concatenate %3, %9, %15, %21 in 0 : vector<1x512xf32>, vector<1x512xf32>, vector<1x512xf32>, vector<1x512xf32> -> vector<4x512xf32>
    %25 = tpu.concatenate %5, %11, %17, %23 in 0 : vector<1x512xf32>, vector<1x512xf32>, vector<1x512xf32>, vector<1x512xf32> -> vector<4x512xf32>
    %26 = vector.extract_strided_slice %25 {offsets = [0, 1], sizes = [4, 511], strides = [1, 1]} : vector<4x512xf32> to vector<4x511xf32>
    %27 = vector.extract_strided_slice %25 {offsets = [0, 0], sizes = [4, 1], strides = [1, 1]} : vector<4x512xf32> to vector<4x1xf32>
    %28 = tpu.concatenate %26, %27 in 1 : vector<4x511xf32>, vector<4x1xf32> -> vector<4x512xf32>
    %29 = arith.maximumf %25, %28 : vector<4x512xf32>
    %30 = vector.extract_strided_slice %29 {offsets = [0, 2], sizes = [4, 510], strides = [1, 1]} : vector<4x512xf32> to vector<4x510xf32>
    %31 = vector.extract_strided_slice %29 {offsets = [0, 0], sizes = [4, 2], strides = [1, 1]} : vector<4x512xf32> to vector<4x2xf32>
    %32 = tpu.concatenate %30, %31 in 1 : vector<4x510xf32>, vector<4x2xf32> -> vector<4x512xf32>
    %33 = arith.maximumf %29, %32 : vector<4x512xf32>
    %34 = vector.extract_strided_slice %33 {offsets = [0, 4], sizes = [4, 508], strides = [1, 1]} : vector<4x512xf32> to vector<4x508xf32>
    %35 = vector.extract_strided_slice %33 {offsets = [0, 0], sizes = [4, 4], strides = [1, 1]} : vector<4x512xf32> to vector<4x4xf32>
    %36 = tpu.concatenate %34, %35 in 1 : vector<4x508xf32>, vector<4x4xf32> -> vector<4x512xf32>
    %37 = arith.maximumf %33, %36 : vector<4x512xf32>
    %38 = vector.extract_strided_slice %37 {offsets = [0, 8], sizes = [4, 504], strides = [1, 1]} : vector<4x512xf32> to vector<4x504xf32>
    %39 = vector.extract_strided_slice %37 {offsets = [0, 0], sizes = [4, 8], strides = [1, 1]} : vector<4x512xf32> to vector<4x8xf32>
    %40 = tpu.concatenate %38, %39 in 1 : vector<4x504xf32>, vector<4x8xf32> -> vector<4x512xf32>
    %41 = arith.maximumf %37, %40 : vector<4x512xf32>
    %c0_15 = arith.constant 0 : index
    %c0_16 = arith.constant 0 : index
    %42 = vector.load %arg2[%c0_15, %c0_16] : memref<512x2xf32, #tpu.memory_space<vmem>>, vector<512x2xf32>
    %cst_17 = arith.constant dense<0.000000e+00> : vector<4x2xf32>
    %43 = tpu.matmul %24, %42, %cst_17 {dimension_numbers = #tpu.dot_dimension_numbers<[1], [0], [0], [1], [0, 0, 1, 1], [], []>} : vector<4x512xf32>, vector<512x2xf32>, vector<4x2xf32> -> vector<4x2xf32>
    %cst_18 = arith.constant 0.000000e+00 : f32
    %44 = vector.broadcast %cst_18 : f32 to vector<4x2xf32>
    %45 = arith.maximumf %43, %44 : vector<4x2xf32>
    %c0_19 = arith.constant 0 : index
    %c0_20 = arith.constant 0 : index
    %46 = vector.load %arg3[%c0_19, %c0_20] : memref<512x2xf32, #tpu.memory_space<vmem>>, vector<512x2xf32>
    %cst_21 = arith.constant dense<0.000000e+00> : vector<4x2xf32>
    %47 = tpu.matmul %41, %46, %cst_21 {dimension_numbers = #tpu.dot_dimension_numbers<[1], [0], [0], [1], [0, 0, 1, 1], [], []>} : vector<4x512xf32>, vector<512x2xf32>, vector<4x2xf32> -> vector<4x2xf32>
    %cst_22 = arith.constant 0.000000e+00 : f32
    %48 = vector.broadcast %cst_22 : f32 to vector<4x2xf32>
    %49 = arith.maximumf %47, %48 : vector<4x2xf32>
    %50 = arith.addf %45, %49 : vector<4x2xf32>
    %c0_23 = arith.constant 0 : index
    %c0_24 = arith.constant 0 : index
    %51 = vector.load %arg4[%c0_23, %c0_24] : memref<2x32xf32, #tpu.memory_space<vmem>>, vector<2x32xf32>
    %cst_25 = arith.constant dense<0.000000e+00> : vector<4x32xf32>
    %52 = tpu.matmul %50, %51, %cst_25 {dimension_numbers = #tpu.dot_dimension_numbers<[1], [0], [0], [1], [0, 0, 1, 1], [], []>} : vector<4x2xf32>, vector<2x32xf32>, vector<4x32xf32> -> vector<4x32xf32>
    %53 = arith.negf %52 : vector<4x32xf32>
    %54 = math.exp %53 : vector<4x32xf32>
    %cst_26 = arith.constant 1.000000e+00 : f32
    %55 = vector.broadcast %cst_26 : f32 to vector<4x32xf32>
    %56 = arith.addf %55, %54 : vector<4x32xf32>
    %57 = arith.divf %55, %56 : vector<4x32xf32>
    %c0_27 = arith.constant 0 : index
    %c0_28 = arith.constant 0 : index
    %58 = vector.load %arg5[%c0_27, %c0_28] : memref<32x512xf32, #tpu.memory_space<vmem>>, vector<32x512xf32>
    %cst_29 = arith.constant dense<0.000000e+00> : vector<4x512xf32>
    %59 = tpu.matmul %57, %58, %cst_29 {dimension_numbers = #tpu.dot_dimension_numbers<[1], [0], [0], [1], [0, 0, 1, 1], [], []>} : vector<4x32xf32>, vector<32x512xf32>, vector<4x512xf32> -> vector<4x512xf32>
    %c0_30 = arith.constant 0 : index
    %c0_31 = arith.constant 0 : index
    %c0_32 = arith.constant 0 : index
    %60 = vector.load %arg1[%c0_30, %c0_31, %c0_32] : memref<4x16x512xf32, #tpu.memory_space<vmem>>, vector<1x16x512xf32>
    %61 = vector.shape_cast %60 : vector<1x16x512xf32> to vector<16x512xf32>
    %62 = vector.extract_strided_slice %59 {offsets = [0, 0], sizes = [1, 512], strides = [1, 1]} : vector<4x512xf32> to vector<1x512xf32>
    %63 = vector.broadcast %62 : vector<1x512xf32> to vector<16x512xf32>
    %64 = arith.mulf %61, %63 : vector<16x512xf32>
    %c0_33 = arith.constant 0 : index
    %c0_34 = arith.constant 0 : index
    %c0_35 = arith.constant 0 : index
    %65 = vector.load %arg9[%c0_33, %c0_34, %c0_35] : memref<4x16x512xf32, #tpu.memory_space<vmem>>, vector<1x16x512xf32>
    %66 = vector.shape_cast %65 : vector<1x16x512xf32> to vector<16x512xf32>
    %67 = vector.shape_cast %64 : vector<16x512xf32> to vector<1x16x512xf32>
    tpu.vector_store %arg9[%c0_33, %c0_34, %c0_35], %67 {strides = array<i32>} : memref<4x16x512xf32, #tpu.memory_space<vmem>>, vector<1x16x512xf32>,
    %c1_36 = arith.constant 1 : index
    %c0_37 = arith.constant 0 : index
    %c0_38 = arith.constant 0 : index
    %68 = vector.load %arg1[%c1_36, %c0_37, %c0_38] : memref<4x16x512xf32, #tpu.memory_space<vmem>>, vector<1x16x512xf32>
    %69 = vector.shape_cast %68 : vector<1x16x512xf32> to vector<16x512xf32>
    %70 = vector.extract_strided_slice %59 {offsets = [1, 0], sizes = [1, 512], strides = [1, 1]} : vector<4x512xf32> to vector<1x512xf32>
    %71 = vector.broadcast %70 : vector<1x512xf32> to vector<16x512xf32>
    %72 = arith.mulf %69, %71 : vector<16x512xf32>
    %c1_39 = arith.constant 1 : index
    %c0_40 = arith.constant 0 : index
    %c0_41 = arith.constant 0 : index
    %73 = vector.load %arg9[%c1_39, %c0_40, %c0_41] : memref<4x16x512xf32, #tpu.memory_space<vmem>>, vector<1x16x512xf32>
    %74 = vector.shape_cast %73 : vector<1x16x512xf32> to vector<16x512xf32>
    %75 = vector.shape_cast %72 : vector<16x512xf32> to vector<1x16x512xf32>
    tpu.vector_store %arg9[%c1_39, %c0_40, %c0_41], %75 {strides = array<i32>} : memref<4x16x512xf32, #tpu.memory_space<vmem>>, vector<1x16x512xf32>,
    %c2_42 = arith.constant 2 : index
    %c0_43 = arith.constant 0 : index
    %c0_44 = arith.constant 0 : index
    %76 = vector.load %arg1[%c2_42, %c0_43, %c0_44] : memref<4x16x512xf32, #tpu.memory_space<vmem>>, vector<1x16x512xf32>
    %77 = vector.shape_cast %76 : vector<1x16x512xf32> to vector<16x512xf32>
    %78 = vector.extract_strided_slice %59 {offsets = [2, 0], sizes = [1, 512], strides = [1, 1]} : vector<4x512xf32> to vector<1x512xf32>
    %79 = vector.broadcast %78 : vector<1x512xf32> to vector<16x512xf32>
    %80 = arith.mulf %77, %79 : vector<16x512xf32>
    %c2_45 = arith.constant 2 : index
    %c0_46 = arith.constant 0 : index
    %c0_47 = arith.constant 0 : index
    %81 = vector.load %arg9[%c2_45, %c0_46, %c0_47] : memref<4x16x512xf32, #tpu.memory_space<vmem>>, vector<1x16x512xf32>
    %82 = vector.shape_cast %81 : vector<1x16x512xf32> to vector<16x512xf32>
    %83 = vector.shape_cast %80 : vector<16x512xf32> to vector<1x16x512xf32>
    tpu.vector_store %arg9[%c2_45, %c0_46, %c0_47], %83 {strides = array<i32>} : memref<4x16x512xf32, #tpu.memory_space<vmem>>, vector<1x16x512xf32>,
    %c3_48 = arith.constant 3 : index
    %c0_49 = arith.constant 0 : index
    %c0_50 = arith.constant 0 : index
    %84 = vector.load %arg1[%c3_48, %c0_49, %c0_50] : memref<4x16x512xf32, #tpu.memory_space<vmem>>, vector<1x16x512xf32>
    %85 = vector.shape_cast %84 : vector<1x16x512xf32> to vector<16x512xf32>
    %86 = vector.extract_strided_slice %59 {offsets = [3, 0], sizes = [1, 512], strides = [1, 1]} : vector<4x512xf32> to vector<1x512xf32>
    %87 = vector.broadcast %86 : vector<1x512xf32> to vector<16x512xf32>
    %88 = arith.mulf %85, %87 : vector<16x512xf32>
    %c3_51 = arith.constant 3 : index
    %c0_52 = arith.constant 0 : index
    %c0_53 = arith.constant 0 : index
    %89 = vector.load %arg9[%c3_51, %c0_52, %c0_53] : memref<4x16x512xf32, #tpu.memory_space<vmem>>, vector<1x16x512xf32>
    %90 = vector.shape_cast %89 : vector<1x16x512xf32> to vector<16x512xf32>
    %91 = vector.shape_cast %88 : vector<16x512xf32> to vector<1x16x512xf32>
    tpu.vector_store %arg9[%c3_51, %c0_52, %c0_53], %91 {strides = array<i32>} : memref<4x16x512xf32, #tpu.memory_space<vmem>>, vector<1x16x512xf32>,
    %cst_54 = arith.constant 0.000000e+00 : f32
    %92 = vector.broadcast %cst_54 : f32 to vector<22x176xf32>
    %c0_55 = arith.constant 0 : index
    %c0_56 = arith.constant 0 : index
    %93 = vector.load %arg10[%c0_55, %c0_56] : memref<22x176xf32, #tpu.memory_space<vmem>>, vector<22x176xf32>
    tpu.vector_store %arg10[%c0_55, %c0_56], %92 {strides = array<i32>} : memref<22x176xf32, #tpu.memory_space<vmem>>, vector<22x176xf32>,
    %c0_57 = arith.constant 0 : index
    %c0_58 = arith.constant 0 : index
    %c0_59 = arith.constant 0 : index
    %94 = vector.load %arg9[%c0_57, %c0_58, %c0_59] : memref<4x16x512xf32, #tpu.memory_space<vmem>>, vector<4x16x512xf32>
    %95 = vector.shape_cast %94 : vector<4x16x512xf32> to vector<64x512xf32>
    %c0_60 = arith.constant 0 : index
    %c0_61 = arith.constant 0 : index
    %96 = vector.load %arg6[%c0_60, %c0_61] : memref<512x16xf32, #tpu.memory_space<vmem>>, vector<512x16xf32>
    %cst_62 = arith.constant dense<0.000000e+00> : vector<64x16xf32>
    %97 = tpu.matmul %95, %96, %cst_62 {dimension_numbers = #tpu.dot_dimension_numbers<[1], [0], [0], [1], [0, 0, 1, 1], [], []>} : vector<64x512xf32>, vector<512x16xf32>, vector<64x16xf32> -> vector<64x16xf32>
    %98 = vector.extract_strided_slice %95 {offsets = [0, 0], sizes = [64, 256], strides = [1, 1]} : vector<64x512xf32> to vector<64x256xf32>
    %99 = vector.extract_strided_slice %95 {offsets = [0, 256], sizes = [64, 256], strides = [1, 1]} : vector<64x512xf32> to vector<64x256xf32>
    %100 = arith.maximumf %98, %99 : vector<64x256xf32>
    %101 = vector.extract_strided_slice %100 {offsets = [0, 0], sizes = [64, 128], strides = [1, 1]} : vector<64x256xf32> to vector<64x128xf32>
    %102 = vector.extract_strided_slice %100 {offsets = [0, 128], sizes = [64, 128], strides = [1, 1]} : vector<64x256xf32> to vector<64x128xf32>
    %103 = arith.maximumf %101, %102 : vector<64x128xf32>
    %104 = vector.extract_strided_slice %103 {offsets = [0, 0], sizes = [64, 64], strides = [1, 1]} : vector<64x128xf32> to vector<64x64xf32>
    %105 = vector.extract_strided_slice %103 {offsets = [0, 64], sizes = [64, 64], strides = [1, 1]} : vector<64x128xf32> to vector<64x64xf32>
    %106 = arith.maximumf %104, %105 : vector<64x64xf32>
    %107 = vector.extract_strided_slice %106 {offsets = [0, 0], sizes = [64, 32], strides = [1, 1]} : vector<64x64xf32> to vector<64x32xf32>
    %108 = vector.extract_strided_slice %106 {offsets = [0, 32], sizes = [64, 32], strides = [1, 1]} : vector<64x64xf32> to vector<64x32xf32>
    %109 = arith.maximumf %107, %108 : vector<64x32xf32>
    %110 = vector.extract_strided_slice %109 {offsets = [0, 0], sizes = [64, 16], strides = [1, 1]} : vector<64x32xf32> to vector<64x16xf32>
    %111 = vector.extract_strided_slice %109 {offsets = [0, 16], sizes = [64, 16], strides = [1, 1]} : vector<64x32xf32> to vector<64x16xf32>
    %112 = arith.maximumf %110, %111 : vector<64x16xf32>
    %113 = vector.extract_strided_slice %97 {offsets = [0, 0], sizes = [16, 16], strides = [1, 1]} : vector<64x16xf32> to vector<16x16xf32>
    %c3_63 = arith.constant 3 : index
    %c3_64 = arith.constant 3 : index
    %114 = vector.load %arg10[%c3_63, %c3_64] : memref<22x176xf32, #tpu.memory_space<vmem>>, vector<16x16xf32>
    tpu.vector_store %arg10[%c3_63, %c3_64], %113 {strides = array<i32>} : memref<22x176xf32, #tpu.memory_space<vmem>>, vector<16x16xf32>,
    %115 = vector.extract_strided_slice %112 {offsets = [0, 0], sizes = [16, 16], strides = [1, 1]} : vector<64x16xf32> to vector<16x16xf32>
    %c3_65 = arith.constant 3 : index
    %c25 = arith.constant 25 : index
    %116 = vector.load %arg10[%c3_65, %c25] : memref<22x176xf32, #tpu.memory_space<vmem>>, vector<16x16xf32>
    tpu.vector_store %arg10[%c3_65, %c25], %115 {strides = array<i32>} : memref<22x176xf32, #tpu.memory_space<vmem>>, vector<16x16xf32>,
    %117 = vector.extract_strided_slice %97 {offsets = [16, 0], sizes = [16, 16], strides = [1, 1]} : vector<64x16xf32> to vector<16x16xf32>
    %c3_66 = arith.constant 3 : index
    %c47 = arith.constant 47 : index
    %118 = vector.load %arg10[%c3_66, %c47] : memref<22x176xf32, #tpu.memory_space<vmem>>, vector<16x16xf32>
    tpu.vector_store %arg10[%c3_66, %c47], %117 {strides = array<i32>} : memref<22x176xf32, #tpu.memory_space<vmem>>, vector<16x16xf32>,
    %119 = vector.extract_strided_slice %112 {offsets = [16, 0], sizes = [16, 16], strides = [1, 1]} : vector<64x16xf32> to vector<16x16xf32>
    %c3_67 = arith.constant 3 : index
    %c69 = arith.constant 69 : index
    %120 = vector.load %arg10[%c3_67, %c69] : memref<22x176xf32, #tpu.memory_space<vmem>>, vector<16x16xf32>
    tpu.vector_store %arg10[%c3_67, %c69], %119 {strides = array<i32>} : memref<22x176xf32, #tpu.memory_space<vmem>>, vector<16x16xf32>,
    %121 = vector.extract_strided_slice %97 {offsets = [32, 0], sizes = [16, 16], strides = [1, 1]} : vector<64x16xf32> to vector<16x16xf32>
    %c3_68 = arith.constant 3 : index
    %c91 = arith.constant 91 : index
    %122 = vector.load %arg10[%c3_68, %c91] : memref<22x176xf32, #tpu.memory_space<vmem>>, vector<16x16xf32>
    tpu.vector_store %arg10[%c3_68, %c91], %121 {strides = array<i32>} : memref<22x176xf32, #tpu.memory_space<vmem>>, vector<16x16xf32>,
    %123 = vector.extract_strided_slice %112 {offsets = [32, 0], sizes = [16, 16], strides = [1, 1]} : vector<64x16xf32> to vector<16x16xf32>
    %c3_69 = arith.constant 3 : index
    %c113 = arith.constant 113 : index
    %124 = vector.load %arg10[%c3_69, %c113] : memref<22x176xf32, #tpu.memory_space<vmem>>, vector<16x16xf32>
    tpu.vector_store %arg10[%c3_69, %c113], %123 {strides = array<i32>} : memref<22x176xf32, #tpu.memory_space<vmem>>, vector<16x16xf32>,
    %125 = vector.extract_strided_slice %97 {offsets = [48, 0], sizes = [16, 16], strides = [1, 1]} : vector<64x16xf32> to vector<16x16xf32>
    %c3_70 = arith.constant 3 : index
    %c135 = arith.constant 135 : index
    %126 = vector.load %arg10[%c3_70, %c135] : memref<22x176xf32, #tpu.memory_space<vmem>>, vector<16x16xf32>
    tpu.vector_store %arg10[%c3_70, %c135], %125 {strides = array<i32>} : memref<22x176xf32, #tpu.memory_space<vmem>>, vector<16x16xf32>,
    %127 = vector.extract_strided_slice %112 {offsets = [48, 0], sizes = [16, 16], strides = [1, 1]} : vector<64x16xf32> to vector<16x16xf32>
    %c3_71 = arith.constant 3 : index
    %c157 = arith.constant 157 : index
    %128 = vector.load %arg10[%c3_71, %c157] : memref<22x176xf32, #tpu.memory_space<vmem>>, vector<16x16xf32>
    tpu.vector_store %arg10[%c3_71, %c157], %127 {strides = array<i32>} : memref<22x176xf32, #tpu.memory_space<vmem>>, vector<16x16xf32>,
    %c0_72 = arith.constant 0 : index
    %c0_73 = arith.constant 0 : index
    %129 = vector.load %arg10[%c0_72, %c0_73] : memref<22x176xf32, #tpu.memory_space<vmem>>, vector<22x170xf32>
    %c0_74 = arith.constant 0 : index
    %c0_75 = arith.constant 0 : index
    %c0_76 = arith.constant 0 : index
    %130 = vector.load %arg11[%c0_74, %c0_75, %c0_76] : memref<7x22x170xf32, #tpu.memory_space<vmem>>, vector<1x22x170xf32>
    %131 = vector.shape_cast %130 : vector<1x22x170xf32> to vector<22x170xf32>
    %132 = vector.shape_cast %129 : vector<22x170xf32> to vector<1x22x170xf32>
    tpu.vector_store %arg11[%c0_74, %c0_75, %c0_76], %132 {strides = array<i32>} : memref<7x22x170xf32, #tpu.memory_space<vmem>>, vector<1x22x170xf32>,
    %c0_77 = arith.constant 0 : index
    %c1_78 = arith.constant 1 : index
    %133 = vector.load %arg10[%c0_77, %c1_78] : memref<22x176xf32, #tpu.memory_space<vmem>>, vector<22x170xf32>
    %c1_79 = arith.constant 1 : index
    %c0_80 = arith.constant 0 : index
    %c0_81 = arith.constant 0 : index
    %134 = vector.load %arg11[%c1_79, %c0_80, %c0_81] : memref<7x22x170xf32, #tpu.memory_space<vmem>>, vector<1x22x170xf32>
    %135 = vector.shape_cast %134 : vector<1x22x170xf32> to vector<22x170xf32>
    %136 = vector.shape_cast %133 : vector<22x170xf32> to vector<1x22x170xf32>
    tpu.vector_store %arg11[%c1_79, %c0_80, %c0_81], %136 {strides = array<i32>} : memref<7x22x170xf32, #tpu.memory_space<vmem>>, vector<1x22x170xf32>,
    %c0_82 = arith.constant 0 : index
    %c2_83 = arith.constant 2 : index
    %137 = vector.load %arg10[%c0_82, %c2_83] : memref<22x176xf32, #tpu.memory_space<vmem>>, vector<22x170xf32>
    %c2_84 = arith.constant 2 : index
    %c0_85 = arith.constant 0 : index
    %c0_86 = arith.constant 0 : index
    %138 = vector.load %arg11[%c2_84, %c0_85, %c0_86] : memref<7x22x170xf32, #tpu.memory_space<vmem>>, vector<1x22x170xf32>
    %139 = vector.shape_cast %138 : vector<1x22x170xf32> to vector<22x170xf32>
    %140 = vector.shape_cast %137 : vector<22x170xf32> to vector<1x22x170xf32>
    tpu.vector_store %arg11[%c2_84, %c0_85, %c0_86], %140 {strides = array<i32>} : memref<7x22x170xf32, #tpu.memory_space<vmem>>, vector<1x22x170xf32>,
    %c0_87 = arith.constant 0 : index
    %c3_88 = arith.constant 3 : index
    %141 = vector.load %arg10[%c0_87, %c3_88] : memref<22x176xf32, #tpu.memory_space<vmem>>, vector<22x170xf32>
    %c3_89 = arith.constant 3 : index
    %c0_90 = arith.constant 0 : index
    %c0_91 = arith.constant 0 : index
    %142 = vector.load %arg11[%c3_89, %c0_90, %c0_91] : memref<7x22x170xf32, #tpu.memory_space<vmem>>, vector<1x22x170xf32>
    %143 = vector.shape_cast %142 : vector<1x22x170xf32> to vector<22x170xf32>
    %144 = vector.shape_cast %141 : vector<22x170xf32> to vector<1x22x170xf32>
    tpu.vector_store %arg11[%c3_89, %c0_90, %c0_91], %144 {strides = array<i32>} : memref<7x22x170xf32, #tpu.memory_space<vmem>>, vector<1x22x170xf32>,
    %c0_92 = arith.constant 0 : index
    %c4 = arith.constant 4 : index
    %145 = vector.load %arg10[%c0_92, %c4] : memref<22x176xf32, #tpu.memory_space<vmem>>, vector<22x170xf32>
    %c4_93 = arith.constant 4 : index
    %c0_94 = arith.constant 0 : index
    %c0_95 = arith.constant 0 : index
    %146 = vector.load %arg11[%c4_93, %c0_94, %c0_95] : memref<7x22x170xf32, #tpu.memory_space<vmem>>, vector<1x22x170xf32>
    %147 = vector.shape_cast %146 : vector<1x22x170xf32> to vector<22x170xf32>
    %148 = vector.shape_cast %145 : vector<22x170xf32> to vector<1x22x170xf32>
    tpu.vector_store %arg11[%c4_93, %c0_94, %c0_95], %148 {strides = array<i32>} : memref<7x22x170xf32, #tpu.memory_space<vmem>>, vector<1x22x170xf32>,
    %c0_96 = arith.constant 0 : index
    %c5 = arith.constant 5 : index
    %149 = vector.load %arg10[%c0_96, %c5] : memref<22x176xf32, #tpu.memory_space<vmem>>, vector<22x170xf32>
    %c5_97 = arith.constant 5 : index
    %c0_98 = arith.constant 0 : index
    %c0_99 = arith.constant 0 : index
    %150 = vector.load %arg11[%c5_97, %c0_98, %c0_99] : memref<7x22x170xf32, #tpu.memory_space<vmem>>, vector<1x22x170xf32>
    %151 = vector.shape_cast %150 : vector<1x22x170xf32> to vector<22x170xf32>
    %152 = vector.shape_cast %149 : vector<22x170xf32> to vector<1x22x170xf32>
    tpu.vector_store %arg11[%c5_97, %c0_98, %c0_99], %152 {strides = array<i32>} : memref<7x22x170xf32, #tpu.memory_space<vmem>>, vector<1x22x170xf32>,
    %c0_100 = arith.constant 0 : index
    %c6 = arith.constant 6 : index
    %153 = vector.load %arg10[%c0_100, %c6] : memref<22x176xf32, #tpu.memory_space<vmem>>, vector<22x170xf32>
    %c6_101 = arith.constant 6 : index
    %c0_102 = arith.constant 0 : index
    %c0_103 = arith.constant 0 : index
    %154 = vector.load %arg11[%c6_101, %c0_102, %c0_103] : memref<7x22x170xf32, #tpu.memory_space<vmem>>, vector<1x22x170xf32>
    %155 = vector.shape_cast %154 : vector<1x22x170xf32> to vector<22x170xf32>
    %156 = vector.shape_cast %153 : vector<22x170xf32> to vector<1x22x170xf32>
    tpu.vector_store %arg11[%c6_101, %c0_102, %c0_103], %156 {strides = array<i32>} : memref<7x22x170xf32, #tpu.memory_space<vmem>>, vector<1x22x170xf32>,
    %cst_104 = arith.constant 0.000000e+00 : f32
    %157 = vector.broadcast %cst_104 : f32 to vector<16x170xf32>
    %cst_105 = arith.constant 0.000000e+00 : f32
    %158 = vector.broadcast %cst_105 : f32 to vector<16x170xf32>
    %cst_106 = arith.constant 0.000000e+00 : f32
    %159 = vector.broadcast %cst_106 : f32 to vector<16x170xf32>
    %cst_107 = arith.constant 0.000000e+00 : f32
    %160 = vector.broadcast %cst_107 : f32 to vector<16x170xf32>
    %c0_108 = arith.constant 0 : index
    %c0_109 = arith.constant 0 : index
    %c0_110 = arith.constant 0 : index
    %161 = vector.load %arg11[%c0_108, %c0_109, %c0_110] : memref<7x22x170xf32, #tpu.memory_space<vmem>>, vector<1x16x170xf32>
    %162 = vector.shape_cast %161 : vector<1x16x170xf32> to vector<16x170xf32>
    %c0_111 = arith.constant 0 : index
    %c0_112 = arith.constant 0 : index
    %163 = vector.load %arg8[%c0_111, %c0_112] : memref<49x170xf32, #tpu.memory_space<vmem>>, vector<1x170xf32>
    %164 = vector.broadcast %163 : vector<1x170xf32> to vector<16x170xf32>
    %165 = arith.mulf %162, %164 : vector<16x170xf32>
    %166 = arith.addf %157, %165 : vector<16x170xf32>
    %c1_113 = arith.constant 1 : index
    %c0_114 = arith.constant 0 : index
    %c0_115 = arith.constant 0 : index
    %167 = vector.load %arg11[%c1_113, %c0_114, %c0_115] : memref<7x22x170xf32, #tpu.memory_space<vmem>>, vector<1x16x170xf32>
    %168 = vector.shape_cast %167 : vector<1x16x170xf32> to vector<16x170xf32>
    %c1_116 = arith.constant 1 : index
    %c0_117 = arith.constant 0 : index
    %169 = vector.load %arg8[%c1_116, %c0_117] : memref<49x170xf32, #tpu.memory_space<vmem>>, vector<1x170xf32>
    %170 = vector.broadcast %169 : vector<1x170xf32> to vector<16x170xf32>
    %171 = arith.mulf %168, %170 : vector<16x170xf32>
    %172 = arith.addf %158, %171 : vector<16x170xf32>
    %c2_118 = arith.constant 2 : index
    %c0_119 = arith.constant 0 : index
    %c0_120 = arith.constant 0 : index
    %173 = vector.load %arg11[%c2_118, %c0_119, %c0_120] : memref<7x22x170xf32, #tpu.memory_space<vmem>>, vector<1x16x170xf32>
    %174 = vector.shape_cast %173 : vector<1x16x170xf32> to vector<16x170xf32>
    %c2_121 = arith.constant 2 : index
    %c0_122 = arith.constant 0 : index
    %175 = vector.load %arg8[%c2_121, %c0_122] : memref<49x170xf32, #tpu.memory_space<vmem>>, vector<1x170xf32>
    %176 = vector.broadcast %175 : vector<1x170xf32> to vector<16x170xf32>
    %177 = arith.mulf %174, %176 : vector<16x170xf32>
    %178 = arith.addf %159, %177 : vector<16x170xf32>
    %c3_123 = arith.constant 3 : index
    %c0_124 = arith.constant 0 : index
    %c0_125 = arith.constant 0 : index
    %179 = vector.load %arg11[%c3_123, %c0_124, %c0_125] : memref<7x22x170xf32, #tpu.memory_space<vmem>>, vector<1x16x170xf32>
    %180 = vector.shape_cast %179 : vector<1x16x170xf32> to vector<16x170xf32>
    %c3_126 = arith.constant 3 : index
    %c0_127 = arith.constant 0 : index
    %181 = vector.load %arg8[%c3_126, %c0_127] : memref<49x170xf32, #tpu.memory_space<vmem>>, vector<1x170xf32>
    %182 = vector.broadcast %181 : vector<1x170xf32> to vector<16x170xf32>
    %183 = arith.mulf %180, %182 : vector<16x170xf32>
    %184 = arith.addf %160, %183 : vector<16x170xf32>
    %c4_128 = arith.constant 4 : index
    %c0_129 = arith.constant 0 : index
    %c0_130 = arith.constant 0 : index
    %185 = vector.load %arg11[%c4_128, %c0_129, %c0_130] : memref<7x22x170xf32, #tpu.memory_space<vmem>>, vector<1x16x170xf32>
    %186 = vector.shape_cast %185 : vector<1x16x170xf32> to vector<16x170xf32>
    %c4_131 = arith.constant 4 : index
    %c0_132 = arith.constant 0 : index
    %187 = vector.load %arg8[%c4_131, %c0_132] : memref<49x170xf32, #tpu.memory_space<vmem>>, vector<1x170xf32>
    %188 = vector.broadcast %187 : vector<1x170xf32> to vector<16x170xf32>
    %189 = arith.mulf %186, %188 : vector<16x170xf32>
    %190 = arith.addf %166, %189 : vector<16x170xf32>
    %c5_133 = arith.constant 5 : index
    %c0_134 = arith.constant 0 : index
    %c0_135 = arith.constant 0 : index
    %191 = vector.load %arg11[%c5_133, %c0_134, %c0_135] : memref<7x22x170xf32, #tpu.memory_space<vmem>>, vector<1x16x170xf32>
    %192 = vector.shape_cast %191 : vector<1x16x170xf32> to vector<16x170xf32>
    %c5_136 = arith.constant 5 : index
    %c0_137 = arith.constant 0 : index
    %193 = vector.load %arg8[%c5_136, %c0_137] : memref<49x170xf32, #tpu.memory_space<vmem>>, vector<1x170xf32>
    %194 = vector.broadcast %193 : vector<1x170xf32> to vector<16x170xf32>
    %195 = arith.mulf %192, %194 : vector<16x170xf32>
    %196 = arith.addf %172, %195 : vector<16x170xf32>
    %c6_138 = arith.constant 6 : index
    %c0_139 = arith.constant 0 : index
    %c0_140 = arith.constant 0 : index
    %197 = vector.load %arg11[%c6_138, %c0_139, %c0_140] : memref<7x22x170xf32, #tpu.memory_space<vmem>>, vector<1x16x170xf32>
    %198 = vector.shape_cast %197 : vector<1x16x170xf32> to vector<16x170xf32>
    %c6_141 = arith.constant 6 : index
    %c0_142 = arith.constant 0 : index
    %199 = vector.load %arg8[%c6_141, %c0_142] : memref<49x170xf32, #tpu.memory_space<vmem>>, vector<1x170xf32>
    %200 = vector.broadcast %199 : vector<1x170xf32> to vector<16x170xf32>
    %201 = arith.mulf %198, %200 : vector<16x170xf32>
    %202 = arith.addf %178, %201 : vector<16x170xf32>
    %c0_143 = arith.constant 0 : index
    %c1_144 = arith.constant 1 : index
    %c0_145 = arith.constant 0 : index
    %203 = vector.load %arg11[%c0_143, %c1_144, %c0_145] : memref<7x22x170xf32, #tpu.memory_space<vmem>>, vector<1x16x170xf32>
    %204 = vector.shape_cast %203 : vector<1x16x170xf32> to vector<16x170xf32>
    %c7 = arith.constant 7 : index
    %c0_146 = arith.constant 0 : index
    %205 = vector.load %arg8[%c7, %c0_146] : memref<49x170xf32, #tpu.memory_space<vmem>>, vector<1x170xf32>
    %206 = vector.broadcast %205 : vector<1x170xf32> to vector<16x170xf32>
    %207 = arith.mulf %204, %206 : vector<16x170xf32>
    %208 = arith.addf %184, %207 : vector<16x170xf32>
    %c1_147 = arith.constant 1 : index
    %c1_148 = arith.constant 1 : index
    %c0_149 = arith.constant 0 : index
    %209 = vector.load %arg11[%c1_147, %c1_148, %c0_149] : memref<7x22x170xf32, #tpu.memory_space<vmem>>, vector<1x16x170xf32>
    %210 = vector.shape_cast %209 : vector<1x16x170xf32> to vector<16x170xf32>
    %c8 = arith.constant 8 : index
    %c0_150 = arith.constant 0 : index
    %211 = vector.load %arg8[%c8, %c0_150] : memref<49x170xf32, #tpu.memory_space<vmem>>, vector<1x170xf32>
    %212 = vector.broadcast %211 : vector<1x170xf32> to vector<16x170xf32>
    %213 = arith.mulf %210, %212 : vector<16x170xf32>
    %214 = arith.addf %190, %213 : vector<16x170xf32>
    %c2_151 = arith.constant 2 : index
    %c1_152 = arith.constant 1 : index
    %c0_153 = arith.constant 0 : index
    %215 = vector.load %arg11[%c2_151, %c1_152, %c0_153] : memref<7x22x170xf32, #tpu.memory_space<vmem>>, vector<1x16x170xf32>
    %216 = vector.shape_cast %215 : vector<1x16x170xf32> to vector<16x170xf32>
    %c9 = arith.constant 9 : index
    %c0_154 = arith.constant 0 : index
    %217 = vector.load %arg8[%c9, %c0_154] : memref<49x170xf32, #tpu.memory_space<vmem>>, vector<1x170xf32>
    %218 = vector.broadcast %217 : vector<1x170xf32> to vector<16x170xf32>
    %219 = arith.mulf %216, %218 : vector<16x170xf32>
    %220 = arith.addf %196, %219 : vector<16x170xf32>
    %c3_155 = arith.constant 3 : index
    %c1_156 = arith.constant 1 : index
    %c0_157 = arith.constant 0 : index
    %221 = vector.load %arg11[%c3_155, %c1_156, %c0_157] : memref<7x22x170xf32, #tpu.memory_space<vmem>>, vector<1x16x170xf32>
    %222 = vector.shape_cast %221 : vector<1x16x170xf32> to vector<16x170xf32>
    %c10 = arith.constant 10 : index
    %c0_158 = arith.constant 0 : index
    %223 = vector.load %arg8[%c10, %c0_158] : memref<49x170xf32, #tpu.memory_space<vmem>>, vector<1x170xf32>
    %224 = vector.broadcast %223 : vector<1x170xf32> to vector<16x170xf32>
    %225 = arith.mulf %222, %224 : vector<16x170xf32>
    %226 = arith.addf %202, %225 : vector<16x170xf32>
    %c4_159 = arith.constant 4 : index
    %c1_160 = arith.constant 1 : index
    %c0_161 = arith.constant 0 : index
    %227 = vector.load %arg11[%c4_159, %c1_160, %c0_161] : memref<7x22x170xf32, #tpu.memory_space<vmem>>, vector<1x16x170xf32>
    %228 = vector.shape_cast %227 : vector<1x16x170xf32> to vector<16x170xf32>
    %c11 = arith.constant 11 : index
    %c0_162 = arith.constant 0 : index
    %229 = vector.load %arg8[%c11, %c0_162] : memref<49x170xf32, #tpu.memory_space<vmem>>, vector<1x170xf32>
    %230 = vector.broadcast %229 : vector<1x170xf32> to vector<16x170xf32>
    %231 = arith.mulf %228, %230 : vector<16x170xf32>
    %232 = arith.addf %208, %231 : vector<16x170xf32>
    %c5_163 = arith.constant 5 : index
    %c1_164 = arith.constant 1 : index
    %c0_165 = arith.constant 0 : index
    %233 = vector.load %arg11[%c5_163, %c1_164, %c0_165] : memref<7x22x170xf32, #tpu.memory_space<vmem>>, vector<1x16x170xf32>
    %234 = vector.shape_cast %233 : vector<1x16x170xf32> to vector<16x170xf32>
    %c12 = arith.constant 12 : index
    %c0_166 = arith.constant 0 : index
    %235 = vector.load %arg8[%c12, %c0_166] : memref<49x170xf32, #tpu.memory_space<vmem>>, vector<1x170xf32>
    %236 = vector.broadcast %235 : vector<1x170xf32> to vector<16x170xf32>
    %237 = arith.mulf %234, %236 : vector<16x170xf32>
    %238 = arith.addf %214, %237 : vector<16x170xf32>
    %c6_167 = arith.constant 6 : index
    %c1_168 = arith.constant 1 : index
    %c0_169 = arith.constant 0 : index
    %239 = vector.load %arg11[%c6_167, %c1_168, %c0_169] : memref<7x22x170xf32, #tpu.memory_space<vmem>>, vector<1x16x170xf32>
    %240 = vector.shape_cast %239 : vector<1x16x170xf32> to vector<16x170xf32>
    %c13 = arith.constant 13 : index
    %c0_170 = arith.constant 0 : index
    %241 = vector.load %arg8[%c13, %c0_170] : memref<49x170xf32, #tpu.memory_space<vmem>>, vector<1x170xf32>
    %242 = vector.broadcast %241 : vector<1x170xf32> to vector<16x170xf32>
    %243 = arith.mulf %240, %242 : vector<16x170xf32>
    %244 = arith.addf %220, %243 : vector<16x170xf32>
    %c0_171 = arith.constant 0 : index
    %c2_172 = arith.constant 2 : index
    %c0_173 = arith.constant 0 : index
    %245 = vector.load %arg11[%c0_171, %c2_172, %c0_173] : memref<7x22x170xf32, #tpu.memory_space<vmem>>, vector<1x16x170xf32>
    %246 = vector.shape_cast %245 : vector<1x16x170xf32> to vector<16x170xf32>
    %c14 = arith.constant 14 : index
    %c0_174 = arith.constant 0 : index
    %247 = vector.load %arg8[%c14, %c0_174] : memref<49x170xf32, #tpu.memory_space<vmem>>, vector<1x170xf32>
    %248 = vector.broadcast %247 : vector<1x170xf32> to vector<16x170xf32>
    %249 = arith.mulf %246, %248 : vector<16x170xf32>
    %250 = arith.addf %226, %249 : vector<16x170xf32>
    %c1_175 = arith.constant 1 : index
    %c2_176 = arith.constant 2 : index
    %c0_177 = arith.constant 0 : index
    %251 = vector.load %arg11[%c1_175, %c2_176, %c0_177] : memref<7x22x170xf32, #tpu.memory_space<vmem>>, vector<1x16x170xf32>
    %252 = vector.shape_cast %251 : vector<1x16x170xf32> to vector<16x170xf32>
    %c15 = arith.constant 15 : index
    %c0_178 = arith.constant 0 : index
    %253 = vector.load %arg8[%c15, %c0_178] : memref<49x170xf32, #tpu.memory_space<vmem>>, vector<1x170xf32>
    %254 = vector.broadcast %253 : vector<1x170xf32> to vector<16x170xf32>
    %255 = arith.mulf %252, %254 : vector<16x170xf32>
    %256 = arith.addf %232, %255 : vector<16x170xf32>
    %c2_179 = arith.constant 2 : index
    %c2_180 = arith.constant 2 : index
    %c0_181 = arith.constant 0 : index
    %257 = vector.load %arg11[%c2_179, %c2_180, %c0_181] : memref<7x22x170xf32, #tpu.memory_space<vmem>>, vector<1x16x170xf32>
    %258 = vector.shape_cast %257 : vector<1x16x170xf32> to vector<16x170xf32>
    %c16 = arith.constant 16 : index
    %c0_182 = arith.constant 0 : index
    %259 = vector.load %arg8[%c16, %c0_182] : memref<49x170xf32, #tpu.memory_space<vmem>>, vector<1x170xf32>
    %260 = vector.broadcast %259 : vector<1x170xf32> to vector<16x170xf32>
    %261 = arith.mulf %258, %260 : vector<16x170xf32>
    %262 = arith.addf %238, %261 : vector<16x170xf32>
    %c3_183 = arith.constant 3 : index
    %c2_184 = arith.constant 2 : index
    %c0_185 = arith.constant 0 : index
    %263 = vector.load %arg11[%c3_183, %c2_184, %c0_185] : memref<7x22x170xf32, #tpu.memory_space<vmem>>, vector<1x16x170xf32>
    %264 = vector.shape_cast %263 : vector<1x16x170xf32> to vector<16x170xf32>
    %c17 = arith.constant 17 : index
    %c0_186 = arith.constant 0 : index
    %265 = vector.load %arg8[%c17, %c0_186] : memref<49x170xf32, #tpu.memory_space<vmem>>, vector<1x170xf32>
    %266 = vector.broadcast %265 : vector<1x170xf32> to vector<16x170xf32>
    %267 = arith.mulf %264, %266 : vector<16x170xf32>
    %268 = arith.addf %244, %267 : vector<16x170xf32>
    %c4_187 = arith.constant 4 : index
    %c2_188 = arith.constant 2 : index
    %c0_189 = arith.constant 0 : index
    %269 = vector.load %arg11[%c4_187, %c2_188, %c0_189] : memref<7x22x170xf32, #tpu.memory_space<vmem>>, vector<1x16x170xf32>
    %270 = vector.shape_cast %269 : vector<1x16x170xf32> to vector<16x170xf32>
    %c18 = arith.constant 18 : index
    %c0_190 = arith.constant 0 : index
    %271 = vector.load %arg8[%c18, %c0_190] : memref<49x170xf32, #tpu.memory_space<vmem>>, vector<1x170xf32>
    %272 = vector.broadcast %271 : vector<1x170xf32> to vector<16x170xf32>
    %273 = arith.mulf %270, %272 : vector<16x170xf32>
    %274 = arith.addf %250, %273 : vector<16x170xf32>
    %c5_191 = arith.constant 5 : index
    %c2_192 = arith.constant 2 : index
    %c0_193 = arith.constant 0 : index
    %275 = vector.load %arg11[%c5_191, %c2_192, %c0_193] : memref<7x22x170xf32, #tpu.memory_space<vmem>>, vector<1x16x170xf32>
    %276 = vector.shape_cast %275 : vector<1x16x170xf32> to vector<16x170xf32>
    %c19 = arith.constant 19 : index
    %c0_194 = arith.constant 0 : index
    %277 = vector.load %arg8[%c19, %c0_194] : memref<49x170xf32, #tpu.memory_space<vmem>>, vector<1x170xf32>
    %278 = vector.broadcast %277 : vector<1x170xf32> to vector<16x170xf32>
    %279 = arith.mulf %276, %278 : vector<16x170xf32>
    %280 = arith.addf %256, %279 : vector<16x170xf32>
    %c6_195 = arith.constant 6 : index
    %c2_196 = arith.constant 2 : index
    %c0_197 = arith.constant 0 : index
    %281 = vector.load %arg11[%c6_195, %c2_196, %c0_197] : memref<7x22x170xf32, #tpu.memory_space<vmem>>, vector<1x16x170xf32>
    %282 = vector.shape_cast %281 : vector<1x16x170xf32> to vector<16x170xf32>
    %c20 = arith.constant 20 : index
    %c0_198 = arith.constant 0 : index
    %283 = vector.load %arg8[%c20, %c0_198] : memref<49x170xf32, #tpu.memory_space<vmem>>, vector<1x170xf32>
    %284 = vector.broadcast %283 : vector<1x170xf32> to vector<16x170xf32>
    %285 = arith.mulf %282, %284 : vector<16x170xf32>
    %286 = arith.addf %262, %285 : vector<16x170xf32>
    %c0_199 = arith.constant 0 : index
    %c3_200 = arith.constant 3 : index
    %c0_201 = arith.constant 0 : index
    %287 = vector.load %arg11[%c0_199, %c3_200, %c0_201] : memref<7x22x170xf32, #tpu.memory_space<vmem>>, vector<1x16x170xf32>
    %288 = vector.shape_cast %287 : vector<1x16x170xf32> to vector<16x170xf32>
    %c21 = arith.constant 21 : index
    %c0_202 = arith.constant 0 : index
    %289 = vector.load %arg8[%c21, %c0_202] : memref<49x170xf32, #tpu.memory_space<vmem>>, vector<1x170xf32>
    %290 = vector.broadcast %289 : vector<1x170xf32> to vector<16x170xf32>
    %291 = arith.mulf %288, %290 : vector<16x170xf32>
    %292 = arith.addf %268, %291 : vector<16x170xf32>
    %c1_203 = arith.constant 1 : index
    %c3_204 = arith.constant 3 : index
    %c0_205 = arith.constant 0 : index
    %293 = vector.load %arg11[%c1_203, %c3_204, %c0_205] : memref<7x22x170xf32, #tpu.memory_space<vmem>>, vector<1x16x170xf32>
    %294 = vector.shape_cast %293 : vector<1x16x170xf32> to vector<16x170xf32>
    %c22 = arith.constant 22 : index
    %c0_206 = arith.constant 0 : index
    %295 = vector.load %arg8[%c22, %c0_206] : memref<49x170xf32, #tpu.memory_space<vmem>>, vector<1x170xf32>
    %296 = vector.broadcast %295 : vector<1x170xf32> to vector<16x170xf32>
    %297 = arith.mulf %294, %296 : vector<16x170xf32>
    %298 = arith.addf %274, %297 : vector<16x170xf32>
    %c2_207 = arith.constant 2 : index
    %c3_208 = arith.constant 3 : index
    %c0_209 = arith.constant 0 : index
    %299 = vector.load %arg11[%c2_207, %c3_208, %c0_209] : memref<7x22x170xf32, #tpu.memory_space<vmem>>, vector<1x16x170xf32>
    %300 = vector.shape_cast %299 : vector<1x16x170xf32> to vector<16x170xf32>
    %c23 = arith.constant 23 : index
    %c0_210 = arith.constant 0 : index
    %301 = vector.load %arg8[%c23, %c0_210] : memref<49x170xf32, #tpu.memory_space<vmem>>, vector<1x170xf32>
    %302 = vector.broadcast %301 : vector<1x170xf32> to vector<16x170xf32>
    %303 = arith.mulf %300, %302 : vector<16x170xf32>
    %304 = arith.addf %280, %303 : vector<16x170xf32>
    %c3_211 = arith.constant 3 : index
    %c3_212 = arith.constant 3 : index
    %c0_213 = arith.constant 0 : index
    %305 = vector.load %arg11[%c3_211, %c3_212, %c0_213] : memref<7x22x170xf32, #tpu.memory_space<vmem>>, vector<1x16x170xf32>
    %306 = vector.shape_cast %305 : vector<1x16x170xf32> to vector<16x170xf32>
    %c24 = arith.constant 24 : index
    %c0_214 = arith.constant 0 : index
    %307 = vector.load %arg8[%c24, %c0_214] : memref<49x170xf32, #tpu.memory_space<vmem>>, vector<1x170xf32>
    %308 = vector.broadcast %307 : vector<1x170xf32> to vector<16x170xf32>
    %309 = arith.mulf %306, %308 : vector<16x170xf32>
    %310 = arith.addf %286, %309 : vector<16x170xf32>
    %c4_215 = arith.constant 4 : index
    %c3_216 = arith.constant 3 : index
    %c0_217 = arith.constant 0 : index
    %311 = vector.load %arg11[%c4_215, %c3_216, %c0_217] : memref<7x22x170xf32, #tpu.memory_space<vmem>>, vector<1x16x170xf32>
    %312 = vector.shape_cast %311 : vector<1x16x170xf32> to vector<16x170xf32>
    %c25_218 = arith.constant 25 : index
    %c0_219 = arith.constant 0 : index
    %313 = vector.load %arg8[%c25_218, %c0_219] : memref<49x170xf32, #tpu.memory_space<vmem>>, vector<1x170xf32>
    %314 = vector.broadcast %313 : vector<1x170xf32> to vector<16x170xf32>
    %315 = arith.mulf %312, %314 : vector<16x170xf32>
    %316 = arith.addf %292, %315 : vector<16x170xf32>
    %c5_220 = arith.constant 5 : index
    %c3_221 = arith.constant 3 : index
    %c0_222 = arith.constant 0 : index
    %317 = vector.load %arg11[%c5_220, %c3_221, %c0_222] : memref<7x22x170xf32, #tpu.memory_space<vmem>>, vector<1x16x170xf32>
    %318 = vector.shape_cast %317 : vector<1x16x170xf32> to vector<16x170xf32>
    %c26 = arith.constant 26 : index
    %c0_223 = arith.constant 0 : index
    %319 = vector.load %arg8[%c26, %c0_223] : memref<49x170xf32, #tpu.memory_space<vmem>>, vector<1x170xf32>
    %320 = vector.broadcast %319 : vector<1x170xf32> to vector<16x170xf32>
    %321 = arith.mulf %318, %320 : vector<16x170xf32>
    %322 = arith.addf %298, %321 : vector<16x170xf32>
    %c6_224 = arith.constant 6 : index
    %c3_225 = arith.constant 3 : index
    %c0_226 = arith.constant 0 : index
    %323 = vector.load %arg11[%c6_224, %c3_225, %c0_226] : memref<7x22x170xf32, #tpu.memory_space<vmem>>, vector<1x16x170xf32>
    %324 = vector.shape_cast %323 : vector<1x16x170xf32> to vector<16x170xf32>
    %c27 = arith.constant 27 : index
    %c0_227 = arith.constant 0 : index
    %325 = vector.load %arg8[%c27, %c0_227] : memref<49x170xf32, #tpu.memory_space<vmem>>, vector<1x170xf32>
    %326 = vector.broadcast %325 : vector<1x170xf32> to vector<16x170xf32>
    %327 = arith.mulf %324, %326 : vector<16x170xf32>
    %328 = arith.addf %304, %327 : vector<16x170xf32>
    %c0_228 = arith.constant 0 : index
    %c4_229 = arith.constant 4 : index
    %c0_230 = arith.constant 0 : index
    %329 = vector.load %arg11[%c0_228, %c4_229, %c0_230] : memref<7x22x170xf32, #tpu.memory_space<vmem>>, vector<1x16x170xf32>
    %330 = vector.shape_cast %329 : vector<1x16x170xf32> to vector<16x170xf32>
    %c28 = arith.constant 28 : index
    %c0_231 = arith.constant 0 : index
    %331 = vector.load %arg8[%c28, %c0_231] : memref<49x170xf32, #tpu.memory_space<vmem>>, vector<1x170xf32>
    %332 = vector.broadcast %331 : vector<1x170xf32> to vector<16x170xf32>
    %333 = arith.mulf %330, %332 : vector<16x170xf32>
    %334 = arith.addf %310, %333 : vector<16x170xf32>
    %c1_232 = arith.constant 1 : index
    %c4_233 = arith.constant 4 : index
    %c0_234 = arith.constant 0 : index
    %335 = vector.load %arg11[%c1_232, %c4_233, %c0_234] : memref<7x22x170xf32, #tpu.memory_space<vmem>>, vector<1x16x170xf32>
    %336 = vector.shape_cast %335 : vector<1x16x170xf32> to vector<16x170xf32>
    %c29 = arith.constant 29 : index
    %c0_235 = arith.constant 0 : index
    %337 = vector.load %arg8[%c29, %c0_235] : memref<49x170xf32, #tpu.memory_space<vmem>>, vector<1x170xf32>
    %338 = vector.broadcast %337 : vector<1x170xf32> to vector<16x170xf32>
    %339 = arith.mulf %336, %338 : vector<16x170xf32>
    %340 = arith.addf %316, %339 : vector<16x170xf32>
    %c2_236 = arith.constant 2 : index
    %c4_237 = arith.constant 4 : index
    %c0_238 = arith.constant 0 : index
    %341 = vector.load %arg11[%c2_236, %c4_237, %c0_238] : memref<7x22x170xf32, #tpu.memory_space<vmem>>, vector<1x16x170xf32>
    %342 = vector.shape_cast %341 : vector<1x16x170xf32> to vector<16x170xf32>
    %c30 = arith.constant 30 : index
    %c0_239 = arith.constant 0 : index
    %343 = vector.load %arg8[%c30, %c0_239] : memref<49x170xf32, #tpu.memory_space<vmem>>, vector<1x170xf32>
    %344 = vector.broadcast %343 : vector<1x170xf32> to vector<16x170xf32>
    %345 = arith.mulf %342, %344 : vector<16x170xf32>
    %346 = arith.addf %322, %345 : vector<16x170xf32>
    %c3_240 = arith.constant 3 : index
    %c4_241 = arith.constant 4 : index
    %c0_242 = arith.constant 0 : index
    %347 = vector.load %arg11[%c3_240, %c4_241, %c0_242] : memref<7x22x170xf32, #tpu.memory_space<vmem>>, vector<1x16x170xf32>
    %348 = vector.shape_cast %347 : vector<1x16x170xf32> to vector<16x170xf32>
    %c31 = arith.constant 31 : index
    %c0_243 = arith.constant 0 : index
    %349 = vector.load %arg8[%c31, %c0_243] : memref<49x170xf32, #tpu.memory_space<vmem>>, vector<1x170xf32>
    %350 = vector.broadcast %349 : vector<1x170xf32> to vector<16x170xf32>
    %351 = arith.mulf %348, %350 : vector<16x170xf32>
    %352 = arith.addf %328, %351 : vector<16x170xf32>
    %c4_244 = arith.constant 4 : index
    %c4_245 = arith.constant 4 : index
    %c0_246 = arith.constant 0 : index
    %353 = vector.load %arg11[%c4_244, %c4_245, %c0_246] : memref<7x22x170xf32, #tpu.memory_space<vmem>>, vector<1x16x170xf32>
    %354 = vector.shape_cast %353 : vector<1x16x170xf32> to vector<16x170xf32>
    %c32 = arith.constant 32 : index
    %c0_247 = arith.constant 0 : index
    %355 = vector.load %arg8[%c32, %c0_247] : memref<49x170xf32, #tpu.memory_space<vmem>>, vector<1x170xf32>
    %356 = vector.broadcast %355 : vector<1x170xf32> to vector<16x170xf32>
    %357 = arith.mulf %354, %356 : vector<16x170xf32>
    %358 = arith.addf %334, %357 : vector<16x170xf32>
    %c5_248 = arith.constant 5 : index
    %c4_249 = arith.constant 4 : index
    %c0_250 = arith.constant 0 : index
    %359 = vector.load %arg11[%c5_248, %c4_249, %c0_250] : memref<7x22x170xf32, #tpu.memory_space<vmem>>, vector<1x16x170xf32>
    %360 = vector.shape_cast %359 : vector<1x16x170xf32> to vector<16x170xf32>
    %c33 = arith.constant 33 : index
    %c0_251 = arith.constant 0 : index
    %361 = vector.load %arg8[%c33, %c0_251] : memref<49x170xf32, #tpu.memory_space<vmem>>, vector<1x170xf32>
    %362 = vector.broadcast %361 : vector<1x170xf32> to vector<16x170xf32>
    %363 = arith.mulf %360, %362 : vector<16x170xf32>
    %364 = arith.addf %340, %363 : vector<16x170xf32>
    %c6_252 = arith.constant 6 : index
    %c4_253 = arith.constant 4 : index
    %c0_254 = arith.constant 0 : index
    %365 = vector.load %arg11[%c6_252, %c4_253, %c0_254] : memref<7x22x170xf32, #tpu.memory_space<vmem>>, vector<1x16x170xf32>
    %366 = vector.shape_cast %365 : vector<1x16x170xf32> to vector<16x170xf32>
    %c34 = arith.constant 34 : index
    %c0_255 = arith.constant 0 : index
    %367 = vector.load %arg8[%c34, %c0_255] : memref<49x170xf32, #tpu.memory_space<vmem>>, vector<1x170xf32>
    %368 = vector.broadcast %367 : vector<1x170xf32> to vector<16x170xf32>
    %369 = arith.mulf %366, %368 : vector<16x170xf32>
    %370 = arith.addf %346, %369 : vector<16x170xf32>
    %c0_256 = arith.constant 0 : index
    %c5_257 = arith.constant 5 : index
    %c0_258 = arith.constant 0 : index
    %371 = vector.load %arg11[%c0_256, %c5_257, %c0_258] : memref<7x22x170xf32, #tpu.memory_space<vmem>>, vector<1x16x170xf32>
    %372 = vector.shape_cast %371 : vector<1x16x170xf32> to vector<16x170xf32>
    %c35 = arith.constant 35 : index
    %c0_259 = arith.constant 0 : index
    %373 = vector.load %arg8[%c35, %c0_259] : memref<49x170xf32, #tpu.memory_space<vmem>>, vector<1x170xf32>
    %374 = vector.broadcast %373 : vector<1x170xf32> to vector<16x170xf32>
    %375 = arith.mulf %372, %374 : vector<16x170xf32>
    %376 = arith.addf %352, %375 : vector<16x170xf32>
    %c1_260 = arith.constant 1 : index
    %c5_261 = arith.constant 5 : index
    %c0_262 = arith.constant 0 : index
    %377 = vector.load %arg11[%c1_260, %c5_261, %c0_262] : memref<7x22x170xf32, #tpu.memory_space<vmem>>, vector<1x16x170xf32>
    %378 = vector.shape_cast %377 : vector<1x16x170xf32> to vector<16x170xf32>
    %c36 = arith.constant 36 : index
    %c0_263 = arith.constant 0 : index
    %379 = vector.load %arg8[%c36, %c0_263] : memref<49x170xf32, #tpu.memory_space<vmem>>, vector<1x170xf32>
    %380 = vector.broadcast %379 : vector<1x170xf32> to vector<16x170xf32>
    %381 = arith.mulf %378, %380 : vector<16x170xf32>
    %382 = arith.addf %358, %381 : vector<16x170xf32>
    %c2_264 = arith.constant 2 : index
    %c5_265 = arith.constant 5 : index
    %c0_266 = arith.constant 0 : index
    %383 = vector.load %arg11[%c2_264, %c5_265, %c0_266] : memref<7x22x170xf32, #tpu.memory_space<vmem>>, vector<1x16x170xf32>
    %384 = vector.shape_cast %383 : vector<1x16x170xf32> to vector<16x170xf32>
    %c37 = arith.constant 37 : index
    %c0_267 = arith.constant 0 : index
    %385 = vector.load %arg8[%c37, %c0_267] : memref<49x170xf32, #tpu.memory_space<vmem>>, vector<1x170xf32>
    %386 = vector.broadcast %385 : vector<1x170xf32> to vector<16x170xf32>
    %387 = arith.mulf %384, %386 : vector<16x170xf32>
    %388 = arith.addf %364, %387 : vector<16x170xf32>
    %c3_268 = arith.constant 3 : index
    %c5_269 = arith.constant 5 : index
    %c0_270 = arith.constant 0 : index
    %389 = vector.load %arg11[%c3_268, %c5_269, %c0_270] : memref<7x22x170xf32, #tpu.memory_space<vmem>>, vector<1x16x170xf32>
    %390 = vector.shape_cast %389 : vector<1x16x170xf32> to vector<16x170xf32>
    %c38 = arith.constant 38 : index
    %c0_271 = arith.constant 0 : index
    %391 = vector.load %arg8[%c38, %c0_271] : memref<49x170xf32, #tpu.memory_space<vmem>>, vector<1x170xf32>
    %392 = vector.broadcast %391 : vector<1x170xf32> to vector<16x170xf32>
    %393 = arith.mulf %390, %392 : vector<16x170xf32>
    %394 = arith.addf %370, %393 : vector<16x170xf32>
    %c4_272 = arith.constant 4 : index
    %c5_273 = arith.constant 5 : index
    %c0_274 = arith.constant 0 : index
    %395 = vector.load %arg11[%c4_272, %c5_273, %c0_274] : memref<7x22x170xf32, #tpu.memory_space<vmem>>, vector<1x16x170xf32>
    %396 = vector.shape_cast %395 : vector<1x16x170xf32> to vector<16x170xf32>
    %c39 = arith.constant 39 : index
    %c0_275 = arith.constant 0 : index
    %397 = vector.load %arg8[%c39, %c0_275] : memref<49x170xf32, #tpu.memory_space<vmem>>, vector<1x170xf32>
    %398 = vector.broadcast %397 : vector<1x170xf32> to vector<16x170xf32>
    %399 = arith.mulf %396, %398 : vector<16x170xf32>
    %400 = arith.addf %376, %399 : vector<16x170xf32>
    %c5_276 = arith.constant 5 : index
    %c5_277 = arith.constant 5 : index
    %c0_278 = arith.constant 0 : index
    %401 = vector.load %arg11[%c5_276, %c5_277, %c0_278] : memref<7x22x170xf32, #tpu.memory_space<vmem>>, vector<1x16x170xf32>
    %402 = vector.shape_cast %401 : vector<1x16x170xf32> to vector<16x170xf32>
    %c40 = arith.constant 40 : index
    %c0_279 = arith.constant 0 : index
    %403 = vector.load %arg8[%c40, %c0_279] : memref<49x170xf32, #tpu.memory_space<vmem>>, vector<1x170xf32>
    %404 = vector.broadcast %403 : vector<1x170xf32> to vector<16x170xf32>
    %405 = arith.mulf %402, %404 : vector<16x170xf32>
    %406 = arith.addf %382, %405 : vector<16x170xf32>
    %c6_280 = arith.constant 6 : index
    %c5_281 = arith.constant 5 : index
    %c0_282 = arith.constant 0 : index
    %407 = vector.load %arg11[%c6_280, %c5_281, %c0_282] : memref<7x22x170xf32, #tpu.memory_space<vmem>>, vector<1x16x170xf32>
    %408 = vector.shape_cast %407 : vector<1x16x170xf32> to vector<16x170xf32>
    %c41 = arith.constant 41 : index
    %c0_283 = arith.constant 0 : index
    %409 = vector.load %arg8[%c41, %c0_283] : memref<49x170xf32, #tpu.memory_space<vmem>>, vector<1x170xf32>
    %410 = vector.broadcast %409 : vector<1x170xf32> to vector<16x170xf32>
    %411 = arith.mulf %408, %410 : vector<16x170xf32>
    %412 = arith.addf %388, %411 : vector<16x170xf32>
    %c0_284 = arith.constant 0 : index
    %c6_285 = arith.constant 6 : index
    %c0_286 = arith.constant 0 : index
    %413 = vector.load %arg11[%c0_284, %c6_285, %c0_286] : memref<7x22x170xf32, #tpu.memory_space<vmem>>, vector<1x16x170xf32>
    %414 = vector.shape_cast %413 : vector<1x16x170xf32> to vector<16x170xf32>
    %c42 = arith.constant 42 : index
    %c0_287 = arith.constant 0 : index
    %415 = vector.load %arg8[%c42, %c0_287] : memref<49x170xf32, #tpu.memory_space<vmem>>, vector<1x170xf32>
    %416 = vector.broadcast %415 : vector<1x170xf32> to vector<16x170xf32>
    %417 = arith.mulf %414, %416 : vector<16x170xf32>
    %418 = arith.addf %394, %417 : vector<16x170xf32>
    %c1_288 = arith.constant 1 : index
    %c6_289 = arith.constant 6 : index
    %c0_290 = arith.constant 0 : index
    %419 = vector.load %arg11[%c1_288, %c6_289, %c0_290] : memref<7x22x170xf32, #tpu.memory_space<vmem>>, vector<1x16x170xf32>
    %420 = vector.shape_cast %419 : vector<1x16x170xf32> to vector<16x170xf32>
    %c43 = arith.constant 43 : index
    %c0_291 = arith.constant 0 : index
    %421 = vector.load %arg8[%c43, %c0_291] : memref<49x170xf32, #tpu.memory_space<vmem>>, vector<1x170xf32>
    %422 = vector.broadcast %421 : vector<1x170xf32> to vector<16x170xf32>
    %423 = arith.mulf %420, %422 : vector<16x170xf32>
    %424 = arith.addf %400, %423 : vector<16x170xf32>
    %c2_292 = arith.constant 2 : index
    %c6_293 = arith.constant 6 : index
    %c0_294 = arith.constant 0 : index
    %425 = vector.load %arg11[%c2_292, %c6_293, %c0_294] : memref<7x22x170xf32, #tpu.memory_space<vmem>>, vector<1x16x170xf32>
    %426 = vector.shape_cast %425 : vector<1x16x170xf32> to vector<16x170xf32>
    %c44 = arith.constant 44 : index
    %c0_295 = arith.constant 0 : index
    %427 = vector.load %arg8[%c44, %c0_295] : memref<49x170xf32, #tpu.memory_space<vmem>>, vector<1x170xf32>
    %428 = vector.broadcast %427 : vector<1x170xf32> to vector<16x170xf32>
    %429 = arith.mulf %426, %428 : vector<16x170xf32>
    %430 = arith.addf %406, %429 : vector<16x170xf32>
    %c3_296 = arith.constant 3 : index
    %c6_297 = arith.constant 6 : index
    %c0_298 = arith.constant 0 : index
    %431 = vector.load %arg11[%c3_296, %c6_297, %c0_298] : memref<7x22x170xf32, #tpu.memory_space<vmem>>, vector<1x16x170xf32>
    %432 = vector.shape_cast %431 : vector<1x16x170xf32> to vector<16x170xf32>
    %c45 = arith.constant 45 : index
    %c0_299 = arith.constant 0 : index
    %433 = vector.load %arg8[%c45, %c0_299] : memref<49x170xf32, #tpu.memory_space<vmem>>, vector<1x170xf32>
    %434 = vector.broadcast %433 : vector<1x170xf32> to vector<16x170xf32>
    %435 = arith.mulf %432, %434 : vector<16x170xf32>
    %436 = arith.addf %412, %435 : vector<16x170xf32>
    %c4_300 = arith.constant 4 : index
    %c6_301 = arith.constant 6 : index
    %c0_302 = arith.constant 0 : index
    %437 = vector.load %arg11[%c4_300, %c6_301, %c0_302] : memref<7x22x170xf32, #tpu.memory_space<vmem>>, vector<1x16x170xf32>
    %438 = vector.shape_cast %437 : vector<1x16x170xf32> to vector<16x170xf32>
    %c46 = arith.constant 46 : index
    %c0_303 = arith.constant 0 : index
    %439 = vector.load %arg8[%c46, %c0_303] : memref<49x170xf32, #tpu.memory_space<vmem>>, vector<1x170xf32>
    %440 = vector.broadcast %439 : vector<1x170xf32> to vector<16x170xf32>
    %441 = arith.mulf %438, %440 : vector<16x170xf32>
    %442 = arith.addf %418, %441 : vector<16x170xf32>
    %c5_304 = arith.constant 5 : index
    %c6_305 = arith.constant 6 : index
    %c0_306 = arith.constant 0 : index
    %443 = vector.load %arg11[%c5_304, %c6_305, %c0_306] : memref<7x22x170xf32, #tpu.memory_space<vmem>>, vector<1x16x170xf32>
    %444 = vector.shape_cast %443 : vector<1x16x170xf32> to vector<16x170xf32>
    %c47_307 = arith.constant 47 : index
    %c0_308 = arith.constant 0 : index
    %445 = vector.load %arg8[%c47_307, %c0_308] : memref<49x170xf32, #tpu.memory_space<vmem>>, vector<1x170xf32>
    %446 = vector.broadcast %445 : vector<1x170xf32> to vector<16x170xf32>
    %447 = arith.mulf %444, %446 : vector<16x170xf32>
    %448 = arith.addf %424, %447 : vector<16x170xf32>
    %c6_309 = arith.constant 6 : index
    %c6_310 = arith.constant 6 : index
    %c0_311 = arith.constant 0 : index
    %449 = vector.load %arg11[%c6_309, %c6_310, %c0_311] : memref<7x22x170xf32, #tpu.memory_space<vmem>>, vector<1x16x170xf32>
    %450 = vector.shape_cast %449 : vector<1x16x170xf32> to vector<16x170xf32>
    %c48 = arith.constant 48 : index
    %c0_312 = arith.constant 0 : index
    %451 = vector.load %arg8[%c48, %c0_312] : memref<49x170xf32, #tpu.memory_space<vmem>>, vector<1x170xf32>
    %452 = vector.broadcast %451 : vector<1x170xf32> to vector<16x170xf32>
    %453 = arith.mulf %450, %452 : vector<16x170xf32>
    %454 = arith.addf %430, %453 : vector<16x170xf32>
    %455 = arith.addf %454, %436 : vector<16x170xf32>
    %456 = arith.addf %442, %448 : vector<16x170xf32>
    %457 = arith.addf %455, %456 : vector<16x170xf32>
    %458 = vector.extract_strided_slice %457 {offsets = [0, 0], sizes = [16, 16], strides = [1, 1]} : vector<16x170xf32> to vector<16x16xf32>
    %459 = vector.extract_strided_slice %457 {offsets = [0, 22], sizes = [16, 16], strides = [1, 1]} : vector<16x170xf32> to vector<16x16xf32>
    %460 = arith.addf %458, %459 : vector<16x16xf32>
    %461 = vector.extract_strided_slice %457 {offsets = [0, 44], sizes = [16, 16], strides = [1, 1]} : vector<16x170xf32> to vector<16x16xf32>
    %462 = vector.extract_strided_slice %457 {offsets = [0, 66], sizes = [16, 16], strides = [1, 1]} : vector<16x170xf32> to vector<16x16xf32>
    %463 = arith.addf %461, %462 : vector<16x16xf32>
    %464 = vector.extract_strided_slice %457 {offsets = [0, 88], sizes = [16, 16], strides = [1, 1]} : vector<16x170xf32> to vector<16x16xf32>
    %465 = vector.extract_strided_slice %457 {offsets = [0, 110], sizes = [16, 16], strides = [1, 1]} : vector<16x170xf32> to vector<16x16xf32>
    %466 = arith.addf %464, %465 : vector<16x16xf32>
    %467 = vector.extract_strided_slice %457 {offsets = [0, 132], sizes = [16, 16], strides = [1, 1]} : vector<16x170xf32> to vector<16x16xf32>
    %468 = vector.extract_strided_slice %457 {offsets = [0, 154], sizes = [16, 16], strides = [1, 1]} : vector<16x170xf32> to vector<16x16xf32>
    %469 = arith.addf %467, %468 : vector<16x16xf32>
    %470 = tpu.concatenate %460, %463, %466, %469 in 0 : vector<16x16xf32>, vector<16x16xf32>, vector<16x16xf32>, vector<16x16xf32> -> vector<64x16xf32>
    %471 = arith.negf %470 : vector<64x16xf32>
    %472 = math.exp %471 : vector<64x16xf32>
    %cst_313 = arith.constant 1.000000e+00 : f32
    %473 = vector.broadcast %cst_313 : f32 to vector<64x16xf32>
    %474 = arith.addf %473, %472 : vector<64x16xf32>
    %475 = arith.divf %473, %474 : vector<64x16xf32>
    %c0_314 = arith.constant 0 : index
    %c0_315 = arith.constant 0 : index
    %476 = vector.load %arg7[%c0_314, %c0_315] : memref<16x512xf32, #tpu.memory_space<vmem>>, vector<16x512xf32>
    %cst_316 = arith.constant dense<0.000000e+00> : vector<64x512xf32>
    %477 = tpu.matmul %475, %476, %cst_316 {dimension_numbers = #tpu.dot_dimension_numbers<[1], [0], [0], [1], [0, 0, 1, 1], [], []>} : vector<64x16xf32>, vector<16x512xf32>, vector<64x512xf32> -> vector<64x512xf32>
    %c0_317 = arith.constant 0 : index
    %c0_318 = arith.constant 0 : index
    %c0_319 = arith.constant 0 : index
    %478 = vector.load %arg9[%c0_317, %c0_318, %c0_319] : memref<4x16x512xf32, #tpu.memory_space<vmem>>, vector<1x16x512xf32>
    %479 = vector.shape_cast %478 : vector<1x16x512xf32> to vector<16x512xf32>
    %480 = vector.extract_strided_slice %477 {offsets = [0, 0], sizes = [16, 512], strides = [1, 1]} : vector<64x512xf32> to vector<16x512xf32>
    %481 = arith.mulf %479, %480 : vector<16x512xf32>
    %c0_320 = arith.constant 0 : index
    %c0_321 = arith.constant 0 : index
    %c0_322 = arith.constant 0 : index
    %482 = vector.load %arg9[%c0_320, %c0_321, %c0_322] : memref<4x16x512xf32, #tpu.memory_space<vmem>>, vector<1x16x512xf32>
    %483 = vector.shape_cast %482 : vector<1x16x512xf32> to vector<16x512xf32>
    %484 = vector.shape_cast %481 : vector<16x512xf32> to vector<1x16x512xf32>
    tpu.vector_store %arg9[%c0_320, %c0_321, %c0_322], %484 {strides = array<i32>} : memref<4x16x512xf32, #tpu.memory_space<vmem>>, vector<1x16x512xf32>,
    %c1_323 = arith.constant 1 : index
    %c0_324 = arith.constant 0 : index
    %c0_325 = arith.constant 0 : index
    %485 = vector.load %arg9[%c1_323, %c0_324, %c0_325] : memref<4x16x512xf32, #tpu.memory_space<vmem>>, vector<1x16x512xf32>
    %486 = vector.shape_cast %485 : vector<1x16x512xf32> to vector<16x512xf32>
    %487 = vector.extract_strided_slice %477 {offsets = [16, 0], sizes = [16, 512], strides = [1, 1]} : vector<64x512xf32> to vector<16x512xf32>
    %488 = arith.mulf %486, %487 : vector<16x512xf32>
    %c1_326 = arith.constant 1 : index
    %c0_327 = arith.constant 0 : index
    %c0_328 = arith.constant 0 : index
    %489 = vector.load %arg9[%c1_326, %c0_327, %c0_328] : memref<4x16x512xf32, #tpu.memory_space<vmem>>, vector<1x16x512xf32>
    %490 = vector.shape_cast %489 : vector<1x16x512xf32> to vector<16x512xf32>
    %491 = vector.shape_cast %488 : vector<16x512xf32> to vector<1x16x512xf32>
    tpu.vector_store %arg9[%c1_326, %c0_327, %c0_328], %491 {strides = array<i32>} : memref<4x16x512xf32, #tpu.memory_space<vmem>>, vector<1x16x512xf32>,
    %c2_329 = arith.constant 2 : index
    %c0_330 = arith.constant 0 : index
    %c0_331 = arith.constant 0 : index
    %492 = vector.load %arg9[%c2_329, %c0_330, %c0_331] : memref<4x16x512xf32, #tpu.memory_space<vmem>>, vector<1x16x512xf32>
    %493 = vector.shape_cast %492 : vector<1x16x512xf32> to vector<16x512xf32>
    %494 = vector.extract_strided_slice %477 {offsets = [32, 0], sizes = [16, 512], strides = [1, 1]} : vector<64x512xf32> to vector<16x512xf32>
    %495 = arith.mulf %493, %494 : vector<16x512xf32>
    %c2_332 = arith.constant 2 : index
    %c0_333 = arith.constant 0 : index
    %c0_334 = arith.constant 0 : index
    %496 = vector.load %arg9[%c2_332, %c0_333, %c0_334] : memref<4x16x512xf32, #tpu.memory_space<vmem>>, vector<1x16x512xf32>
    %497 = vector.shape_cast %496 : vector<1x16x512xf32> to vector<16x512xf32>
    %498 = vector.shape_cast %495 : vector<16x512xf32> to vector<1x16x512xf32>
    tpu.vector_store %arg9[%c2_332, %c0_333, %c0_334], %498 {strides = array<i32>} : memref<4x16x512xf32, #tpu.memory_space<vmem>>, vector<1x16x512xf32>,
    %c3_335 = arith.constant 3 : index
    %c0_336 = arith.constant 0 : index
    %c0_337 = arith.constant 0 : index
    %499 = vector.load %arg9[%c3_335, %c0_336, %c0_337] : memref<4x16x512xf32, #tpu.memory_space<vmem>>, vector<1x16x512xf32>
    %500 = vector.shape_cast %499 : vector<1x16x512xf32> to vector<16x512xf32>
    %501 = vector.extract_strided_slice %477 {offsets = [48, 0], sizes = [16, 512], strides = [1, 1]} : vector<64x512xf32> to vector<16x512xf32>
    %502 = arith.mulf %500, %501 : vector<16x512xf32>
    %c3_338 = arith.constant 3 : index
    %c0_339 = arith.constant 0 : index
    %c0_340 = arith.constant 0 : index
    %503 = vector.load %arg9[%c3_338, %c0_339, %c0_340] : memref<4x16x512xf32, #tpu.memory_space<vmem>>, vector<1x16x512xf32>
    %504 = vector.shape_cast %503 : vector<1x16x512xf32> to vector<16x512xf32>
    %505 = vector.shape_cast %502 : vector<16x512xf32> to vector<1x16x512xf32>
    tpu.vector_store %arg9[%c3_338, %c0_339, %c0_340], %505 {strides = array<i32>} : memref<4x16x512xf32, #tpu.memory_space<vmem>>, vector<1x16x512xf32>,
    return
  }
  func.func @transform_0(%arg0: i32) -> (i32, i32, i32) {
    %c0_i32 = arith.constant 0 : i32
    %c0_i32_0 = arith.constant 0 : i32
    %c0_i32_1 = arith.constant 0 : i32
    return %arg0, %c0_i32, %c0_i32_0 : i32, i32, i32
  }
  func.func @transform_1(%arg0: i32) -> (i32, i32) {
    %c0_i32 = arith.constant 0 : i32
    %c0_i32_0 = arith.constant 0 : i32
    %c0_i32_1 = arith.constant 0 : i32
    return %c0_i32, %c0_i32_0 : i32, i32
  }
  func.func @transform_2(%arg0: i32) -> (i32, i32) {
    %c0_i32 = arith.constant 0 : i32
    %c0_i32_0 = arith.constant 0 : i32
    %c0_i32_1 = arith.constant 0 : i32
    return %c0_i32, %c0_i32_0 : i32, i32
  }
  func.func @transform_3(%arg0: i32) -> (i32, i32) {
    %c0_i32 = arith.constant 0 : i32
    %c0_i32_0 = arith.constant 0 : i32
    %c0_i32_1 = arith.constant 0 : i32
    return %c0_i32, %c0_i32_0 : i32, i32
  }
  func.func @transform_4(%arg0: i32) -> (i32, i32) {
    %c0_i32 = arith.constant 0 : i32
    %c0_i32_0 = arith.constant 0 : i32
    %c0_i32_1 = arith.constant 0 : i32
    return %c0_i32, %c0_i32_0 : i32, i32
  }
  func.func @transform_5(%arg0: i32) -> (i32, i32) {
    %c0_i32 = arith.constant 0 : i32
    %c0_i32_0 = arith.constant 0 : i32
    %c0_i32_1 = arith.constant 0 : i32
    return %c0_i32, %c0_i32_0 : i32, i32
  }
  func.func @transform_6(%arg0: i32) -> (i32, i32) {
    %c0_i32 = arith.constant 0 : i32
    %c0_i32_0 = arith.constant 0 : i32
    %c0_i32_1 = arith.constant 0 : i32
    return %c0_i32, %c0_i32_0 : i32, i32
  }
  func.func @transform_7(%arg0: i32) -> (i32, i32) {
    %c0_i32 = arith.constant 0 : i32
    %c0_i32_0 = arith.constant 0 : i32
    %c0_i32_1 = arith.constant 0 : i32
    return %c0_i32, %c0_i32_0 : i32, i32
  }
  func.func @transform_8(%arg0: i32) -> (i32, i32, i32) {
    %c0_i32 = arith.constant 0 : i32
    %c0_i32_0 = arith.constant 0 : i32
    %c0_i32_1 = arith.constant 0 : i32
    return %arg0, %c0_i32, %c0_i32_0 : i32, i32, i32
  }
}

</mosaic_0001>

<llo_original>
// kernel: tpu_custom_call.1
$region0: #{tpu_custom_call.1}
  #allocation0 [shape = 'u32[]', space=smem, size = 0x4, offset = 0x4, fixed_abs, tag = 'smem constant byte address 0x4 - core index']
  #allocation1 [shape = 'u32[144,128]{1,0:T(1,128)}', space=vmem, size = 0x12000, scoped, tag = 'internal scratch']
  #allocation2 [shape = 'f32[22,176]{1,0:T(8,128)}', space=vmem, size = 0x6000, scoped, tag = 'scratch operand']
  #allocation3 [shape = 'f32[7,22,170]{2,1,0:T(8,128)}', space=vmem, size = 0x2a000, scoped, tag = 'scratch operand']
  %s0 = inlined_call_operand.vmem [shape: f32[16,16,512], index: 0, kind: input, shape index: {}]
  %s1 = inlined_call_operand.vmem [shape: f32[512,2], index: 1, kind: input, shape index: {}]
  %s2 = inlined_call_operand.vmem [shape: f32[512,2], index: 2, kind: input, shape index: {}]
  %s3 = inlined_call_operand.vmem [shape: f32[2,32], index: 3, kind: input, shape index: {}]
  %s4 = inlined_call_operand.vmem [shape: f32[32,512], index: 4, kind: input, shape index: {}]
  %s5 = inlined_call_operand.vmem [shape: f32[512,16], index: 5, kind: input, shape index: {}]
  %s6 = inlined_call_operand.vmem [shape: f32[16,512], index: 6, kind: input, shape index: {}]
  %s7 = inlined_call_operand.vmem [shape: f32[49,170], index: 7, kind: input, shape index: {}]
  %s8 = inlined_call_operand.hbm [shape: f32[16,16,512], index: 8, kind: output, shape index: {}]
  %s9 = sld [smem:[#allocation0]]
  $region65: #{tpu_custom_call.1} parent=0
    _
  %s11 = ssub.s32 1, %s9
  %s12 = scalar_select 0, %s11, %s9
  $region1: #{tpu_custom_call.1} parent=0
    #allocation4 [shape = 'u8[262144]{0}', space=vmem, size = 0x40000, scoped, tag = 'output window, operand 0']
    #allocation5 [shape = 's32[2]{0}', space=sflag, size = 0x8, scoped, tag = 'scoped memory for tpu_custom_call.1']
    %13 = vsyncpa [#allocation5], 0
    %s14 = scalar_lea.sflag [#allocation5], 1
    %15 = vsyncpa %s14, 0
    loop: start=0, step=1, limit=6
    $region2: #{tpu_custom_call.1} parent=1 // loop_pre_header
      _
    $region3: #{tpu_custom_call.1} parent=1 // loop_header
      %s17 = sphi 0, %s21
      %p18 = scmp.ge.s32.totalorder %s17, 6
      %s27 = sphi 0, %s29
      %s30 = sphi 0, %s27
      %s31 = sphi 0, %s30
      %s47 = sphi 0, %s31
      %s51 = sphi 0, %s51
      %s53 = sphi 0, %s51
      %s54 = sphi 0, %s53
      %s68 = sphi 0, %s54
      %s72 = sphi 0, %s72
      %s74 = sphi 0, %s72
      %s75 = sphi 0, %s74
      %s89 = sphi 0, %s75
      %s93 = sphi 0, %s93
      %s95 = sphi 0, %s93
      %s96 = sphi 0, %s95
      %s110 = sphi 0, %s96
      %s114 = sphi 0, %s114
      %s116 = sphi 0, %s114
      %s117 = sphi 0, %s116
      %s131 = sphi 0, %s117
      %s135 = sphi 0, %s135
      %s137 = sphi 0, %s135
      %s138 = sphi 0, %s137
      %s152 = sphi 0, %s138
      %s156 = sphi 0, %s156
      %s158 = sphi 0, %s156
      %s159 = sphi 0, %s158
      %s173 = sphi 0, %s159
      %s177 = sphi 0, %s177
      %s179 = sphi 0, %s177
      %s180 = sphi 0, %s179
      %s194 = sphi 0, %s180
      %s200 = sphi 0, %s202
      %s203 = sphi 0, %s200
      %s204 = sphi 0, %s203
      %s220 = sphi 0, %s204
    $region4: #{tpu_custom_call.1} parent=1 // loop_header_branch
      %20 = sbr.rel (%p18) target = $region8
    $region5: #{tpu_custom_call.1} parent=1 // loop_body
      %s22 = ssub.s32 %s17, 1
      %s23 = ssub.s32 %s17, 2
      %s24 = sadd.s32 %s17, 1
      %s25 = ssub.s32 %s17, %s24
      %p26 = scmp.eq.s32.totalorder %s25, 0
      %s28 = sadd.s32 %s27, 1
      %s29 = scalar_select %p26, %s27, %s28
      %p32 = pneg %p26
      %p33 = scmp.eq.s32.totalorder %s17, 3
      %p34 = por %p32, %p33
      %p35 = scmp.ne.s32.totalorder %s27, %s30
      %p36 = scmp.eq.s32.totalorder %s17, 0
      %p37 = por %p35, %p36
      %p38 = scmp.ne.s32.totalorder %s27, %s30
      %p39 = scmp.eq.s32.totalorder %s22, 3
      %p40 = por %p38, %p39
      %p41 = scmp.ne.s32.totalorder %s30, %s31
      %p42 = scmp.eq.s32.totalorder %s22, 0
      %p43 = por %p41, %p42
      %p44 = scmp.ne.s32.totalorder %s30, %s31
      %p45 = scmp.eq.s32.totalorder %s23, 3
      %p46 = por %p44, %p45
      %p48 = scmp.ne.s32.totalorder %s31, %s47
      %p49 = scmp.eq.s32.totalorder %s23, 0
      %p50 = por %p48, %p49
      %s52 = sadd.s32 %s51, 1
      %p55 = scmp.eq.s32.totalorder %s17, 3
      %p56 = scmp.ne.s32.totalorder %s51, %s53
      %p57 = scmp.eq.s32.totalorder %s17, 0
      %p58 = por %p56, %p57
      %p59 = scmp.ne.s32.totalorder %s51, %s53
      %p60 = scmp.eq.s32.totalorder %s22, 3
      %p61 = por %p59, %p60
      %p62 = scmp.ne.s32.totalorder %s53, %s54
      %p63 = scmp.eq.s32.totalorder %s22, 0
      %p64 = por %p62, %p63
      %p65 = scmp.ne.s32.totalorder %s53, %s54
      %p66 = scmp.eq.s32.totalorder %s23, 3
      %p67 = por %p65, %p66
      %p69 = scmp.ne.s32.totalorder %s54, %s68
      %p70 = scmp.eq.s32.totalorder %s23, 0
      %p71 = por %p69, %p70
      %s73 = sadd.s32 %s72, 1
      %p76 = scmp.eq.s32.totalorder %s17, 3
      %p77 = scmp.ne.s32.totalorder %s72, %s74
      %p78 = scmp.eq.s32.totalorder %s17, 0
      %p79 = por %p77, %p78
      %p80 = scmp.ne.s32.totalorder %s72, %s74
      %p81 = scmp.eq.s32.totalorder %s22, 3
      %p82 = por %p80, %p81
      %p83 = scmp.ne.s32.totalorder %s74, %s75
      %p84 = scmp.eq.s32.totalorder %s22, 0
      %p85 = por %p83, %p84
      %p86 = scmp.ne.s32.totalorder %s74, %s75
      %p87 = scmp.eq.s32.totalorder %s23, 3
      %p88 = por %p86, %p87
      %p90 = scmp.ne.s32.totalorder %s75, %s89
      %p91 = scmp.eq.s32.totalorder %s23, 0
      %p92 = por %p90, %p91
      %s94 = sadd.s32 %s93, 1
      %p97 = scmp.eq.s32.totalorder %s17, 3
      %p98 = scmp.ne.s32.totalorder %s93, %s95
      %p99 = scmp.eq.s32.totalorder %s17, 0
      %p100 = por %p98, %p99
      %p101 = scmp.ne.s32.totalorder %s93, %s95
      %p102 = scmp.eq.s32.totalorder %s22, 3
      %p103 = por %p101, %p102
      %p104 = scmp.ne.s32.totalorder %s95, %s96
      %p105 = scmp.eq.s32.totalorder %s22, 0
      %p106 = por %p104, %p105
      %p107 = scmp.ne.s32.totalorder %s95, %s96
      %p108 = scmp.eq.s32.totalorder %s23, 3
      %p109 = por %p107, %p108
      %p111 = scmp.ne.s32.totalorder %s96, %s110
      %p112 = scmp.eq.s32.totalorder %s23, 0
      %p113 = por %p111, %p112
      %s115 = sadd.s32 %s114, 1
      %p118 = scmp.eq.s32.totalorder %s17, 3
      %p119 = scmp.ne.s32.totalorder %s114, %s116
      %p120 = scmp.eq.s32.totalorder %s17, 0
      %p121 = por %p119, %p120
      %p122 = scmp.ne.s32.totalorder %s114, %s116
      %p123 = scmp.eq.s32.totalorder %s22, 3
      %p124 = por %p122, %p123
      %p125 = scmp.ne.s32.totalorder %s116, %s117
      %p126 = scmp.eq.s32.totalorder %s22, 0
      %p127 = por %p125, %p126
      %p128 = scmp.ne.s32.totalorder %s116, %s117
      %p129 = scmp.eq.s32.totalorder %s23, 3
      %p130 = por %p128, %p129
      %p132 = scmp.ne.s32.totalorder %s117, %s131
      %p133 = scmp.eq.s32.totalorder %s23, 0
      %p134 = por %p132, %p133
      %s136 = sadd.s32 %s135, 1
      %p139 = scmp.eq.s32.totalorder %s17, 3
      %p140 = scmp.ne.s32.totalorder %s135, %s137
      %p141 = scmp.eq.s32.totalorder %s17, 0
      %p142 = por %p140, %p141
      %p143 = scmp.ne.s32.totalorder %s135, %s137
      %p144 = scmp.eq.s32.totalorder %s22, 3
      %p145 = por %p143, %p144
      %p146 = scmp.ne.s32.totalorder %s137, %s138
      %p147 = scmp.eq.s32.totalorder %s22, 0
      %p148 = por %p146, %p147
      %p149 = scmp.ne.s32.totalorder %s137, %s138
      %p150 = scmp.eq.s32.totalorder %s23, 3
      %p151 = por %p149, %p150
      %p153 = scmp.ne.s32.totalorder %s138, %s152
      %p154 = scmp.eq.s32.totalorder %s23, 0
      %p155 = por %p153, %p154
      %s157 = sadd.s32 %s156, 1
      %p160 = scmp.eq.s32.totalorder %s17, 3
      %p161 = scmp.ne.s32.totalorder %s156, %s158
      %p162 = scmp.eq.s32.totalorder %s17, 0
      %p163 = por %p161, %p162
      %p164 = scmp.ne.s32.totalorder %s156, %s158
      %p165 = scmp.eq.s32.totalorder %s22, 3
      %p166 = por %p164, %p165
      %p167 = scmp.ne.s32.totalorder %s158, %s159
      %p168 = scmp.eq.s32.totalorder %s22, 0
      %p169 = por %p167, %p168
      %p170 = scmp.ne.s32.totalorder %s158, %s159
      %p171 = scmp.eq.s32.totalorder %s23, 3
      %p172 = por %p170, %p171
      %p174 = scmp.ne.s32.totalorder %s159, %s173
      %p175 = scmp.eq.s32.totalorder %s23, 0
      %p176 = por %p174, %p175
      %s178 = sadd.s32 %s177, 1
      %p181 = scmp.eq.s32.totalorder %s17, 3
      %p182 = scmp.ne.s32.totalorder %s177, %s179
      %p183 = scmp.eq.s32.totalorder %s17, 0
      %p184 = por %p182, %p183
      %p185 = scmp.ne.s32.totalorder %s177, %s179
      %p186 = scmp.eq.s32.totalorder %s22, 3
      %p187 = por %p185, %p186
      %p188 = scmp.ne.s32.totalorder %s179, %s180
      %p189 = scmp.eq.s32.totalorder %s22, 0
      %p190 = por %p188, %p189
      %p191 = scmp.ne.s32.totalorder %s179, %s180
      %p192 = scmp.eq.s32.totalorder %s23, 3
      %p193 = por %p191, %p192
      %p195 = scmp.ne.s32.totalorder %s180, %s194
      %p196 = scmp.eq.s32.totalorder %s23, 0
      %p197 = por %p195, %p196
      %s198 = ssub.s32 %s17, %s24
      %p199 = scmp.eq.s32.totalorder %s198, 0
      %s201 = sadd.s32 %s200, 1
      %s202 = scalar_select %p199, %s200, %s201
      %p205 = pneg %p199
      %p206 = scmp.eq.s32.totalorder %s17, 3
      %p207 = por %p205, %p206
      %p208 = scmp.ne.s32.totalorder %s200, %s203
      %p209 = scmp.eq.s32.totalorder %s17, 0
      %p210 = por %p208, %p209
      %p211 = scmp.ne.s32.totalorder %s200, %s203
      %p212 = scmp.eq.s32.totalorder %s22, 3
      %p213 = por %p211, %p212
      %p214 = scmp.ne.s32.totalorder %s203, %s204
      %p215 = scmp.eq.s32.totalorder %s22, 0
      %p216 = por %p214, %p215
      %p217 = scmp.ne.s32.totalorder %s203, %s204
      %p218 = scmp.eq.s32.totalorder %s23, 3
      %p219 = por %p217, %p218
      %p221 = scmp.ne.s32.totalorder %s204, %s220
      %p222 = scmp.eq.s32.totalorder %s23, 0
      %p223 = por %p221, %p222
      %p224 = scmp.le.s32.totalorder 1, %s17
      %p225 = scmp.lt.s32.totalorder %s17, 5
      %p226 = pnand %p224, %p225
      %p227 = pneg %p226
      // Predicated region
      $region9: #{tpu_custom_call.1} parent=5 // pred_check
        _
      $region10: #{tpu_custom_call.1} parent=5 // pred_check_branch
        %229 = sbr.rel (%p226) target = $region12
      $region11: #{tpu_custom_call.1} parent=5 // pred_region
        %s230 = ssub.s32 %s17, 1
        // Predicated region
        $region13: #{tpu_custom_call.1} parent=11 // pred_check
          %p231 = pneg %p64
        $region14: #{tpu_custom_call.1} parent=11 // pred_check_branch
          %233 = sbr.rel (%p231) target = $region16
        $region15: #{tpu_custom_call.1} parent=11 // pred_region
          _
        $region16: #{tpu_custom_call.1} parent=11 // pred_fallthru
          _
        // Predicated region
        $region17: #{tpu_custom_call.1} parent=11 // pred_check
          %p234 = pneg %p85
        $region18: #{tpu_custom_call.1} parent=11 // pred_check_branch
          %236 = sbr.rel (%p234) target = $region20
        $region19: #{tpu_custom_call.1} parent=11 // pred_region
          _
        $region20: #{tpu_custom_call.1} parent=11 // pred_fallthru
          _
        // Predicated region
        $region21: #{tpu_custom_call.1} parent=11 // pred_check
          %p237 = pneg %p106
        $region22: #{tpu_custom_call.1} parent=11 // pred_check_branch
          %239 = sbr.rel (%p237) target = $region24
        $region23: #{tpu_custom_call.1} parent=11 // pred_region
          _
        $region24: #{tpu_custom_call.1} parent=11 // pred_fallthru
          _
        // Predicated region
        $region25: #{tpu_custom_call.1} parent=11 // pred_check
          %p240 = pneg %p127
        $region26: #{tpu_custom_call.1} parent=11 // pred_check_branch
          %242 = sbr.rel (%p240) target = $region28
        $region27: #{tpu_custom_call.1} parent=11 // pred_region
          _
        $region28: #{tpu_custom_call.1} parent=11 // pred_fallthru
          _
        // Predicated region
        $region29: #{tpu_custom_call.1} parent=11 // pred_check
          %p243 = pneg %p148
        $region30: #{tpu_custom_call.1} parent=11 // pred_check_branch
          %245 = sbr.rel (%p243) target = $region32
        $region31: #{tpu_custom_call.1} parent=11 // pred_region
          _
        $region32: #{tpu_custom_call.1} parent=11 // pred_fallthru
          _
        // Predicated region
        $region33: #{tpu_custom_call.1} parent=11 // pred_check
          %p246 = pneg %p169
        $region34: #{tpu_custom_call.1} parent=11 // pred_check_branch
          %248 = sbr.rel (%p246) target = $region36
        $region35: #{tpu_custom_call.1} parent=11 // pred_region
          _
        $region36: #{tpu_custom_call.1} parent=11 // pred_fallthru
          _
        // Predicated region
        $region37: #{tpu_custom_call.1} parent=11 // pred_check
          %p249 = pneg %p190
        $region38: #{tpu_custom_call.1} parent=11 // pred_check_branch
          %251 = sbr.rel (%p249) target = $region40
        $region39: #{tpu_custom_call.1} parent=11 // pred_region
          _
        $region40: #{tpu_custom_call.1} parent=11 // pred_fallthru
          _
      $region12: #{tpu_custom_call.1} parent=5 // pred_fallthru
        _
      %p252 = scmp.lt.s32.totalorder %s17, 4
      // Predicated region
      $region41: #{tpu_custom_call.1} parent=5 // pred_check
        %p253 = pneg %p252
      $region42: #{tpu_custom_call.1} parent=5 // pred_check_branch
        %255 = sbr.rel (%p253) target = $region44
      $region43: #{tpu_custom_call.1} parent=5 // pred_region
        // Predicated region
        $region45: #{tpu_custom_call.1} parent=43 // pred_check
          %p256 = pneg %p37
        $region46: #{tpu_custom_call.1} parent=43 // pred_check_branch
          %258 = sbr.rel (%p256) target = $region48
        $region47: #{tpu_custom_call.1} parent=43 // pred_region
          %s259 = smul.u32 4, %s17
          %p260 = scmp.lt.s32.totalorder %s259, 15
          %s261 = scalar_select %p260, %s259, 15
          %s262 = smul.addr %s261, 8
          %s263 = smul.addr %s262, 8
          %s264 = scalar_lea.vmem %s0, %s263
          %s265 = smul.u32 4, %s17
        $region48: #{tpu_custom_call.1} parent=43 // pred_fallthru
          _
      $region44: #{tpu_custom_call.1} parent=5 // pred_fallthru
        _
      %p266 = scmp.le.s32.totalorder 1, %s17
      %p267 = scmp.lt.s32.totalorder %s17, 5
      %p268 = pnand %p266, %p267
      %p269 = pneg %p268
      // Predicated region
      $region49: #{tpu_custom_call.1} parent=5 // pred_check
        _
      $region50: #{tpu_custom_call.1} parent=5 // pred_check_branch
        %271 = sbr.rel (%p268) target = $region52
      $region51: #{tpu_custom_call.1} parent=5 // pred_region
        %s272 = ssub.s32 %s17, 1
        %s273 = smul.u32 4, %s22
        %p274 = scmp.lt.s32.totalorder %s273, 15
        %s275 = scalar_select %p274, %s273, 15
        %s276 = smul.addr %s275, 8
        %s277 = smul.addr %s276, 8
        %s278 = scalar_lea.vmem %s0, %s277
        %p279 = pneg %p43
        %p280 = pneg %p40
        %p281 = pneg %p64
        %p282 = pneg %p61
        %p283 = pneg %p85
        %p284 = pneg %p82
        %p285 = pneg %p106
        %p286 = pneg %p103
        %p287 = pneg %p127
        %p288 = pneg %p124
        %p289 = pneg %p148
        %p290 = pneg %p145
        %p291 = pneg %p169
        %p292 = pneg %p166
        %p293 = pneg %p190
        %p294 = pneg %p187
        %p295 = pneg %p216
        %p296 = pneg %p213
        %s297 = sand.u32 %s203, 1
        %s298 = scalar_lea.sflag [#allocation5], %s297
        %s299 = sand.u32 %s203, 1
        %s300 = smul.addr %s299, 256
        %s301 = scalar_lea.vmem [#allocation4], %s300
        %s302 = smul.u32 4, %s22
        %p303 = scmp.lt.s32.totalorder %s302, 15
        %s304 = scalar_select %p303, %s302, 15
        %s305 = smul.addr %s304, 8
        %s306 = smul.addr %s305, 8
        %s307 = scalar_lea.vmem %s0, %s306
        %s308 = smul.u32 4, %s22
        %s309 = smul.u32 4, %s22
        %v310 = vld [vmem:[%s307] sm:$0xff]
        %v311 = vld [vmem:[%s307 + $0x8] sm:$0xff]
        %v312 = vld [vmem:[%s307 + $0x10] sm:$0xff]
        %v313 = vld [vmem:[%s307 + $0x18] sm:$0xff]
        %v314 = vld [vmem:[%s307 + $0x20] sm:$0xff]
        %v315 = vld [vmem:[%s307 + $0x28] sm:$0xff]
        %v316 = vld [vmem:[%s307 + $0x30] sm:$0xff]
        %v317 = vld [vmem:[%s307 + $0x38] sm:$0xff]
        %v318 = vadd.f32 %v310, %v314
        %v319 = vrot.slane %v318, 4
        %v320 = vadd.f32 %v318, %v319
        %v321 = vrot.slane %v320, 2
        %v322 = vadd.f32 %v320, %v321
        %v323 = vrot.slane %v322, 1
        %v324 = vadd.f32 %v322, %v323
        %v325 = vadd.f32 %v311, %v315
        %v326 = vrot.slane %v325, 4
        %v327 = vadd.f32 %v325, %v326
        %v328 = vrot.slane %v327, 2
        %v329 = vadd.f32 %v327, %v328
        %v330 = vrot.slane %v329, 1
        %v331 = vadd.f32 %v329, %v330
        %v332 = vadd.f32 %v312, %v316
        %v333 = vrot.slane %v332, 4
        %v334 = vadd.f32 %v332, %v333
        %v335 = vrot.slane %v334, 2
        %v336 = vadd.f32 %v334, %v335
        %v337 = vrot.slane %v336, 1
        %v338 = vadd.f32 %v336, %v337
        %v339 = vadd.f32 %v313, %v317
        %v340 = vrot.slane %v339, 4
        %v341 = vadd.f32 %v339, %v340
        %v342 = vrot.slane %v341, 2
        %v343 = vadd.f32 %v341, %v342
        %v344 = vrot.slane %v343, 1
        %v345 = vadd.f32 %v343, %v344
        %v346 = vmax.f32 %v310, %v314
        %v347 = vrot.slane %v346, 4
        %v348 = vmax.f32 %v346, %v347
        %v349 = vrot.slane %v348, 2
        %v350 = vmax.f32 %v348, %v349
        %v351 = vrot.slane %v350, 1
        %v352 = vmax.f32 %v350, %v351
        %v353 = vmax.f32 %v311, %v315
        %v354 = vrot.slane %v353, 4
        %v355 = vmax.f32 %v353, %v354
        %v356 = vrot.slane %v355, 2
        %v357 = vmax.f32 %v355, %v356
        %v358 = vrot.slane %v357, 1
        %v359 = vmax.f32 %v357, %v358
        %v360 = vmax.f32 %v312, %v316
        %v361 = vrot.slane %v360, 4
        %v362 = vmax.f32 %v360, %v361
        %v363 = vrot.slane %v362, 2
        %v364 = vmax.f32 %v362, %v363
        %v365 = vrot.slane %v364, 1
        %v366 = vmax.f32 %v364, %v365
        %v367 = vmax.f32 %v313, %v317
        %v368 = vrot.slane %v367, 4
        %v369 = vmax.f32 %v367, %v368
        %v370 = vrot.slane %v369, 2
        %v371 = vmax.f32 %v369, %v370
        %v372 = vrot.slane %v371, 1
        %v373 = vmax.f32 %v371, %v372
        %s374 = scalar_lea.vmem %s307, 64
        %v375 = vld [vmem:[%s374] sm:$0xff]
        %v376 = vld [vmem:[%s374 + $0x8] sm:$0xff]
        %v377 = vld [vmem:[%s374 + $0x10] sm:$0xff]
        %v378 = vld [vmem:[%s374 + $0x18] sm:$0xff]
        %v379 = vld [vmem:[%s374 + $0x20] sm:$0xff]
        %v380 = vld [vmem:[%s374 + $0x28] sm:$0xff]
        %v381 = vld [vmem:[%s374 + $0x30] sm:$0xff]
        %v382 = vld [vmem:[%s374 + $0x38] sm:$0xff]
        %v383 = vadd.f32 %v375, %v379
        %v384 = vrot.slane %v383, 4
        %v385 = vadd.f32 %v383, %v384
        %v386 = vrot.slane %v385, 2
        %v387 = vadd.f32 %v385, %v386
        %v388 = vrot.slane %v387, 1
        %v389 = vadd.f32 %v387, %v388
        %v390 = vadd.f32 %v376, %v380
        %v391 = vrot.slane %v390, 4
        %v392 = vadd.f32 %v390, %v391
        %v393 = vrot.slane %v392, 2
        %v394 = vadd.f32 %v392, %v393
        %v395 = vrot.slane %v394, 1
        %v396 = vadd.f32 %v394, %v395
        %v397 = vadd.f32 %v377, %v381
        %v398 = vrot.slane %v397, 4
        %v399 = vadd.f32 %v397, %v398
        %v400 = vrot.slane %v399, 2
        %v401 = vadd.f32 %v399, %v400
        %v402 = vrot.slane %v401, 1
        %v403 = vadd.f32 %v401, %v402
        %v404 = vadd.f32 %v378, %v382
        %v405 = vrot.slane %v404, 4
        %v406 = vadd.f32 %v404, %v405
        %v407 = vrot.slane %v406, 2
        %v408 = vadd.f32 %v406, %v407
        %v409 = vrot.slane %v408, 1
        %v410 = vadd.f32 %v408, %v409
        %v411 = vmax.f32 %v375, %v379
        %v412 = vrot.slane %v411, 4
        %v413 = vmax.f32 %v411, %v412
        %v414 = vrot.slane %v413, 2
        %v415 = vmax.f32 %v413, %v414
        %v416 = vrot.slane %v415, 1
        %v417 = vmax.f32 %v415, %v416
        %v418 = vmax.f32 %v376, %v380
        %v419 = vrot.slane %v418, 4
        %v420 = vmax.f32 %v418, %v419
        %v421 = vrot.slane %v420, 2
        %v422 = vmax.f32 %v420, %v421
        %v423 = vrot.slane %v422, 1
        %v424 = vmax.f32 %v422, %v423
        %v425 = vmax.f32 %v377, %v381
        %v426 = vrot.slane %v425, 4
        %v427 = vmax.f32 %v425, %v426
        %v428 = vrot.slane %v427, 2
        %v429 = vmax.f32 %v427, %v428
        %v430 = vrot.slane %v429, 1
        %v431 = vmax.f32 %v429, %v430
        %v432 = vmax.f32 %v378, %v382
        %v433 = vrot.slane %v432, 4
        %v434 = vmax.f32 %v432, %v433
        %v435 = vrot.slane %v434, 2
        %v436 = vmax.f32 %v434, %v435
        %v437 = vrot.slane %v436, 1
        %v438 = vmax.f32 %v436, %v437
        %s439 = scalar_lea.vmem %s307, 128
        %v440 = vld [vmem:[%s439] sm:$0xff]
        %v441 = vld [vmem:[%s439 + $0x8] sm:$0xff]
        %v442 = vld [vmem:[%s439 + $0x10] sm:$0xff]
        %v443 = vld [vmem:[%s439 + $0x18] sm:$0xff]
        %v444 = vld [vmem:[%s439 + $0x20] sm:$0xff]
        %v445 = vld [vmem:[%s439 + $0x28] sm:$0xff]
        %v446 = vld [vmem:[%s439 + $0x30] sm:$0xff]
        %v447 = vld [vmem:[%s439 + $0x38] sm:$0xff]
        %v448 = vadd.f32 %v440, %v444
        %v449 = vrot.slane %v448, 4
        %v450 = vadd.f32 %v448, %v449
        %v451 = vrot.slane %v450, 2
        %v452 = vadd.f32 %v450, %v451
        %v453 = vrot.slane %v452, 1
        %v454 = vadd.f32 %v452, %v453
        %v455 = vadd.f32 %v441, %v445
        %v456 = vrot.slane %v455, 4
        %v457 = vadd.f32 %v455, %v456
        %v458 = vrot.slane %v457, 2
        %v459 = vadd.f32 %v457, %v458
        %v460 = vrot.slane %v459, 1
        %v461 = vadd.f32 %v459, %v460
        %v462 = vadd.f32 %v442, %v446
        %v463 = vrot.slane %v462, 4
        %v464 = vadd.f32 %v462, %v463
        %v465 = vrot.slane %v464, 2
        %v466 = vadd.f32 %v464, %v465
        %v467 = vrot.slane %v466, 1
        %v468 = vadd.f32 %v466, %v467
        %v469 = vadd.f32 %v443, %v447
        %v470 = vrot.slane %v469, 4
        %v471 = vadd.f32 %v469, %v470
        %v472 = vrot.slane %v471, 2
        %v473 = vadd.f32 %v471, %v472
        %v474 = vrot.slane %v473, 1
        %v475 = vadd.f32 %v473, %v474
        %v476 = vmax.f32 %v440, %v444
        %v477 = vrot.slane %v476, 4
        %v478 = vmax.f32 %v476, %v477
        %v479 = vrot.slane %v478, 2
        %v480 = vmax.f32 %v478, %v479
        %v481 = vrot.slane %v480, 1
        %v482 = vmax.f32 %v480, %v481
        %v483 = vmax.f32 %v441, %v445
        %v484 = vrot.slane %v483, 4
        %v485 = vmax.f32 %v483, %v484
        %v486 = vrot.slane %v485, 2
        %v487 = vmax.f32 %v485, %v486
        %v488 = vrot.slane %v487, 1
        %v489 = vmax.f32 %v487, %v488
        %v490 = vmax.f32 %v442, %v446
        %v491 = vrot.slane %v490, 4
        %v492 = vmax.f32 %v490, %v491
        %v493 = vrot.slane %v492, 2
        %v494 = vmax.f32 %v492, %v493
        %v495 = vrot.slane %v494, 1
        %v496 = vmax.f32 %v494, %v495
        %v497 = vmax.f32 %v443, %v447
        %v498 = vrot.slane %v497, 4
        %v499 = vmax.f32 %v497, %v498
        %v500 = vrot.slane %v499, 2
        %v501 = vmax.f32 %v499, %v500
        %v502 = vrot.slane %v501, 1
        %v503 = vmax.f32 %v501, %v502
        %s504 = scalar_lea.vmem %s307, 192
        %v505 = vld [vmem:[%s504] sm:$0xff]
        %v506 = vld [vmem:[%s504 + $0x8] sm:$0xff]
        %v507 = vld [vmem:[%s504 + $0x10] sm:$0xff]
        %v508 = vld [vmem:[%s504 + $0x18] sm:$0xff]
        %v509 = vld [vmem:[%s504 + $0x20] sm:$0xff]
        %v510 = vld [vmem:[%s504 + $0x28] sm:$0xff]
        %v511 = vld [vmem:[%s504 + $0x30] sm:$0xff]
        %v512 = vld [vmem:[%s504 + $0x38] sm:$0xff]
        %v513 = vadd.f32 %v505, %v509
        %v514 = vrot.slane %v513, 4
        %v515 = vadd.f32 %v513, %v514
        %v516 = vrot.slane %v515, 2
        %v517 = vadd.f32 %v515, %v516
        %v518 = vrot.slane %v517, 1
        %v519 = vadd.f32 %v517, %v518
        %v520 = vadd.f32 %v506, %v510
        %v521 = vrot.slane %v520, 4
        %v522 = vadd.f32 %v520, %v521
        %v523 = vrot.slane %v522, 2
        %v524 = vadd.f32 %v522, %v523
        %v525 = vrot.slane %v524, 1
        %v526 = vadd.f32 %v524, %v525
        %v527 = vadd.f32 %v507, %v511
        %v528 = vrot.slane %v527, 4
        %v529 = vadd.f32 %v527, %v528
        %v530 = vrot.slane %v529, 2
        %v531 = vadd.f32 %v529, %v530
        %v532 = vrot.slane %v531, 1
        %v533 = vadd.f32 %v531, %v532
        %v534 = vadd.f32 %v508, %v512
        %v535 = vrot.slane %v534, 4
        %v536 = vadd.f32 %v534, %v535
        %v537 = vrot.slane %v536, 2
        %v538 = vadd.f32 %v536, %v537
        %v539 = vrot.slane %v538, 1
        %v540 = vadd.f32 %v538, %v539
        %v541 = vmax.f32 %v505, %v509
        %v542 = vrot.slane %v541, 4
        %v543 = vmax.f32 %v541, %v542
        %v544 = vrot.slane %v543, 2
        %v545 = vmax.f32 %v543, %v544
        %v546 = vrot.slane %v545, 1
        %v547 = vmax.f32 %v545, %v546
        %v548 = vmax.f32 %v506, %v510
        %v549 = vrot.slane %v548, 4
        %v550 = vmax.f32 %v548, %v549
        %v551 = vrot.slane %v550, 2
        %v552 = vmax.f32 %v550, %v551
        %v553 = vrot.slane %v552, 1
        %v554 = vmax.f32 %v552, %v553
        %v555 = vmax.f32 %v507, %v511
        %v556 = vrot.slane %v555, 4
        %v557 = vmax.f32 %v555, %v556
        %v558 = vrot.slane %v557, 2
        %v559 = vmax.f32 %v557, %v558
        %v560 = vrot.slane %v559, 1
        %v561 = vmax.f32 %v559, %v560
        %v562 = vmax.f32 %v508, %v512
        %v563 = vrot.slane %v562, 4
        %v564 = vmax.f32 %v562, %v563
        %v565 = vrot.slane %v564, 2
        %v566 = vmax.f32 %v564, %v565
        %v567 = vrot.slane %v566, 1
        %v568 = vmax.f32 %v566, %v567
        %vm569 = vcmask 1040384
        %v570 = vsel %vm569, %v324, %v389
        %v571 = vsel %vm569, %v331, %v396
        %v572 = vsel %vm569, %v338, %v403
        %v573 = vsel %vm569, %v345, %v410
        %vm574 = vcmask 1041408
        %v575 = vsel %vm574, %v570, %v454
        %v576 = vsel %vm574, %v571, %v461
        %v577 = vsel %vm574, %v572, %v468
        %v578 = vsel %vm574, %v573, %v475
        %vm579 = vcmask 1042432
        %v580 = vsel %vm579, %v575, %v519
        %v581 = vsel %vm579, %v576, %v526
        %v582 = vsel %vm579, %v577, %v533
        %v583 = vsel %vm579, %v578, %v540
        %v584 = vsel %vm569, %v352, %v417
        %v585 = vsel %vm569, %v359, %v424
        %v586 = vsel %vm569, %v366, %v431
        %v587 = vsel %vm569, %v373, %v438
        %v588 = vsel %vm574, %v584, %v482
        %v589 = vsel %vm574, %v585, %v489
        %v590 = vsel %vm574, %v586, %v496
        %v591 = vsel %vm574, %v587, %v503
        %v592 = vsel %vm579, %v588, %v547
        %v593 = vsel %vm579, %v589, %v554
        %v594 = vsel %vm579, %v590, %v561
        %v595 = vsel %vm579, %v591, %v568
        %600 = vrot.lane.b32.xlu0 %v592, 127
        %v601 = vpop.permute.xlu0 %600
        %602 = vrot.lane.b32.xlu0 %v593, 127
        %v603 = vpop.permute.xlu0 %602
        %604 = vrot.lane.b32.xlu0 %v594, 127
        %v605 = vpop.permute.xlu0 %604
        %606 = vrot.lane.b32.xlu0 %v595, 127
        %v607 = vpop.permute.xlu0 %606
        %vm608 = vcmask 1039360
        %v609 = vsel %vm608, %v601, %v603
        %v610 = vsel %vm608, %v603, %v605
        %v611 = vsel %vm608, %v605, %v607
        %v617 = vsel %vm608, %v607, %v601
        %v618 = vmax.f32 %v592, %v609
        %v619 = vmax.f32 %v593, %v610
        %v620 = vmax.f32 %v594, %v611
        %v621 = vmax.f32 %v595, %v617
        %626 = vrot.lane.b32.xlu0 %v618, 126
        %v627 = vpop.permute.xlu0 %626
        %628 = vrot.lane.b32.xlu0 %v619, 126
        %v629 = vpop.permute.xlu0 %628
        %630 = vrot.lane.b32.xlu0 %v620, 126
        %v631 = vpop.permute.xlu0 %630
        %632 = vrot.lane.b32.xlu0 %v621, 126
        %v633 = vpop.permute.xlu0 %632
        %vm634 = vcmask 1031168
        %v635 = vsel %vm634, %v627, %v629
        %v636 = vsel %vm634, %v629, %v631
        %v637 = vsel %vm634, %v631, %v633
        %v643 = vsel %vm634, %v633, %v627
        %v644 = vmax.f32 %v618, %v635
        %v645 = vmax.f32 %v619, %v636
        %v646 = vmax.f32 %v620, %v637
        %v647 = vmax.f32 %v621, %v643
        %652 = vrot.lane.b32.xlu0 %v644, 124
        %v653 = vpop.permute.xlu0 %652
        %654 = vrot.lane.b32.xlu0 %v645, 124
        %v655 = vpop.permute.xlu0 %654
        %656 = vrot.lane.b32.xlu0 %v646, 124
        %v657 = vpop.permute.xlu0 %656
        %658 = vrot.lane.b32.xlu0 %v647, 124
        %v659 = vpop.permute.xlu0 %658
        %vm660 = vcmask 1014784
        %v661 = vsel %vm660, %v653, %v655
        %v662 = vsel %vm660, %v655, %v657
        %v663 = vsel %vm660, %v657, %v659
        %v669 = vsel %vm660, %v659, %v653
        %v670 = vmax.f32 %v644, %v661
        %v671 = vmax.f32 %v645, %v662
        %v672 = vmax.f32 %v646, %v663
        %v673 = vmax.f32 %v647, %v669
        %678 = vrot.lane.b32.xlu0 %v670, 120
        %v679 = vpop.permute.xlu0 %678
        %680 = vrot.lane.b32.xlu0 %v671, 120
        %v681 = vpop.permute.xlu0 %680
        %682 = vrot.lane.b32.xlu0 %v672, 120
        %v683 = vpop.permute.xlu0 %682
        %684 = vrot.lane.b32.xlu0 %v673, 120
        %v685 = vpop.permute.xlu0 %684
        %vm686 = vcmask 982016
        %v687 = vsel %vm686, %v679, %v681
        %v688 = vsel %vm686, %v681, %v683
        %v689 = vsel %vm686, %v683, %v685
        %v695 = vsel %vm686, %v685, %v679
        %v696 = vmax.f32 %v670, %v687
        %v697 = vmax.f32 %v671, %v688
        %v698 = vmax.f32 %v672, %v689
        %v699 = vmax.f32 %v673, %v695
        %v700 = vld [vmem:[%s1] sm:$0xff]
        %v701 = vld [vmem:[%s1 + $0x8] sm:$0xff]
        %v702 = vld [vmem:[%s1 + $0x10] sm:$0xff]
        %v703 = vld [vmem:[%s1 + $0x18] sm:$0xff]
        %v704 = vld [vmem:[%s1 + $0x20] sm:$0xff]
        %v705 = vld [vmem:[%s1 + $0x28] sm:$0xff]
        %v706 = vld [vmem:[%s1 + $0x30] sm:$0xff]
        %v707 = vld [vmem:[%s1 + $0x38] sm:$0xff]
        %v708 = vld [vmem:[%s1 + $0x40] sm:$0xff]
        %v709 = vld [vmem:[%s1 + $0x48] sm:$0xff]
        %v710 = vld [vmem:[%s1 + $0x50] sm:$0xff]
        %v711 = vld [vmem:[%s1 + $0x58] sm:$0xff]
        %v712 = vld [vmem:[%s1 + $0x60] sm:$0xff]
        %v713 = vld [vmem:[%s1 + $0x68] sm:$0xff]
        %v714 = vld [vmem:[%s1 + $0x70] sm:$0xff]
        %v715 = vld [vmem:[%s1 + $0x78] sm:$0xff]
        %v716 = vld [vmem:[%s1 + $0x80] sm:$0xff]
        %v717 = vld [vmem:[%s1 + $0x88] sm:$0xff]
        %v718 = vld [vmem:[%s1 + $0x90] sm:$0xff]
        %v719 = vld [vmem:[%s1 + $0x98] sm:$0xff]
        %v720 = vld [vmem:[%s1 + $0xa0] sm:$0xff]
        %v721 = vld [vmem:[%s1 + $0xa8] sm:$0xff]
        %v722 = vld [vmem:[%s1 + $0xb0] sm:$0xff]
        %v723 = vld [vmem:[%s1 + $0xb8] sm:$0xff]
        %v724 = vld [vmem:[%s1 + $0xc0] sm:$0xff]
        %v725 = vld [vmem:[%s1 + $0xc8] sm:$0xff]
        %v726 = vld [vmem:[%s1 + $0xd0] sm:$0xff]
        %v727 = vld [vmem:[%s1 + $0xd8] sm:$0xff]
        %v728 = vld [vmem:[%s1 + $0xe0] sm:$0xff]
        %v729 = vld [vmem:[%s1 + $0xe8] sm:$0xff]
        %v730 = vld [vmem:[%s1 + $0xf0] sm:$0xff]
        %v731 = vld [vmem:[%s1 + $0xf8] sm:$0xff]
        %v732 = vld [vmem:[%s1 + $0x100] sm:$0xff]
        %v733 = vld [vmem:[%s1 + $0x108] sm:$0xff]
        %v734 = vld [vmem:[%s1 + $0x110] sm:$0xff]
        %v735 = vld [vmem:[%s1 + $0x118] sm:$0xff]
        %v736 = vld [vmem:[%s1 + $0x120] sm:$0xff]
        %v737 = vld [vmem:[%s1 + $0x128] sm:$0xff]
        %v738 = vld [vmem:[%s1 + $0x130] sm:$0xff]
        %v739 = vld [vmem:[%s1 + $0x138] sm:$0xff]
        %v740 = vld [vmem:[%s1 + $0x140] sm:$0xff]
        %v741 = vld [vmem:[%s1 + $0x148] sm:$0xff]
        %v742 = vld [vmem:[%s1 + $0x150] sm:$0xff]
        %v743 = vld [vmem:[%s1 + $0x158] sm:$0xff]
        %v744 = vld [vmem:[%s1 + $0x160] sm:$0xff]
        %v745 = vld [vmem:[%s1 + $0x168] sm:$0xff]
        %v746 = vld [vmem:[%s1 + $0x170] sm:$0xff]
        %v747 = vld [vmem:[%s1 + $0x178] sm:$0xff]
        %v748 = vld [vmem:[%s1 + $0x180] sm:$0xff]
        %v749 = vld [vmem:[%s1 + $0x188] sm:$0xff]
        %v750 = vld [vmem:[%s1 + $0x190] sm:$0xff]
        %v751 = vld [vmem:[%s1 + $0x198] sm:$0xff]
        %v752 = vld [vmem:[%s1 + $0x1a0] sm:$0xff]
        %v753 = vld [vmem:[%s1 + $0x1a8] sm:$0xff]
        %v754 = vld [vmem:[%s1 + $0x1b0] sm:$0xff]
        %v755 = vld [vmem:[%s1 + $0x1b8] sm:$0xff]
        %v756 = vld [vmem:[%s1 + $0x1c0] sm:$0xff]
        %v757 = vld [vmem:[%s1 + $0x1c8] sm:$0xff]
        %v758 = vld [vmem:[%s1 + $0x1d0] sm:$0xff]
        %v759 = vld [vmem:[%s1 + $0x1d8] sm:$0xff]
        %v760 = vld [vmem:[%s1 + $0x1e0] sm:$0xff]
        %v761 = vld [vmem:[%s1 + $0x1e8] sm:$0xff]
        %v762 = vld [vmem:[%s1 + $0x1f0] sm:$0xff]
        %v763 = vld [vmem:[%s1 + $0x1f8] sm:$0xff]
        %764 = vmatprep.subr.mxu0 0.0
        %765 = vmatpush1.msra.mxu0 %v715
        %766 = vmatprep.subr.mxu0 0.0
        %767 = vmatpush1.msra.mxu0 %v714
        %768 = vmatprep.subr.mxu0 0.0
        %769 = vmatpush1.msra.mxu0 %v713
        %770 = vmatprep.subr.mxu0 0.0
        %771 = vmatpush1.msra.mxu0 %v712
        %772 = vmatprep.subr.mxu0 0.0
        %773 = vmatpush1.msra.mxu0 %v711
        %774 = vmatprep.subr.mxu0 0.0
        %775 = vmatpush1.msra.mxu0 %v710
        %776 = vmatprep.subr.mxu0 0.0
        %777 = vmatpush1.msra.mxu0 %v709
        %778 = vmatprep.subr.mxu0 0.0
        %779 = vmatpush1.msra.mxu0 %v708
        %780 = vmatprep.subr.mxu0 0.0
        %781 = vmatpush1.msra.mxu0 %v707
        %782 = vmatprep.subr.mxu0 0.0
        %783 = vmatpush1.msra.mxu0 %v706
        %784 = vmatprep.subr.mxu0 0.0
        %785 = vmatpush1.msra.mxu0 %v705
        %786 = vmatprep.subr.mxu0 0.0
        %787 = vmatpush1.msra.mxu0 %v704
        %788 = vmatprep.subr.mxu0 0.0
        %789 = vmatpush1.msra.mxu0 %v703
        %790 = vmatprep.subr.mxu0 0.0
        %791 = vmatpush1.msra.mxu0 %v702
        %792 = vmatprep.subr.mxu0 0.0
        %793 = vmatpush1.msra.mxu0 %v701
        %794 = vmatprep.subr.mxu0 0.0
        %795 = vmatpush1.msra.mxu0 %v700
        %796 = vmatprep.subr.mxu0 0.0
        %797 = vmatpush2.msra.mxu0 %v731
        %798 = vmatprep.subr.mxu0 0.0
        %799 = vmatpush2.msra.mxu0 %v730
        %800 = vmatprep.subr.mxu0 0.0
        %801 = vmatpush2.msra.mxu0 %v729
        %802 = vmatprep.subr.mxu0 0.0
        %803 = vmatpush2.msra.mxu0 %v728
        %804 = vmatprep.subr.mxu0 0.0
        %805 = vmatpush2.msra.mxu0 %v727
        %806 = vmatprep.subr.mxu0 0.0
        %807 = vmatpush2.msra.mxu0 %v726
        %808 = vmatprep.subr.mxu0 0.0
        %809 = vmatpush2.msra.mxu0 %v725
        %810 = vmatprep.subr.mxu0 0.0
        %811 = vmatpush2.msra.mxu0 %v724
        %812 = vmatprep.subr.mxu0 0.0
        %813 = vmatpush2.msra.mxu0 %v723
        %814 = vmatprep.subr.mxu0 0.0
        %815 = vmatpush2.msra.mxu0 %v722
        %816 = vmatprep.subr.mxu0 0.0
        %817 = vmatpush2.msra.mxu0 %v721
        %818 = vmatprep.subr.mxu0 0.0
        %819 = vmatpush2.msra.mxu0 %v720
        %820 = vmatprep.subr.mxu0 0.0
        %821 = vmatpush2.msra.mxu0 %v719
        %822 = vmatprep.subr.mxu0 0.0
        %823 = vmatpush2.msra.mxu0 %v718
        %824 = vmatprep.subr.mxu0 0.0
        %825 = vmatpush2.msra.mxu0 %v717
        %826 = vmatprep.subr.mxu0 0.0
        %827 = vmatpush2.msra.mxu0 %v716
        %828 = vmatprep.mubr.f32.mxu0 %v581
        %829 = vmatmul.mubr.f32.gmra.mxu0 %v580
        %v830 = vpop.f32.mrf.mxu0
        %v831 = vadd.f32 0.0, %v830
        %v832 = vpop.f32.mrf.mxu0
        %833 = vdwg.mxu0
        %834 = vmatprep.subr.mxu0 0.0
        %835 = vmatpush1.msra.mxu0 %v747
        %836 = vmatprep.subr.mxu0 0.0
        %837 = vmatpush1.msra.mxu0 %v746
        %838 = vmatprep.subr.mxu0 0.0
        %839 = vmatpush1.msra.mxu0 %v745
        %840 = vmatprep.subr.mxu0 0.0
        %841 = vmatpush1.msra.mxu0 %v744
        %842 = vmatprep.subr.mxu0 0.0
        %843 = vmatpush1.msra.mxu0 %v743
        %844 = vmatprep.subr.mxu0 0.0
        %845 = vmatpush1.msra.mxu0 %v742
        %846 = vmatprep.subr.mxu0 0.0
        %847 = vmatpush1.msra.mxu0 %v741
        %848 = vmatprep.subr.mxu0 0.0
        %849 = vmatpush1.msra.mxu0 %v740
        %850 = vmatprep.subr.mxu0 0.0
        %851 = vmatpush1.msra.mxu0 %v739
        %852 = vmatprep.subr.mxu0 0.0
        %853 = vmatpush1.msra.mxu0 %v738
        %854 = vmatprep.subr.mxu0 0.0
        %855 = vmatpush1.msra.mxu0 %v737
        %856 = vmatprep.subr.mxu0 0.0
        %857 = vmatpush1.msra.mxu0 %v736
        %858 = vmatprep.subr.mxu0 0.0
        %859 = vmatpush1.msra.mxu0 %v735
        %860 = vmatprep.subr.mxu0 0.0
        %861 = vmatpush1.msra.mxu0 %v734
        %862 = vmatprep.subr.mxu0 0.0
        %863 = vmatpush1.msra.mxu0 %v733
        %864 = vmatprep.subr.mxu0 0.0
        %865 = vmatpush1.msra.mxu0 %v732
        %866 = vmatprep.subr.mxu0 0.0
        %867 = vmatpush2.msra.mxu0 %v763
        %868 = vmatprep.subr.mxu0 0.0
        %869 = vmatpush2.msra.mxu0 %v762
        %870 = vmatprep.subr.mxu0 0.0
        %871 = vmatpush2.msra.mxu0 %v761
        %872 = vmatprep.subr.mxu0 0.0
        %873 = vmatpush2.msra.mxu0 %v760
        %874 = vmatprep.subr.mxu0 0.0
        %875 = vmatpush2.msra.mxu0 %v759
        %876 = vmatprep.subr.mxu0 0.0
        %877 = vmatpush2.msra.mxu0 %v758
        %878 = vmatprep.subr.mxu0 0.0
        %879 = vmatpush2.msra.mxu0 %v757
        %880 = vmatprep.subr.mxu0 0.0
        %881 = vmatpush2.msra.mxu0 %v756
        %882 = vmatprep.subr.mxu0 0.0
        %883 = vmatpush2.msra.mxu0 %v755
        %884 = vmatprep.subr.mxu0 0.0
        %885 = vmatpush2.msra.mxu0 %v754
        %886 = vmatprep.subr.mxu0 0.0
        %887 = vmatpush2.msra.mxu0 %v753
        %888 = vmatprep.subr.mxu0 0.0
        %889 = vmatpush2.msra.mxu0 %v752
        %890 = vmatprep.subr.mxu0 0.0
        %891 = vmatpush2.msra.mxu0 %v751
        %892 = vmatprep.subr.mxu0 0.0
        %893 = vmatpush2.msra.mxu0 %v750
        %894 = vmatprep.subr.mxu0 0.0
        %895 = vmatpush2.msra.mxu0 %v749
        %896 = vmatprep.subr.mxu0 0.0
        %897 = vmatpush2.msra.mxu0 %v748
        %898 = vmatprep.mubr.f32.mxu0 %v583
        %899 = vmatmul.mubr.f32.gmra.mxu0 %v582
        %v900 = vpop.f32.mrf.mxu0
        %v901 = vadd.f32 %v831, %v900
        %v902 = vpop.f32.mrf.mxu0
        %903 = vdwg.mxu0
        %v904 = vmax.f32 %v901, 0.0
        %v905 = vld [vmem:[%s2] sm:$0xff]
        %v906 = vld [vmem:[%s2 + $0x8] sm:$0xff]
        %v907 = vld [vmem:[%s2 + $0x10] sm:$0xff]
        %v908 = vld [vmem:[%s2 + $0x18] sm:$0xff]
        %v909 = vld [vmem:[%s2 + $0x20] sm:$0xff]
        %v910 = vld [vmem:[%s2 + $0x28] sm:$0xff]
        %v911 = vld [vmem:[%s2 + $0x30] sm:$0xff]
        %v912 = vld [vmem:[%s2 + $0x38] sm:$0xff]
        %v913 = vld [vmem:[%s2 + $0x40] sm:$0xff]
        %v914 = vld [vmem:[%s2 + $0x48] sm:$0xff]
        %v915 = vld [vmem:[%s2 + $0x50] sm:$0xff]
        %v916 = vld [vmem:[%s2 + $0x58] sm:$0xff]
        %v917 = vld [vmem:[%s2 + $0x60] sm:$0xff]
        %v918 = vld [vmem:[%s2 + $0x68] sm:$0xff]
        %v919 = vld [vmem:[%s2 + $0x70] sm:$0xff]
        %v920 = vld [vmem:[%s2 + $0x78] sm:$0xff]
        %v921 = vld [vmem:[%s2 + $0x80] sm:$0xff]
        %v922 = vld [vmem:[%s2 + $0x88] sm:$0xff]
        %v923 = vld [vmem:[%s2 + $0x90] sm:$0xff]
        %v924 = vld [vmem:[%s2 + $0x98] sm:$0xff]
        %v925 = vld [vmem:[%s2 + $0xa0] sm:$0xff]
        %v926 = vld [vmem:[%s2 + $0xa8] sm:$0xff]
        %v927 = vld [vmem:[%s2 + $0xb0] sm:$0xff]
        %v928 = vld [vmem:[%s2 + $0xb8] sm:$0xff]
        %v929 = vld [vmem:[%s2 + $0xc0] sm:$0xff]
        %v930 = vld [vmem:[%s2 + $0xc8] sm:$0xff]
        %v931 = vld [vmem:[%s2 + $0xd0] sm:$0xff]
        %v932 = vld [vmem:[%s2 + $0xd8] sm:$0xff]
        %v933 = vld [vmem:[%s2 + $0xe0] sm:$0xff]
        %v934 = vld [vmem:[%s2 + $0xe8] sm:$0xff]
        %v935 = vld [vmem:[%s2 + $0xf0] sm:$0xff]
        %v936 = vld [vmem:[%s2 + $0xf8] sm:$0xff]
        %v937 = vld [vmem:[%s2 + $0x100] sm:$0xff]
        %v938 = vld [vmem:[%s2 + $0x108] sm:$0xff]
        %v939 = vld [vmem:[%s2 + $0x110] sm:$0xff]
        %v940 = vld [vmem:[%s2 + $0x118] sm:$0xff]
        %v941 = vld [vmem:[%s2 + $0x120] sm:$0xff]
        %v942 = vld [vmem:[%s2 + $0x128] sm:$0xff]
        %v943 = vld [vmem:[%s2 + $0x130] sm:$0xff]
        %v944 = vld [vmem:[%s2 + $0x138] sm:$0xff]
        %v945 = vld [vmem:[%s2 + $0x140] sm:$0xff]
        %v946 = vld [vmem:[%s2 + $0x148] sm:$0xff]
        %v947 = vld [vmem:[%s2 + $0x150] sm:$0xff]
        %v948 = vld [vmem:[%s2 + $0x158] sm:$0xff]
        %v949 = vld [vmem:[%s2 + $0x160] sm:$0xff]
        %v950 = vld [vmem:[%s2 + $0x168] sm:$0xff]
        %v951 = vld [vmem:[%s2 + $0x170] sm:$0xff]
        %v952 = vld [vmem:[%s2 + $0x178] sm:$0xff]
        %v953 = vld [vmem:[%s2 + $0x180] sm:$0xff]
        %v954 = vld [vmem:[%s2 + $0x188] sm:$0xff]
        %v955 = vld [vmem:[%s2 + $0x190] sm:$0xff]
        %v956 = vld [vmem:[%s2 + $0x198] sm:$0xff]
        %v957 = vld [vmem:[%s2 + $0x1a0] sm:$0xff]
        %v958 = vld [vmem:[%s2 + $0x1a8] sm:$0xff]
        %v959 = vld [vmem:[%s2 + $0x1b0] sm:$0xff]
        %v960 = vld [vmem:[%s2 + $0x1b8] sm:$0xff]
        %v961 = vld [vmem:[%s2 + $0x1c0] sm:$0xff]
        %v962 = vld [vmem:[%s2 + $0x1c8] sm:$0xff]
        %v963 = vld [vmem:[%s2 + $0x1d0] sm:$0xff]
        %v964 = vld [vmem:[%s2 + $0x1d8] sm:$0xff]
        %v965 = vld [vmem:[%s2 + $0x1e0] sm:$0xff]
        %v966 = vld [vmem:[%s2 + $0x1e8] sm:$0xff]
        %v967 = vld [vmem:[%s2 + $0x1f0] sm:$0xff]
        %v968 = vld [vmem:[%s2 + $0x1f8] sm:$0xff]
        %969 = vmatprep.subr.mxu0 0.0
        %970 = vmatpush1.msra.mxu0 %v920
        %971 = vmatprep.subr.mxu0 0.0
        %972 = vmatpush1.msra.mxu0 %v919
        %973 = vmatprep.subr.mxu0 0.0
        %974 = vmatpush1.msra.mxu0 %v918
        %975 = vmatprep.subr.mxu0 0.0
        %976 = vmatpush1.msra.mxu0 %v917
        %977 = vmatprep.subr.mxu0 0.0
        %978 = vmatpush1.msra.mxu0 %v916
        %979 = vmatprep.subr.mxu0 0.0
        %980 = vmatpush1.msra.mxu0 %v915
        %981 = vmatprep.subr.mxu0 0.0
        %982 = vmatpush1.msra.mxu0 %v914
        %983 = vmatprep.subr.mxu0 0.0
        %984 = vmatpush1.msra.mxu0 %v913
        %985 = vmatprep.subr.mxu0 0.0
        %986 = vmatpush1.msra.mxu0 %v912
        %987 = vmatprep.subr.mxu0 0.0
        %988 = vmatpush1.msra.mxu0 %v911
        %989 = vmatprep.subr.mxu0 0.0
        %990 = vmatpush1.msra.mxu0 %v910
        %991 = vmatprep.subr.mxu0 0.0
        %992 = vmatpush1.msra.mxu0 %v909
        %993 = vmatprep.subr.mxu0 0.0
        %994 = vmatpush1.msra.mxu0 %v908
        %995 = vmatprep.subr.mxu0 0.0
        %996 = vmatpush1.msra.mxu0 %v907
        %997 = vmatprep.subr.mxu0 0.0
        %998 = vmatpush1.msra.mxu0 %v906
        %999 = vmatprep.subr.mxu0 0.0
        %1000 = vmatpush1.msra.mxu0 %v905
        %1001 = vmatprep.subr.mxu0 0.0
        %1002 = vmatpush2.msra.mxu0 %v936
        %1003 = vmatprep.subr.mxu0 0.0
        %1004 = vmatpush2.msra.mxu0 %v935
        %1005 = vmatprep.subr.mxu0 0.0
        %1006 = vmatpush2.msra.mxu0 %v934
        %1007 = vmatprep.subr.mxu0 0.0
        %1008 = vmatpush2.msra.mxu0 %v933
        %1009 = vmatprep.subr.mxu0 0.0
        %1010 = vmatpush2.msra.mxu0 %v932
        %1011 = vmatprep.subr.mxu0 0.0
        %1012 = vmatpush2.msra.mxu0 %v931
        %1013 = vmatprep.subr.mxu0 0.0
        %1014 = vmatpush2.msra.mxu0 %v930
        %1015 = vmatprep.subr.mxu0 0.0
        %1016 = vmatpush2.msra.mxu0 %v929
        %1017 = vmatprep.subr.mxu0 0.0
        %1018 = vmatpush2.msra.mxu0 %v928
        %1019 = vmatprep.subr.mxu0 0.0
        %1020 = vmatpush2.msra.mxu0 %v927
        %1021 = vmatprep.subr.mxu0 0.0
        %1022 = vmatpush2.msra.mxu0 %v926
        %1023 = vmatprep.subr.mxu0 0.0
        %1024 = vmatpush2.msra.mxu0 %v925
        %1025 = vmatprep.subr.mxu0 0.0
        %1026 = vmatpush2.msra.mxu0 %v924
        %1027 = vmatprep.subr.mxu0 0.0
        %1028 = vmatpush2.msra.mxu0 %v923
        %1029 = vmatprep.subr.mxu0 0.0
        %1030 = vmatpush2.msra.mxu0 %v922
        %1031 = vmatprep.subr.mxu0 0.0
        %1032 = vmatpush2.msra.mxu0 %v921
        %1033 = vmatprep.mubr.f32.mxu0 %v697
        %1034 = vmatmul.mubr.f32.gmra.mxu0 %v696
        %v1035 = vpop.f32.mrf.mxu0
        %v1036 = vadd.f32 0.0, %v1035
        %v1037 = vpop.f32.mrf.mxu0
        %1038 = vdwg.mxu0
        %1039 = vmatprep.subr.mxu0 0.0
        %1040 = vmatpush1.msra.mxu0 %v952
        %1041 = vmatprep.subr.mxu0 0.0
        %1042 = vmatpush1.msra.mxu0 %v951
        %1043 = vmatprep.subr.mxu0 0.0
        %1044 = vmatpush1.msra.mxu0 %v950
        %1045 = vmatprep.subr.mxu0 0.0
        %1046 = vmatpush1.msra.mxu0 %v949
        %1047 = vmatprep.subr.mxu0 0.0
        %1048 = vmatpush1.msra.mxu0 %v948
        %1049 = vmatprep.subr.mxu0 0.0
        %1050 = vmatpush1.msra.mxu0 %v947
        %1051 = vmatprep.subr.mxu0 0.0
        %1052 = vmatpush1.msra.mxu0 %v946
        %1053 = vmatprep.subr.mxu0 0.0
        %1054 = vmatpush1.msra.mxu0 %v945
        %1055 = vmatprep.subr.mxu0 0.0
        %1056 = vmatpush1.msra.mxu0 %v944
        %1057 = vmatprep.subr.mxu0 0.0
        %1058 = vmatpush1.msra.mxu0 %v943
        %1059 = vmatprep.subr.mxu0 0.0
        %1060 = vmatpush1.msra.mxu0 %v942
        %1061 = vmatprep.subr.mxu0 0.0
        %1062 = vmatpush1.msra.mxu0 %v941
        %1063 = vmatprep.subr.mxu0 0.0
        %1064 = vmatpush1.msra.mxu0 %v940
        %1065 = vmatprep.subr.mxu0 0.0
        %1066 = vmatpush1.msra.mxu0 %v939
        %1067 = vmatprep.subr.mxu0 0.0
        %1068 = vmatpush1.msra.mxu0 %v938
        %1069 = vmatprep.subr.mxu0 0.0
        %1070 = vmatpush1.msra.mxu0 %v937
        %1071 = vmatprep.subr.mxu0 0.0
        %1072 = vmatpush2.msra.mxu0 %v968
        %1073 = vmatprep.subr.mxu0 0.0
        %1074 = vmatpush2.msra.mxu0 %v967
        %1075 = vmatprep.subr.mxu0 0.0
        %1076 = vmatpush2.msra.mxu0 %v966
        %1077 = vmatprep.subr.mxu0 0.0
        %1078 = vmatpush2.msra.mxu0 %v965
        %1079 = vmatprep.subr.mxu0 0.0
        %1080 = vmatpush2.msra.mxu0 %v964
        %1081 = vmatprep.subr.mxu0 0.0
        %1082 = vmatpush2.msra.mxu0 %v963
        %1083 = vmatprep.subr.mxu0 0.0
        %1084 = vmatpush2.msra.mxu0 %v962
        %1085 = vmatprep.subr.mxu0 0.0
        %1086 = vmatpush2.msra.mxu0 %v961
        %1087 = vmatprep.subr.mxu0 0.0
        %1088 = vmatpush2.msra.mxu0 %v960
        %1089 = vmatprep.subr.mxu0 0.0
        %1090 = vmatpush2.msra.mxu0 %v959
        %1091 = vmatprep.subr.mxu0 0.0
        %1092 = vmatpush2.msra.mxu0 %v958
        %1093 = vmatprep.subr.mxu0 0.0
        %1094 = vmatpush2.msra.mxu0 %v957
        %1095 = vmatprep.subr.mxu0 0.0
        %1096 = vmatpush2.msra.mxu0 %v956
        %1097 = vmatprep.subr.mxu0 0.0
        %1098 = vmatpush2.msra.mxu0 %v955
        %1099 = vmatprep.subr.mxu0 0.0
        %1100 = vmatpush2.msra.mxu0 %v954
        %1101 = vmatprep.subr.mxu0 0.0
        %1102 = vmatpush2.msra.mxu0 %v953
        %1103 = vmatprep.mubr.f32.mxu0 %v699
        %1104 = vmatmul.mubr.f32.gmra.mxu0 %v698
        %v1105 = vpop.f32.mrf.mxu0
        %v1106 = vadd.f32 %v1036, %v1105
        %v1107 = vpop.f32.mrf.mxu0
        %1108 = vdwg.mxu0
        %v1109 = vmax.f32 %v1106, 0.0
        %v1110 = vadd.f32 %v904, %v1109
        %v1111 = vld [vmem:[%s3] sm:$0x3]
        %vm1112 = vcmask 15360
        %v1114 = vsel %vm1112, %v1110, 0
        %v1117 = vsel %vm574, %v1111, 0
        %1119 = vmatprep.subr.mxu0 0.0
        %1120 = vmatpush1.msra.mxu0 0.0
        %1121 = vmatprep.subr.mxu0 0.0
        %1122 = vmatpush1.msra.mxu0 0.0
        %1123 = vmatprep.subr.mxu0 0.0
        %1124 = vmatpush1.msra.mxu0 0.0
        %1125 = vmatprep.subr.mxu0 0.0
        %1126 = vmatpush1.msra.mxu0 0.0
        %1127 = vmatprep.subr.mxu0 0.0
        %1128 = vmatpush1.msra.mxu0 0.0
        %1129 = vmatprep.subr.mxu0 0.0
        %1130 = vmatpush1.msra.mxu0 0.0
        %1131 = vmatprep.subr.mxu0 0.0
        %1132 = vmatpush1.msra.mxu0 0.0
        %1133 = vmatprep.subr.mxu0 0.0
        %1134 = vmatpush1.msra.mxu0 0.0
        %1135 = vmatprep.subr.mxu0 0.0
        %1136 = vmatpush1.msra.mxu0 0.0
        %1137 = vmatprep.subr.mxu0 0.0
        %1138 = vmatpush1.msra.mxu0 0.0
        %1139 = vmatprep.subr.mxu0 0.0
        %1140 = vmatpush1.msra.mxu0 0.0
        %1141 = vmatprep.subr.mxu0 0.0
        %1142 = vmatpush1.msra.mxu0 0.0
        %1143 = vmatprep.subr.mxu0 0.0
        %1144 = vmatpush1.msra.mxu0 0.0
        %1145 = vmatprep.subr.mxu0 0.0
        %1146 = vmatpush1.msra.mxu0 0.0
        %1147 = vmatprep.subr.mxu0 0.0
        %1148 = vmatpush1.msra.mxu0 0.0
        %1149 = vmatprep.subr.mxu0 0.0
        %1150 = vmatpush1.msra.mxu0 %v1117
        %1151 = vmatprep.subr.mxu0 0.0
        %1152 = vmatpush2.msra.mxu0 0.0
        %1153 = vmatprep.subr.mxu0 0.0
        %1154 = vmatpush2.msra.mxu0 0.0
        %1155 = vmatprep.subr.mxu0 0.0
        %1156 = vmatpush2.msra.mxu0 0.0
        %1157 = vmatprep.subr.mxu0 0.0
        %1158 = vmatpush2.msra.mxu0 0.0
        %1159 = vmatprep.subr.mxu0 0.0
        %1160 = vmatpush2.msra.mxu0 0.0
        %1161 = vmatprep.subr.mxu0 0.0
        %1162 = vmatpush2.msra.mxu0 0.0
        %1163 = vmatprep.subr.mxu0 0.0
        %1164 = vmatpush2.msra.mxu0 0.0
        %1165 = vmatprep.subr.mxu0 0.0
        %1166 = vmatpush2.msra.mxu0 0.0
        %1167 = vmatprep.subr.mxu0 0.0
        %1168 = vmatpush2.msra.mxu0 0.0
        %1169 = vmatprep.subr.mxu0 0.0
        %1170 = vmatpush2.msra.mxu0 0.0
        %1171 = vmatprep.subr.mxu0 0.0
        %1172 = vmatpush2.msra.mxu0 0.0
        %1173 = vmatprep.subr.mxu0 0.0
        %1174 = vmatpush2.msra.mxu0 0.0
        %1175 = vmatprep.subr.mxu0 0.0
        %1176 = vmatpush2.msra.mxu0 0.0
        %1177 = vmatprep.subr.mxu0 0.0
        %1178 = vmatpush2.msra.mxu0 0.0
        %1179 = vmatprep.subr.mxu0 0.0
        %1180 = vmatpush2.msra.mxu0 0.0
        %1181 = vmatprep.subr.mxu0 0.0
        %1182 = vmatpush2.msra.mxu0 0.0
        %1183 = vmatprep.mubr.f32.mxu0 0.0
        %1184 = vmatmul.mubr.f32.gmra.mxu0 %v1114
        %v1185 = vpop.f32.mrf.mxu0
        %v1186 = vadd.f32 0.0, %v1185
        %v1187 = vpop.f32.mrf.mxu0
        %1188 = vdwg.mxu0
        %v1189 = vxor.u32 %v1186, 2147483648
        %v1190 = vmul.f32 %v1189, 1.442695
        %v1191 = vpow.pop %v1190
        %v1192 = vadd.f32 %v1191, 1.0
        %v1193 = vrcp.pop %v1192
        %v1194 = vmul.f32 1.0, %v1193
        %v1195 = vld [vmem:[%s4] sm:$0xff]
        %v1196 = vld [vmem:[%s4 + $0x8] sm:$0xff]
        %v1197 = vld [vmem:[%s4 + $0x10] sm:$0xff]
        %v1198 = vld [vmem:[%s4 + $0x18] sm:$0xff]
        %v1199 = vld [vmem:[%s4 + $0x20] sm:$0xff]
        %v1200 = vld [vmem:[%s4 + $0x28] sm:$0xff]
        %v1201 = vld [vmem:[%s4 + $0x30] sm:$0xff]
        %v1202 = vld [vmem:[%s4 + $0x38] sm:$0xff]
        %v1203 = vld [vmem:[%s4 + $0x40] sm:$0xff]
        %v1204 = vld [vmem:[%s4 + $0x48] sm:$0xff]
        %v1205 = vld [vmem:[%s4 + $0x50] sm:$0xff]
        %v1206 = vld [vmem:[%s4 + $0x58] sm:$0xff]
        %v1207 = vld [vmem:[%s4 + $0x60] sm:$0xff]
        %v1208 = vld [vmem:[%s4 + $0x68] sm:$0xff]
        %v1209 = vld [vmem:[%s4 + $0x70] sm:$0xff]
        %v1210 = vld [vmem:[%s4 + $0x78] sm:$0xff]
        %vm1211 = vcmask 261120
        %v1213 = vsel %vm1211, %v1194, 0
        %1215 = vmatprep.subr.mxu0 0.0
        %1216 = vmatpush1.msra.mxu0 0.0
        %1217 = vmatprep.subr.mxu0 0.0
        %1218 = vmatpush1.msra.mxu0 0.0
        %1219 = vmatprep.subr.mxu0 0.0
        %1220 = vmatpush1.msra.mxu0 0.0
        %1221 = vmatprep.subr.mxu0 0.0
        %1222 = vmatpush1.msra.mxu0 0.0
        %1223 = vmatprep.subr.mxu0 0.0
        %1224 = vmatpush1.msra.mxu0 0.0
        %1225 = vmatprep.subr.mxu0 0.0
        %1226 = vmatpush1.msra.mxu0 0.0
        %1227 = vmatprep.subr.mxu0 0.0
        %1228 = vmatpush1.msra.mxu0 0.0
        %1229 = vmatprep.subr.mxu0 0.0
        %1230 = vmatpush1.msra.mxu0 0.0
        %1231 = vmatprep.subr.mxu0 0.0
        %1232 = vmatpush1.msra.mxu0 0.0
        %1233 = vmatprep.subr.mxu0 0.0
        %1234 = vmatpush1.msra.mxu0 0.0
        %1235 = vmatprep.subr.mxu0 0.0
        %1236 = vmatpush1.msra.mxu0 0.0
        %1237 = vmatprep.subr.mxu0 0.0
        %1238 = vmatpush1.msra.mxu0 0.0
        %1239 = vmatprep.subr.mxu0 %v1208
        %1240 = vmatpush1.msra.mxu0 %v1207
        %1241 = vmatprep.subr.mxu0 %v1204
        %1242 = vmatpush1.msra.mxu0 %v1203
        %1243 = vmatprep.subr.mxu0 %v1200
        %1244 = vmatpush1.msra.mxu0 %v1199
        %1245 = vmatprep.subr.mxu0 %v1196
        %1246 = vmatpush1.msra.mxu0 %v1195
        %1247 = vmatprep.subr.mxu0 0.0
        %1248 = vmatpush2.msra.mxu0 0.0
        %1249 = vmatprep.subr.mxu0 0.0
        %1250 = vmatpush2.msra.mxu0 0.0
        %1251 = vmatprep.subr.mxu0 0.0
        %1252 = vmatpush2.msra.mxu0 0.0
        %1253 = vmatprep.subr.mxu0 0.0
        %1254 = vmatpush2.msra.mxu0 0.0
        %1255 = vmatprep.subr.mxu0 0.0
        %1256 = vmatpush2.msra.mxu0 0.0
        %1257 = vmatprep.subr.mxu0 0.0
        %1258 = vmatpush2.msra.mxu0 0.0
        %1259 = vmatprep.subr.mxu0 0.0
        %1260 = vmatpush2.msra.mxu0 0.0
        %1261 = vmatprep.subr.mxu0 0.0
        %1262 = vmatpush2.msra.mxu0 0.0
        %1263 = vmatprep.subr.mxu0 0.0
        %1264 = vmatpush2.msra.mxu0 0.0
        %1265 = vmatprep.subr.mxu0 0.0
        %1266 = vmatpush2.msra.mxu0 0.0
        %1267 = vmatprep.subr.mxu0 0.0
        %1268 = vmatpush2.msra.mxu0 0.0
        %1269 = vmatprep.subr.mxu0 0.0
        %1270 = vmatpush2.msra.mxu0 0.0
        %1271 = vmatprep.subr.mxu0 0.0
        %1272 = vmatpush2.msra.mxu0 0.0
        %1273 = vmatprep.subr.mxu0 0.0
        %1274 = vmatpush2.msra.mxu0 0.0
        %1275 = vmatprep.subr.mxu0 0.0
        %1276 = vmatpush2.msra.mxu0 0.0
        %1277 = vmatprep.subr.mxu0 0.0
        %1278 = vmatpush2.msra.mxu0 0.0
        %1279 = vmatprep.mubr.f32.mxu0 0.0
        %1280 = vmatmul.mubr.f32.gmra.mxu0 %v1213
        %v1281 = vpop.f32.mrf.mxu0
        %v1282 = vadd.f32 0.0, %v1281
        %v1283 = vpop.f32.mrf.mxu0
        %v1284 = vadd.f32 0.0, %v1283
        %1285 = vdwg.mxu0
        %1286 = vmatprep.subr.mxu0 0.0
        %1287 = vmatpush1.msra.mxu0 0.0
        %1288 = vmatprep.subr.mxu0 0.0
        %1289 = vmatpush1.msra.mxu0 0.0
        %1290 = vmatprep.subr.mxu0 0.0
        %1291 = vmatpush1.msra.mxu0 0.0
        %1292 = vmatprep.subr.mxu0 0.0
        %1293 = vmatpush1.msra.mxu0 0.0
        %1294 = vmatprep.subr.mxu0 0.0
        %1295 = vmatpush1.msra.mxu0 0.0
        %1296 = vmatprep.subr.mxu0 0.0
        %1297 = vmatpush1.msra.mxu0 0.0
        %1298 = vmatprep.subr.mxu0 0.0
        %1299 = vmatpush1.msra.mxu0 0.0
        %1300 = vmatprep.subr.mxu0 0.0
        %1301 = vmatpush1.msra.mxu0 0.0
        %1302 = vmatprep.subr.mxu0 0.0
        %1303 = vmatpush1.msra.mxu0 0.0
        %1304 = vmatprep.subr.mxu0 0.0
        %1305 = vmatpush1.msra.mxu0 0.0
        %1306 = vmatprep.subr.mxu0 0.0
        %1307 = vmatpush1.msra.mxu0 0.0
        %1308 = vmatprep.subr.mxu0 0.0
        %1309 = vmatpush1.msra.mxu0 0.0
        %1310 = vmatprep.subr.mxu0 %v1210
        %1311 = vmatpush1.msra.mxu0 %v1209
        %1312 = vmatprep.subr.mxu0 %v1206
        %1313 = vmatpush1.msra.mxu0 %v1205
        %1314 = vmatprep.subr.mxu0 %v1202
        %1315 = vmatpush1.msra.mxu0 %v1201
        %1316 = vmatprep.subr.mxu0 %v1198
        %1317 = vmatpush1.msra.mxu0 %v1197
        %1318 = vmatprep.subr.mxu0 0.0
        %1319 = vmatpush2.msra.mxu0 0.0
        %1320 = vmatprep.subr.mxu0 0.0
        %1321 = vmatpush2.msra.mxu0 0.0
        %1322 = vmatprep.subr.mxu0 0.0
        %1323 = vmatpush2.msra.mxu0 0.0
        %1324 = vmatprep.subr.mxu0 0.0
        %1325 = vmatpush2.msra.mxu0 0.0
        %1326 = vmatprep.subr.mxu0 0.0
        %1327 = vmatpush2.msra.mxu0 0.0
        %1328 = vmatprep.subr.mxu0 0.0
        %1329 = vmatpush2.msra.mxu0 0.0
        %1330 = vmatprep.subr.mxu0 0.0
        %1331 = vmatpush2.msra.mxu0 0.0
        %1332 = vmatprep.subr.mxu0 0.0
        %1333 = vmatpush2.msra.mxu0 0.0
        %1334 = vmatprep.subr.mxu0 0.0
        %1335 = vmatpush2.msra.mxu0 0.0
        %1336 = vmatprep.subr.mxu0 0.0
        %1337 = vmatpush2.msra.mxu0 0.0
        %1338 = vmatprep.subr.mxu0 0.0
        %1339 = vmatpush2.msra.mxu0 0.0
        %1340 = vmatprep.subr.mxu0 0.0
        %1341 = vmatpush2.msra.mxu0 0.0
        %1342 = vmatprep.subr.mxu0 0.0
        %1343 = vmatpush2.msra.mxu0 0.0
        %1344 = vmatprep.subr.mxu0 0.0
        %1345 = vmatpush2.msra.mxu0 0.0
        %1346 = vmatprep.subr.mxu0 0.0
        %1347 = vmatpush2.msra.mxu0 0.0
        %1348 = vmatprep.subr.mxu0 0.0
        %1349 = vmatpush2.msra.mxu0 0.0
        %1350 = vmatprep.mubr.f32.mxu0 0.0
        %1351 = vmatmul.mubr.f32.gmra.mxu0 %v1213
        %v1352 = vpop.f32.mrf.mxu0
        %v1353 = vadd.f32 0.0, %v1352
        %v1354 = vpop.f32.mrf.mxu0
        %v1355 = vadd.f32 0.0, %v1354
        %1356 = vdwg.mxu0
        %v1357 = vlaneseq
        %v1358 = vshrl.u32 %v1357, 7
        %v1359 = vsub.s32 0, %v1358
        %v1360 = vrot.slane %v1282, %v1359
        %v1361 = vlaneseq
        %v1362 = vshrl.u32 %v1361, 7
        %v1363 = vsub.s32 0, %v1362
        %v1364 = vrot.slane %v1284, %v1363
        %v1365 = vlaneseq
        %v1366 = vshrl.u32 %v1365, 7
        %v1367 = vsub.s32 0, %v1366
        %v1368 = vrot.slane %v1353, %v1367
        %v1369 = vlaneseq
        %v1370 = vshrl.u32 %v1369, 7
        %v1371 = vsub.s32 0, %v1370
        %v1372 = vrot.slane %v1355, %v1371
        %v1373 = vmul.f32 %v310, %v1360
        %v1374 = vmul.f32 %v311, %v1364
        %v1375 = vmul.f32 %v312, %v1368
        %v1376 = vmul.f32 %v313, %v1372
        %v1377 = vmul.f32 %v314, %v1360
        %v1378 = vmul.f32 %v315, %v1364
        %v1379 = vmul.f32 %v316, %v1368
        %v1380 = vmul.f32 %v317, %v1372
        %1381 = vst [vmem:[%s301] sm:$0xff] %v1373
        %1382 = vst [vmem:[%s301 + $0x8] sm:$0xff] %v1374
        %1383 = vst [vmem:[%s301 + $0x10] sm:$0xff] %v1375
        %1384 = vst [vmem:[%s301 + $0x18] sm:$0xff] %v1376
        %1385 = vst [vmem:[%s301 + $0x20] sm:$0xff] %v1377
        %1386 = vst [vmem:[%s301 + $0x28] sm:$0xff] %v1378
        %1387 = vst [vmem:[%s301 + $0x30] sm:$0xff] %v1379
        %1388 = vst [vmem:[%s301 + $0x38] sm:$0xff] %v1380
        %v1389 = vld [vmem:[%s374] sm:$0xff]
        %v1390 = vld [vmem:[%s374 + $0x8] sm:$0xff]
        %v1391 = vld [vmem:[%s374 + $0x10] sm:$0xff]
        %v1392 = vld [vmem:[%s374 + $0x18] sm:$0xff]
        %v1393 = vld [vmem:[%s374 + $0x20] sm:$0xff]
        %v1394 = vld [vmem:[%s374 + $0x28] sm:$0xff]
        %v1395 = vld [vmem:[%s374 + $0x30] sm:$0xff]
        %v1396 = vld [vmem:[%s374 + $0x38] sm:$0xff]
        %v1397 = vlaneseq
        %v1398 = vshrl.u32 %v1397, 7
        %v1399 = vsub.s32 1, %v1398
        %v1400 = vrot.slane %v1282, %v1399
        %v1401 = vlaneseq
        %v1402 = vshrl.u32 %v1401, 7
        %v1403 = vsub.s32 1, %v1402
        %v1404 = vrot.slane %v1284, %v1403
        %v1405 = vlaneseq
        %v1406 = vshrl.u32 %v1405, 7
        %v1407 = vsub.s32 1, %v1406
        %v1408 = vrot.slane %v1353, %v1407
        %v1409 = vlaneseq
        %v1410 = vshrl.u32 %v1409, 7
        %v1411 = vsub.s32 1, %v1410
        %v1412 = vrot.slane %v1355, %v1411
        %v1413 = vmul.f32 %v1389, %v1400
        %v1414 = vmul.f32 %v1390, %v1404
        %v1415 = vmul.f32 %v1391, %v1408
        %v1416 = vmul.f32 %v1392, %v1412
        %v1417 = vmul.f32 %v1393, %v1400
        %v1418 = vmul.f32 %v1394, %v1404
        %v1419 = vmul.f32 %v1395, %v1408
        %v1420 = vmul.f32 %v1396, %v1412
        %s1421 = scalar_lea.vmem %s301, 64 [#allocation4]
        %1422 = vst [vmem:[%s1421] sm:$0xff] %v1413
        %1423 = vst [vmem:[%s1421 + $0x8] sm:$0xff] %v1414
        %1424 = vst [vmem:[%s1421 + $0x10] sm:$0xff] %v1415
        %1425 = vst [vmem:[%s1421 + $0x18] sm:$0xff] %v1416
        %1426 = vst [vmem:[%s1421 + $0x20] sm:$0xff] %v1417
        %1427 = vst [vmem:[%s1421 + $0x28] sm:$0xff] %v1418
        %1428 = vst [vmem:[%s1421 + $0x30] sm:$0xff] %v1419
        %1429 = vst [vmem:[%s1421 + $0x38] sm:$0xff] %v1420
        %v1430 = vld [vmem:[%s439] sm:$0xff]
        %v1431 = vld [vmem:[%s439 + $0x8] sm:$0xff]
        %v1432 = vld [vmem:[%s439 + $0x10] sm:$0xff]
        %v1433 = vld [vmem:[%s439 + $0x18] sm:$0xff]
        %v1434 = vld [vmem:[%s439 + $0x20] sm:$0xff]
        %v1435 = vld [vmem:[%s439 + $0x28] sm:$0xff]
        %v1436 = vld [vmem:[%s439 + $0x30] sm:$0xff]
        %v1437 = vld [vmem:[%s439 + $0x38] sm:$0xff]
        %v1438 = vlaneseq
        %v1439 = vshrl.u32 %v1438, 7
        %v1440 = vsub.s32 2, %v1439
        %v1441 = vrot.slane %v1282, %v1440
        %v1442 = vlaneseq
        %v1443 = vshrl.u32 %v1442, 7
        %v1444 = vsub.s32 2, %v1443
        %v1445 = vrot.slane %v1284, %v1444
        %v1446 = vlaneseq
        %v1447 = vshrl.u32 %v1446, 7
        %v1448 = vsub.s32 2, %v1447
        %v1449 = vrot.slane %v1353, %v1448
        %v1450 = vlaneseq
        %v1451 = vshrl.u32 %v1450, 7
        %v1452 = vsub.s32 2, %v1451
        %v1453 = vrot.slane %v1355, %v1452
        %v1454 = vmul.f32 %v1430, %v1441
        %v1455 = vmul.f32 %v1431, %v1445
        %v1456 = vmul.f32 %v1432, %v1449
        %v1457 = vmul.f32 %v1433, %v1453
        %v1458 = vmul.f32 %v1434, %v1441
        %v1459 = vmul.f32 %v1435, %v1445
        %v1460 = vmul.f32 %v1436, %v1449
        %v1461 = vmul.f32 %v1437, %v1453
        %s1462 = scalar_lea.vmem %s301, 128 [#allocation4]
        %1463 = vst [vmem:[%s1462] sm:$0xff] %v1454
        %1464 = vst [vmem:[%s1462 + $0x8] sm:$0xff] %v1455
        %1465 = vst [vmem:[%s1462 + $0x10] sm:$0xff] %v1456
        %1466 = vst [vmem:[%s1462 + $0x18] sm:$0xff] %v1457
        %1467 = vst [vmem:[%s1462 + $0x20] sm:$0xff] %v1458
        %1468 = vst [vmem:[%s1462 + $0x28] sm:$0xff] %v1459
        %1469 = vst [vmem:[%s1462 + $0x30] sm:$0xff] %v1460
        %1470 = vst [vmem:[%s1462 + $0x38] sm:$0xff] %v1461
        %v1471 = vld [vmem:[%s504] sm:$0xff]
        %v1472 = vld [vmem:[%s504 + $0x8] sm:$0xff]
        %v1473 = vld [vmem:[%s504 + $0x10] sm:$0xff]
        %v1474 = vld [vmem:[%s504 + $0x18] sm:$0xff]
        %v1475 = vld [vmem:[%s504 + $0x20] sm:$0xff]
        %v1476 = vld [vmem:[%s504 + $0x28] sm:$0xff]
        %v1477 = vld [vmem:[%s504 + $0x30] sm:$0xff]
        %v1478 = vld [vmem:[%s504 + $0x38] sm:$0xff]
        %v1479 = vlaneseq
        %v1480 = vshrl.u32 %v1479, 7
        %v1481 = vsub.s32 3, %v1480
        %v1482 = vrot.slane %v1282, %v1481
        %v1483 = vlaneseq
        %v1484 = vshrl.u32 %v1483, 7
        %v1485 = vsub.s32 3, %v1484
        %v1486 = vrot.slane %v1284, %v1485
        %v1487 = vlaneseq
        %v1488 = vshrl.u32 %v1487, 7
        %v1489 = vsub.s32 3, %v1488
        %v1490 = vrot.slane %v1353, %v1489
        %v1491 = vlaneseq
        %v1492 = vshrl.u32 %v1491, 7
        %v1493 = vsub.s32 3, %v1492
        %v1494 = vrot.slane %v1355, %v1493
        %v1495 = vmul.f32 %v1471, %v1482
        %v1496 = vmul.f32 %v1472, %v1486
        %v1497 = vmul.f32 %v1473, %v1490
        %v1498 = vmul.f32 %v1474, %v1494
        %v1499 = vmul.f32 %v1475, %v1482
        %v1500 = vmul.f32 %v1476, %v1486
        %v1501 = vmul.f32 %v1477, %v1490
        %v1502 = vmul.f32 %v1478, %v1494
        %s1503 = scalar_lea.vmem %s301, 192 [#allocation4]
        %1504 = vst [vmem:[%s1503] sm:$0xff] %v1495
        %1505 = vst [vmem:[%s1503 + $0x8] sm:$0xff] %v1496
        %1506 = vst [vmem:[%s1503 + $0x10] sm:$0xff] %v1497
        %1507 = vst [vmem:[%s1503 + $0x18] sm:$0xff] %v1498
        %1508 = vst [vmem:[%s1503 + $0x20] sm:$0xff] %v1499
        %1509 = vst [vmem:[%s1503 + $0x28] sm:$0xff] %v1500
        %1510 = vst [vmem:[%s1503 + $0x30] sm:$0xff] %v1501
        %1511 = vst [vmem:[%s1503 + $0x38] sm:$0xff] %v1502
        %1512 = vst [vmem:[#allocation2] sm:$0xff] 0.0
        %vm1513 = vcmask 392192
        %1514 = vst.msk [vmem:[#allocation2 + $0x8] sm:$0xff] %vm1513, 0.0
        %1515 = vst [vmem:[#allocation2 + $0x10] sm:$0xff] 0.0
        %1516 = vst.msk [vmem:[#allocation2 + $0x18] sm:$0xff] %vm1513, 0.0
        %1517 = vst [vmem:[#allocation2 + $0x20] sm:$0x3f] 0.0
        %vm1518 = vcmask 390144
        %1519 = vst.msk [vmem:[#allocation2 + $0x28] sm:$0x3f] %vm1518, 0.0
        %v1520 = vld [vmem:[%s301] sm:$0xff]
        %v1521 = vld [vmem:[%s301 + $0x8] sm:$0xff]
        %v1522 = vld [vmem:[%s301 + $0x10] sm:$0xff]
        %v1523 = vld [vmem:[%s301 + $0x18] sm:$0xff]
        %v1524 = vld [vmem:[%s301 + $0x20] sm:$0xff]
        %v1525 = vld [vmem:[%s301 + $0x28] sm:$0xff]
        %v1526 = vld [vmem:[%s301 + $0x30] sm:$0xff]
        %v1527 = vld [vmem:[%s301 + $0x38] sm:$0xff]
        %v1528 = vld [vmem:[%s301 + $0x40] sm:$0xff]
        %v1529 = vld [vmem:[%s301 + $0x48] sm:$0xff]
        %v1530 = vld [vmem:[%s301 + $0x50] sm:$0xff]
        %v1531 = vld [vmem:[%s301 + $0x58] sm:$0xff]
        %v1532 = vld [vmem:[%s301 + $0x60] sm:$0xff]
        %v1533 = vld [vmem:[%s301 + $0x68] sm:$0xff]
        %v1534 = vld [vmem:[%s301 + $0x70] sm:$0xff]
        %v1535 = vld [vmem:[%s301 + $0x78] sm:$0xff]
        %v1536 = vld [vmem:[%s301 + $0x80] sm:$0xff]
        %v1537 = vld [vmem:[%s301 + $0x88] sm:$0xff]
        %v1538 = vld [vmem:[%s301 + $0x90] sm:$0xff]
        %v1539 = vld [vmem:[%s301 + $0x98] sm:$0xff]
        %v1540 = vld [vmem:[%s301 + $0xa0] sm:$0xff]
        %v1541 = vld [vmem:[%s301 + $0xa8] sm:$0xff]
        %v1542 = vld [vmem:[%s301 + $0xb0] sm:$0xff]
        %v1543 = vld [vmem:[%s301 + $0xb8] sm:$0xff]
        %v1544 = vld [vmem:[%s301 + $0xc0] sm:$0xff]
        %v1545 = vld [vmem:[%s301 + $0xc8] sm:$0xff]
        %v1546 = vld [vmem:[%s301 + $0xd0] sm:$0xff]
        %v1547 = vld [vmem:[%s301 + $0xd8] sm:$0xff]
        %v1548 = vld [vmem:[%s301 + $0xe0] sm:$0xff]
        %v1549 = vld [vmem:[%s301 + $0xe8] sm:$0xff]
        %v1550 = vld [vmem:[%s301 + $0xf0] sm:$0xff]
        %v1551 = vld [vmem:[%s301 + $0xf8] sm:$0xff]
        %v1552 = vld [vmem:[%s5] sm:$0xff]
        %v1553 = vld [vmem:[%s5 + $0x8] sm:$0xff]
        %v1554 = vld [vmem:[%s5 + $0x10] sm:$0xff]
        %v1555 = vld [vmem:[%s5 + $0x18] sm:$0xff]
        %v1556 = vld [vmem:[%s5 + $0x20] sm:$0xff]
        %v1557 = vld [vmem:[%s5 + $0x28] sm:$0xff]
        %v1558 = vld [vmem:[%s5 + $0x30] sm:$0xff]
        %v1559 = vld [vmem:[%s5 + $0x38] sm:$0xff]
        %v1560 = vld [vmem:[%s5 + $0x40] sm:$0xff]
        %v1561 = vld [vmem:[%s5 + $0x48] sm:$0xff]
        %v1562 = vld [vmem:[%s5 + $0x50] sm:$0xff]
        %v1563 = vld [vmem:[%s5 + $0x58] sm:$0xff]
        %v1564 = vld [vmem:[%s5 + $0x60] sm:$0xff]
        %v1565 = vld [vmem:[%s5 + $0x68] sm:$0xff]
        %v1566 = vld [vmem:[%s5 + $0x70] sm:$0xff]
        %v1567 = vld [vmem:[%s5 + $0x78] sm:$0xff]
        %v1568 = vld [vmem:[%s5 + $0x80] sm:$0xff]
        %v1569 = vld [vmem:[%s5 + $0x88] sm:$0xff]
        %v1570 = vld [vmem:[%s5 + $0x90] sm:$0xff]
        %v1571 = vld [vmem:[%s5 + $0x98] sm:$0xff]
        %v1572 = vld [vmem:[%s5 + $0xa0] sm:$0xff]
        %v1573 = vld [vmem:[%s5 + $0xa8] sm:$0xff]
        %v1574 = vld [vmem:[%s5 + $0xb0] sm:$0xff]
        %v1575 = vld [vmem:[%s5 + $0xb8] sm:$0xff]
        %v1576 = vld [vmem:[%s5 + $0xc0] sm:$0xff]
        %v1577 = vld [vmem:[%s5 + $0xc8] sm:$0xff]
        %v1578 = vld [vmem:[%s5 + $0xd0] sm:$0xff]
        %v1579 = vld [vmem:[%s5 + $0xd8] sm:$0xff]
        %v1580 = vld [vmem:[%s5 + $0xe0] sm:$0xff]
        %v1581 = vld [vmem:[%s5 + $0xe8] sm:$0xff]
        %v1582 = vld [vmem:[%s5 + $0xf0] sm:$0xff]
        %v1583 = vld [vmem:[%s5 + $0xf8] sm:$0xff]
        %v1584 = vld [vmem:[%s5 + $0x100] sm:$0xff]
        %v1585 = vld [vmem:[%s5 + $0x108] sm:$0xff]
        %v1586 = vld [vmem:[%s5 + $0x110] sm:$0xff]
        %v1587 = vld [vmem:[%s5 + $0x118] sm:$0xff]
        %v1588 = vld [vmem:[%s5 + $0x120] sm:$0xff]
        %v1589 = vld [vmem:[%s5 + $0x128] sm:$0xff]
        %v1590 = vld [vmem:[%s5 + $0x130] sm:$0xff]
        %v1591 = vld [vmem:[%s5 + $0x138] sm:$0xff]
        %v1592 = vld [vmem:[%s5 + $0x140] sm:$0xff]
        %v1593 = vld [vmem:[%s5 + $0x148] sm:$0xff]
        %v1594 = vld [vmem:[%s5 + $0x150] sm:$0xff]
        %v1595 = vld [vmem:[%s5 + $0x158] sm:$0xff]
        %v1596 = vld [vmem:[%s5 + $0x160] sm:$0xff]
        %v1597 = vld [vmem:[%s5 + $0x168] sm:$0xff]
        %v1598 = vld [vmem:[%s5 + $0x170] sm:$0xff]
        %v1599 = vld [vmem:[%s5 + $0x178] sm:$0xff]
        %v1600 = vld [vmem:[%s5 + $0x180] sm:$0xff]
        %v1601 = vld [vmem:[%s5 + $0x188] sm:$0xff]
        %v1602 = vld [vmem:[%s5 + $0x190] sm:$0xff]
        %v1603 = vld [vmem:[%s5 + $0x198] sm:$0xff]
        %v1604 = vld [vmem:[%s5 + $0x1a0] sm:$0xff]
        %v1605 = vld [vmem:[%s5 + $0x1a8] sm:$0xff]
        %v1606 = vld [vmem:[%s5 + $0x1b0] sm:$0xff]
        %v1607 = vld [vmem:[%s5 + $0x1b8] sm:$0xff]
        %v1608 = vld [vmem:[%s5 + $0x1c0] sm:$0xff]
        %v1609 = vld [vmem:[%s5 + $0x1c8] sm:$0xff]
        %v1610 = vld [vmem:[%s5 + $0x1d0] sm:$0xff]
        %v1611 = vld [vmem:[%s5 + $0x1d8] sm:$0xff]
        %v1612 = vld [vmem:[%s5 + $0x1e0] sm:$0xff]
        %v1613 = vld [vmem:[%s5 + $0x1e8] sm:$0xff]
        %v1614 = vld [vmem:[%s5 + $0x1f0] sm:$0xff]
        %v1615 = vld [vmem:[%s5 + $0x1f8] sm:$0xff]
        %1616 = vmatprep.subr.mxu0 0.0
        %1617 = vmatpush1.msra.mxu0 %v1567
        %1618 = vmatprep.subr.mxu0 0.0
        %1619 = vmatpush1.msra.mxu0 %v1566
        %1620 = vmatprep.subr.mxu0 0.0
        %1621 = vmatpush1.msra.mxu0 %v1565
        %1622 = vmatprep.subr.mxu0 0.0
        %1623 = vmatpush1.msra.mxu0 %v1564
        %1624 = vmatprep.subr.mxu0 0.0
        %1625 = vmatpush1.msra.mxu0 %v1563
        %1626 = vmatprep.subr.mxu0 0.0
        %1627 = vmatpush1.msra.mxu0 %v1562
        %1628 = vmatprep.subr.mxu0 0.0
        %1629 = vmatpush1.msra.mxu0 %v1561
        %1630 = vmatprep.subr.mxu0 0.0
        %1631 = vmatpush1.msra.mxu0 %v1560
        %1632 = vmatprep.subr.mxu0 0.0
        %1633 = vmatpush1.msra.mxu0 %v1559
        %1634 = vmatprep.subr.mxu0 0.0
        %1635 = vmatpush1.msra.mxu0 %v1558
        %1636 = vmatprep.subr.mxu0 0.0
        %1637 = vmatpush1.msra.mxu0 %v1557
        %1638 = vmatprep.subr.mxu0 0.0
        %1639 = vmatpush1.msra.mxu0 %v1556
        %1640 = vmatprep.subr.mxu0 0.0
        %1641 = vmatpush1.msra.mxu0 %v1555
        %1642 = vmatprep.subr.mxu0 0.0
        %1643 = vmatpush1.msra.mxu0 %v1554
        %1644 = vmatprep.subr.mxu0 0.0
        %1645 = vmatpush1.msra.mxu0 %v1553
        %1646 = vmatprep.subr.mxu0 0.0
        %1647 = vmatpush1.msra.mxu0 %v1552
        %1648 = vmatprep.subr.mxu0 0.0
        %1649 = vmatpush2.msra.mxu0 %v1583
        %1650 = vmatprep.subr.mxu0 0.0
        %1651 = vmatpush2.msra.mxu0 %v1582
        %1652 = vmatprep.subr.mxu0 0.0
        %1653 = vmatpush2.msra.mxu0 %v1581
        %1654 = vmatprep.subr.mxu0 0.0
        %1655 = vmatpush2.msra.mxu0 %v1580
        %1656 = vmatprep.subr.mxu0 0.0
        %1657 = vmatpush2.msra.mxu0 %v1579
        %1658 = vmatprep.subr.mxu0 0.0
        %1659 = vmatpush2.msra.mxu0 %v1578
        %1660 = vmatprep.subr.mxu0 0.0
        %1661 = vmatpush2.msra.mxu0 %v1577
        %1662 = vmatprep.subr.mxu0 0.0
        %1663 = vmatpush2.msra.mxu0 %v1576
        %1664 = vmatprep.subr.mxu0 0.0
        %1665 = vmatpush2.msra.mxu0 %v1575
        %1666 = vmatprep.subr.mxu0 0.0
        %1667 = vmatpush2.msra.mxu0 %v1574
        %1668 = vmatprep.subr.mxu0 0.0
        %1669 = vmatpush2.msra.mxu0 %v1573
        %1670 = vmatprep.subr.mxu0 0.0
        %1671 = vmatpush2.msra.mxu0 %v1572
        %1672 = vmatprep.subr.mxu0 0.0
        %1673 = vmatpush2.msra.mxu0 %v1571
        %1674 = vmatprep.subr.mxu0 0.0
        %1675 = vmatpush2.msra.mxu0 %v1570
        %1676 = vmatprep.subr.mxu0 0.0
        %1677 = vmatpush2.msra.mxu0 %v1569
        %1678 = vmatprep.subr.mxu0 0.0
        %1679 = vmatpush2.msra.mxu0 %v1568
        %1680 = vmatprep.mubr.f32.mxu0 %v1521
        %1681 = vmatmul.mubr.f32.gmra.mxu0 %v1520
        %v1682 = vpop.f32.mrf.mxu0
        %v1683 = vadd.f32 0.0, %v1682
        %v1684 = vpop.f32.mrf.mxu0
        %1685 = vmatprep.mubr.f32.mxu0 %v1525
        %1686 = vmatmul.mubr.f32.gmra.mxu0 %v1524
        %v1687 = vpop.f32.mrf.mxu0
        %v1688 = vadd.f32 0.0, %v1687
        %v1689 = vpop.f32.mrf.mxu0
        %1690 = vmatprep.mubr.f32.mxu0 %v1529
        %1691 = vmatmul.mubr.f32.gmra.mxu0 %v1528
        %v1692 = vpop.f32.mrf.mxu0
        %v1693 = vadd.f32 0.0, %v1692
        %v1694 = vpop.f32.mrf.mxu0
        %1695 = vmatprep.mubr.f32.mxu0 %v1533
        %1696 = vmatmul.mubr.f32.gmra.mxu0 %v1532
        %v1697 = vpop.f32.mrf.mxu0
        %v1698 = vadd.f32 0.0, %v1697
        %v1699 = vpop.f32.mrf.mxu0
        %1700 = vmatprep.mubr.f32.mxu0 %v1537
        %1701 = vmatmul.mubr.f32.gmra.mxu0 %v1536
        %v1702 = vpop.f32.mrf.mxu0
        %v1703 = vadd.f32 0.0, %v1702
        %v1704 = vpop.f32.mrf.mxu0
        %1705 = vmatprep.mubr.f32.mxu0 %v1541
        %1706 = vmatmul.mubr.f32.gmra.mxu0 %v1540
        %v1707 = vpop.f32.mrf.mxu0
        %v1708 = vadd.f32 0.0, %v1707
        %v1709 = vpop.f32.mrf.mxu0
        %1710 = vmatprep.mubr.f32.mxu0 %v1545
        %1711 = vmatmul.mubr.f32.gmra.mxu0 %v1544
        %v1712 = vpop.f32.mrf.mxu0
        %v1713 = vadd.f32 0.0, %v1712
        %v1714 = vpop.f32.mrf.mxu0
        %1715 = vmatprep.mubr.f32.mxu0 %v1549
        %1716 = vmatmul.mubr.f32.gmra.mxu0 %v1548
        %v1717 = vpop.f32.mrf.mxu0
        %v1718 = vadd.f32 0.0, %v1717
        %v1719 = vpop.f32.mrf.mxu0
        %1720 = vdwg.mxu0
        %1721 = vmatprep.subr.mxu0 0.0
        %1722 = vmatpush1.msra.mxu0 %v1599
        %1723 = vmatprep.subr.mxu0 0.0
        %1724 = vmatpush1.msra.mxu0 %v1598
        %1725 = vmatprep.subr.mxu0 0.0
        %1726 = vmatpush1.msra.mxu0 %v1597
        %1727 = vmatprep.subr.mxu0 0.0
        %1728 = vmatpush1.msra.mxu0 %v1596
        %1729 = vmatprep.subr.mxu0 0.0
        %1730 = vmatpush1.msra.mxu0 %v1595
        %1731 = vmatprep.subr.mxu0 0.0
        %1732 = vmatpush1.msra.mxu0 %v1594
        %1733 = vmatprep.subr.mxu0 0.0
        %1734 = vmatpush1.msra.mxu0 %v1593
        %1735 = vmatprep.subr.mxu0 0.0
        %1736 = vmatpush1.msra.mxu0 %v1592
        %1737 = vmatprep.subr.mxu0 0.0
        %1738 = vmatpush1.msra.mxu0 %v1591
        %1739 = vmatprep.subr.mxu0 0.0
        %1740 = vmatpush1.msra.mxu0 %v1590
        %1741 = vmatprep.subr.mxu0 0.0
        %1742 = vmatpush1.msra.mxu0 %v1589
        %1743 = vmatprep.subr.mxu0 0.0
        %1744 = vmatpush1.msra.mxu0 %v1588
        %1745 = vmatprep.subr.mxu0 0.0
        %1746 = vmatpush1.msra.mxu0 %v1587
        %1747 = vmatprep.subr.mxu0 0.0
        %1748 = vmatpush1.msra.mxu0 %v1586
        %1749 = vmatprep.subr.mxu0 0.0
        %1750 = vmatpush1.msra.mxu0 %v1585
        %1751 = vmatprep.subr.mxu0 0.0
        %1752 = vmatpush1.msra.mxu0 %v1584
        %1753 = vmatprep.subr.mxu0 0.0
        %1754 = vmatpush2.msra.mxu0 %v1615
        %1755 = vmatprep.subr.mxu0 0.0
        %1756 = vmatpush2.msra.mxu0 %v1614
        %1757 = vmatprep.subr.mxu0 0.0
        %1758 = vmatpush2.msra.mxu0 %v1613
        %1759 = vmatprep.subr.mxu0 0.0
        %1760 = vmatpush2.msra.mxu0 %v1612
        %1761 = vmatprep.subr.mxu0 0.0
        %1762 = vmatpush2.msra.mxu0 %v1611
        %1763 = vmatprep.subr.mxu0 0.0
        %1764 = vmatpush2.msra.mxu0 %v1610
        %1765 = vmatprep.subr.mxu0 0.0
        %1766 = vmatpush2.msra.mxu0 %v1609
        %1767 = vmatprep.subr.mxu0 0.0
        %1768 = vmatpush2.msra.mxu0 %v1608
        %1769 = vmatprep.subr.mxu0 0.0
        %1770 = vmatpush2.msra.mxu0 %v1607
        %1771 = vmatprep.subr.mxu0 0.0
        %1772 = vmatpush2.msra.mxu0 %v1606
        %1773 = vmatprep.subr.mxu0 0.0
        %1774 = vmatpush2.msra.mxu0 %v1605
        %1775 = vmatprep.subr.mxu0 0.0
        %1776 = vmatpush2.msra.mxu0 %v1604
        %1777 = vmatprep.subr.mxu0 0.0
        %1778 = vmatpush2.msra.mxu0 %v1603
        %1779 = vmatprep.subr.mxu0 0.0
        %1780 = vmatpush2.msra.mxu0 %v1602
        %1781 = vmatprep.subr.mxu0 0.0
        %1782 = vmatpush2.msra.mxu0 %v1601
        %1783 = vmatprep.subr.mxu0 0.0
        %1784 = vmatpush2.msra.mxu0 %v1600
        %1785 = vmatprep.mubr.f32.mxu0 %v1523
        %1786 = vmatmul.mubr.f32.gmra.mxu0 %v1522
        %v1787 = vpop.f32.mrf.mxu0
        %v1788 = vadd.f32 %v1683, %v1787
        %v1789 = vpop.f32.mrf.mxu0
        %1790 = vmatprep.mubr.f32.mxu0 %v1527
        %1791 = vmatmul.mubr.f32.gmra.mxu0 %v1526
        %v1792 = vpop.f32.mrf.mxu0
        %v1793 = vadd.f32 %v1688, %v1792
        %v1794 = vpop.f32.mrf.mxu0
        %1795 = vmatprep.mubr.f32.mxu0 %v1531
        %1796 = vmatmul.mubr.f32.gmra.mxu0 %v1530
        %v1797 = vpop.f32.mrf.mxu0
        %v1798 = vadd.f32 %v1693, %v1797
        %v1799 = vpop.f32.mrf.mxu0
        %1800 = vmatprep.mubr.f32.mxu0 %v1535
        %1801 = vmatmul.mubr.f32.gmra.mxu0 %v1534
        %v1802 = vpop.f32.mrf.mxu0
        %v1803 = vadd.f32 %v1698, %v1802
        %v1804 = vpop.f32.mrf.mxu0
        %1805 = vmatprep.mubr.f32.mxu0 %v1539
        %1806 = vmatmul.mubr.f32.gmra.mxu0 %v1538
        %v1807 = vpop.f32.mrf.mxu0
        %v1808 = vadd.f32 %v1703, %v1807
        %v1809 = vpop.f32.mrf.mxu0
        %1810 = vmatprep.mubr.f32.mxu0 %v1543
        %1811 = vmatmul.mubr.f32.gmra.mxu0 %v1542
        %v1812 = vpop.f32.mrf.mxu0
        %v1813 = vadd.f32 %v1708, %v1812
        %v1814 = vpop.f32.mrf.mxu0
        %1815 = vmatprep.mubr.f32.mxu0 %v1547
        %1816 = vmatmul.mubr.f32.gmra.mxu0 %v1546
        %v1817 = vpop.f32.mrf.mxu0
        %v1818 = vadd.f32 %v1713, %v1817
        %v1819 = vpop.f32.mrf.mxu0
        %1820 = vmatprep.mubr.f32.mxu0 %v1551
        %1821 = vmatmul.mubr.f32.gmra.mxu0 %v1550
        %v1822 = vpop.f32.mrf.mxu0
        %v1823 = vadd.f32 %v1718, %v1822
        %v1824 = vpop.f32.mrf.mxu0
        %1825 = vdwg.mxu0
        %v1826 = vmax.f32 %v1520, %v1522
        %v1827 = vmax.f32 %v1521, %v1523
        %v1828 = vmax.f32 %v1524, %v1526
        %v1829 = vmax.f32 %v1525, %v1527
        %v1830 = vmax.f32 %v1528, %v1530
        %v1831 = vmax.f32 %v1529, %v1531
        %v1832 = vmax.f32 %v1532, %v1534
        %v1833 = vmax.f32 %v1533, %v1535
        %v1834 = vmax.f32 %v1536, %v1538
        %v1835 = vmax.f32 %v1537, %v1539
        %v1836 = vmax.f32 %v1540, %v1542
        %v1837 = vmax.f32 %v1541, %v1543
        %v1838 = vmax.f32 %v1544, %v1546
        %v1839 = vmax.f32 %v1545, %v1547
        %v1840 = vmax.f32 %v1548, %v1550
        %v1841 = vmax.f32 %v1549, %v1551
        %v1842 = vmax.f32 %v1826, %v1827
        %v1843 = vmax.f32 %v1828, %v1829
        %v1844 = vmax.f32 %v1830, %v1831
        %v1845 = vmax.f32 %v1832, %v1833
        %v1846 = vmax.f32 %v1834, %v1835
        %v1847 = vmax.f32 %v1836, %v1837
        %v1848 = vmax.f32 %v1838, %v1839
        %v1849 = vmax.f32 %v1840, %v1841
        %1858 = vrot.lane.b32.xlu0 %v1842, 64
        %v1859 = vpop.permute.xlu0 %1858
        %1860 = vrot.lane.b32.xlu0 %v1843, 64
        %v1861 = vpop.permute.xlu0 %1860
        %1862 = vrot.lane.b32.xlu0 %v1844, 64
        %v1863 = vpop.permute.xlu0 %1862
        %1864 = vrot.lane.b32.xlu0 %v1845, 64
        %v1865 = vpop.permute.xlu0 %1864
        %1866 = vrot.lane.b32.xlu0 %v1846, 64
        %v1867 = vpop.permute.xlu0 %1866
        %1868 = vrot.lane.b32.xlu0 %v1847, 64
        %v1869 = vpop.permute.xlu0 %1868
        %1870 = vrot.lane.b32.xlu0 %v1848, 64
        %v1871 = vpop.permute.xlu0 %1870
        %1872 = vrot.lane.b32.xlu0 %v1849, 64
        %v1873 = vpop.permute.xlu0 %1872
        %v1882 = vmax.f32 %v1842, %v1859
        %v1883 = vmax.f32 %v1843, %v1861
        %v1884 = vmax.f32 %v1844, %v1863
        %v1885 = vmax.f32 %v1845, %v1865
        %v1886 = vmax.f32 %v1846, %v1867
        %v1887 = vmax.f32 %v1847, %v1869
        %v1888 = vmax.f32 %v1848, %v1871
        %v1889 = vmax.f32 %v1849, %v1873
        %1898 = vrot.lane.b32.xlu0 %v1882, 96
        %v1899 = vpop.permute.xlu0 %1898
        %1900 = vrot.lane.b32.xlu0 %v1883, 96
        %v1901 = vpop.permute.xlu0 %1900
        %1902 = vrot.lane.b32.xlu0 %v1884, 96
        %v1903 = vpop.permute.xlu0 %1902
        %1904 = vrot.lane.b32.xlu0 %v1885, 96
        %v1905 = vpop.permute.xlu0 %1904
        %1906 = vrot.lane.b32.xlu0 %v1886, 96
        %v1907 = vpop.permute.xlu0 %1906
        %1908 = vrot.lane.b32.xlu0 %v1887, 96
        %v1909 = vpop.permute.xlu0 %1908
        %1910 = vrot.lane.b32.xlu0 %v1888, 96
        %v1911 = vpop.permute.xlu0 %1910
        %1912 = vrot.lane.b32.xlu0 %v1889, 96
        %v1913 = vpop.permute.xlu0 %1912
        %v1922 = vmax.f32 %v1882, %v1899
        %v1923 = vmax.f32 %v1883, %v1901
        %v1924 = vmax.f32 %v1884, %v1903
        %v1925 = vmax.f32 %v1885, %v1905
        %v1926 = vmax.f32 %v1886, %v1907
        %v1927 = vmax.f32 %v1887, %v1909
        %v1928 = vmax.f32 %v1888, %v1911
        %v1929 = vmax.f32 %v1889, %v1913
        %1938 = vrot.lane.b32.xlu0 %v1922, 112
        %v1939 = vpop.permute.xlu0 %1938
        %1940 = vrot.lane.b32.xlu0 %v1923, 112
        %v1941 = vpop.permute.xlu0 %1940
        %1942 = vrot.lane.b32.xlu0 %v1924, 112
        %v1943 = vpop.permute.xlu0 %1942
        %1944 = vrot.lane.b32.xlu0 %v1925, 112
        %v1945 = vpop.permute.xlu0 %1944
        %1946 = vrot.lane.b32.xlu0 %v1926, 112
        %v1947 = vpop.permute.xlu0 %1946
        %1948 = vrot.lane.b32.xlu0 %v1927, 112
        %v1949 = vpop.permute.xlu0 %1948
        %1950 = vrot.lane.b32.xlu0 %v1928, 112
        %v1951 = vpop.permute.xlu0 %1950
        %1952 = vrot.lane.b32.xlu0 %v1929, 112
        %v1953 = vpop.permute.xlu0 %1952
        %v1962 = vmax.f32 %v1922, %v1939
        %v1963 = vmax.f32 %v1923, %v1941
        %v1964 = vmax.f32 %v1924, %v1943
        %v1965 = vmax.f32 %v1925, %v1945
        %v1966 = vmax.f32 %v1926, %v1947
        %v1967 = vmax.f32 %v1927, %v1949
        %v1968 = vmax.f32 %v1928, %v1951
        %v1969 = vmax.f32 %v1929, %v1953
        %v1972 = vrot.slane %v1788, 5
        %v1973 = vrot.slane %v1793, 5
        %v1974 = vsel %vm579, %v1972, %v1973
        %1975 = vrot.lane.b32.xlu0 %v1972, 3
        %v1976 = vpop.permute.xlu0 %1975
        %1977 = vrot.lane.b32.xlu0 %v1974, 3
        %v1978 = vpop.permute.xlu0 %1977
        %1979 = vrot.lane.b32.xlu0 %v1973, 3
        %v1980 = vpop.permute.xlu0 %1979
        %vm1984 = vcmask 154651
        %1985 = vst.msk [vmem:[#allocation2] sm:$0xf8] %vm1984, %v1976
        %vm1986 = vcmask 154648
        %1987 = vst.msk [vmem:[#allocation2 + $0x10] sm:$0xff] %vm1986, %v1978
        %vm1988 = vcmask 149528
        %1989 = vst.msk [vmem:[#allocation2 + $0x20] sm:$0x7] %vm1988, %v1980
        %v1992 = vrot.slane %v1962, 5
        %v1993 = vrot.slane %v1963, 5
        %v1994 = vsel %vm579, %v1992, %v1993
        %1995 = vrot.lane.b32.xlu0 %v1992, 25
        %v1996 = vpop.permute.xlu0 %1995
        %1997 = vrot.lane.b32.xlu0 %v1994, 25
        %v1998 = vpop.permute.xlu0 %1997
        %1999 = vrot.lane.b32.xlu0 %v1993, 25
        %v2000 = vpop.permute.xlu0 %1999
        %vm2004 = vcmask 335051
        %2005 = vst.msk [vmem:[#allocation2] sm:$0xf8] %vm2004, %v1996
        %vm2006 = vcmask 335048
        %2007 = vst.msk [vmem:[#allocation2 + $0x10] sm:$0xff] %vm2006, %v1998
        %vm2008 = vcmask 329928
        %2009 = vst.msk [vmem:[#allocation2 + $0x20] sm:$0x7] %vm2008, %v2000
        %v2012 = vrot.slane %v1798, 5
        %v2013 = vrot.slane %v1803, 5
        %v2014 = vsel %vm579, %v2012, %v2013
        %2015 = vrot.lane.b32.xlu0 %v2012, 47
        %v2016 = vpop.permute.xlu0 %2015
        %2017 = vrot.lane.b32.xlu0 %v2014, 47
        %v2018 = vpop.permute.xlu0 %2017
        %2019 = vrot.lane.b32.xlu0 %v2013, 47
        %v2020 = vpop.permute.xlu0 %2019
        %vm2024 = vcmask 515451
        %2025 = vst.msk [vmem:[#allocation2] sm:$0xf8] %vm2024, %v2016
        %vm2026 = vcmask 515448
        %2027 = vst.msk [vmem:[#allocation2 + $0x10] sm:$0xff] %vm2026, %v2018
        %vm2028 = vcmask 510328
        %2029 = vst.msk [vmem:[#allocation2 + $0x20] sm:$0x7] %vm2028, %v2020
        %v2032 = vrot.slane %v1964, 5
        %v2033 = vrot.slane %v1965, 5
        %v2034 = vsel %vm579, %v2032, %v2033
        %2035 = vrot.lane.b32.xlu0 %v2032, 69
        %v2036 = vpop.permute.xlu0 %2035
        %2037 = vrot.lane.b32.xlu0 %v2034, 69
        %v2038 = vpop.permute.xlu0 %2037
        %2039 = vrot.lane.b32.xlu0 %v2033, 69
        %v2040 = vpop.permute.xlu0 %2039
        %vm2044 = vcmask 695851
        %2045 = vst.msk [vmem:[#allocation2] sm:$0xf8] %vm2044, %v2036
        %vm2046 = vcmask 695848
        %2047 = vst.msk [vmem:[#allocation2 + $0x10] sm:$0xff] %vm2046, %v2038
        %vm2048 = vcmask 690728
        %2049 = vst.msk [vmem:[#allocation2 + $0x20] sm:$0x7] %vm2048, %v2040
        %v2052 = vrot.slane %v1808, 5
        %v2053 = vrot.slane %v1813, 5
        %v2054 = vsel %vm579, %v2052, %v2053
        %2055 = vrot.lane.b32.xlu0 %v2052, 91
        %v2056 = vpop.permute.xlu0 %2055
        %2057 = vrot.lane.b32.xlu0 %v2054, 91
        %v2058 = vpop.permute.xlu0 %2057
        %2059 = vrot.lane.b32.xlu0 %v2053, 91
        %v2060 = vpop.permute.xlu0 %2059
        %vm2064 = vcmask 876251
        %2065 = vst.msk [vmem:[#allocation2] sm:$0xf8] %vm2064, %v2056
        %vm2066 = vcmask 876248
        %2067 = vst.msk [vmem:[#allocation2 + $0x10] sm:$0xff] %vm2066, %v2058
        %vm2068 = vcmask 871128
        %2069 = vst.msk [vmem:[#allocation2 + $0x20] sm:$0x7] %vm2068, %v2060
        %v2072 = vrot.slane %v1966, 5
        %v2073 = vrot.slane %v1967, 5
        %v2074 = vsel %vm579, %v2072, %v2073
        %2075 = vrot.lane.b32.xlu0 %v2072, 113
        %v2076 = vpop.permute.xlu0 %2075
        %2077 = vrot.lane.b32.xlu0 %v2074, 113
        %v2078 = vpop.permute.xlu0 %2077
        %2079 = vrot.lane.b32.xlu0 %v2073, 113
        %v2080 = vpop.permute.xlu0 %2079
        %vm2084 = vcmask 1048459
        %2085 = vst.msk [vmem:[#allocation2] sm:$0xf8] %vm2084, %v2076
        %vm2086 = vcmask 7171
        %2087 = vst.msk [vmem:[#allocation2 + $0x8] sm:$0xf8] %vm2086, %v2076
        %vm2088 = vcmask 1048456
        %2089 = vst.msk [vmem:[#allocation2 + $0x10] sm:$0xff] %vm2088, %v2078
        %vm2090 = vcmask 7168
        %2091 = vst.msk [vmem:[#allocation2 + $0x18] sm:$0xff] %vm2090, %v2078
        %vm2092 = vcmask 1043336
        %2093 = vst.msk [vmem:[#allocation2 + $0x20] sm:$0x7] %vm2092, %v2080
        %vm2094 = vcmask 2048
        %2095 = vst.msk [vmem:[#allocation2 + $0x28] sm:$0x7] %vm2094, %v2080
        %v2098 = vrot.slane %v1818, 5
        %v2099 = vrot.slane %v1823, 5
        %v2100 = vsel %vm579, %v2098, %v2099
        %2101 = vrot.lane.b32.xlu0 %v2098, 7
        %v2102 = vpop.permute.xlu0 %2101
        %2103 = vrot.lane.b32.xlu0 %v2100, 7
        %v2104 = vpop.permute.xlu0 %2103
        %2105 = vrot.lane.b32.xlu0 %v2099, 7
        %v2106 = vpop.permute.xlu0 %2105
        %vm2110 = vcmask 187451
        %2111 = vst.msk [vmem:[#allocation2 + $0x8] sm:$0xf8] %vm2110, %v2102
        %vm2112 = vcmask 187448
        %2113 = vst.msk [vmem:[#allocation2 + $0x18] sm:$0xff] %vm2112, %v2104
        %vm2114 = vcmask 182328
        %2115 = vst.msk [vmem:[#allocation2 + $0x28] sm:$0x7] %vm2114, %v2106
        %v2118 = vrot.slane %v1968, 5
        %v2119 = vrot.slane %v1969, 5
        %v2120 = vsel %vm579, %v2118, %v2119
        %2121 = vrot.lane.b32.xlu0 %v2118, 29
        %v2122 = vpop.permute.xlu0 %2121
        %2123 = vrot.lane.b32.xlu0 %v2120, 29
        %v2124 = vpop.permute.xlu0 %2123
        %2125 = vrot.lane.b32.xlu0 %v2119, 29
        %v2126 = vpop.permute.xlu0 %2125
        %vm2130 = vcmask 367851
        %2131 = vst.msk [vmem:[#allocation2 + $0x8] sm:$0xf8] %vm2130, %v2122
        %vm2132 = vcmask 367848
        %2133 = vst.msk [vmem:[#allocation2 + $0x18] sm:$0xff] %vm2132, %v2124
        %vm2134 = vcmask 362728
        %2135 = vst.msk [vmem:[#allocation2 + $0x28] sm:$0x7] %vm2134, %v2126
        %v2136 = vld [vmem:[#allocation2] sm:$0xff]
        %v2137 = vld [vmem:[#allocation2 + $0x8] sm:$0xff]
        %v2138 = vld [vmem:[#allocation2 + $0x10] sm:$0xff]
        %v2139 = vld [vmem:[#allocation2 + $0x18] sm:$0xff]
        %v2140 = vld [vmem:[#allocation2 + $0x20] sm:$0x3f]
        %v2141 = vld [vmem:[#allocation2 + $0x28] sm:$0x3f]
        %2142 = vst [vmem:[#allocation3] sm:$0xff] %v2136
        %vm2143 = vcmask 343040
        %2144 = vst.msk [vmem:[#allocation3 + $0x8] sm:$0xff] %vm2143, %v2137
        %2145 = vst [vmem:[#allocation3 + $0x10] sm:$0xff] %v2138
        %2146 = vst.msk [vmem:[#allocation3 + $0x18] sm:$0xff] %vm2143, %v2139
        %2147 = vst [vmem:[#allocation3 + $0x20] sm:$0x3f] %v2140
        %vm2148 = vcmask 340992
        %2149 = vst.msk [vmem:[#allocation3 + $0x28] sm:$0x3f] %vm2148, %v2141
        %v2150 = vld [vmem:[#allocation2] sm:$0xff]
        %v2151 = vld [vmem:[#allocation2 + $0x8] sm:$0xff]
        %v2152 = vld [vmem:[#allocation2 + $0x10] sm:$0xff]
        %v2153 = vld [vmem:[#allocation2 + $0x18] sm:$0xff]
        %v2154 = vld [vmem:[#allocation2 + $0x20] sm:$0x3f]
        %v2155 = vld [vmem:[#allocation2 + $0x28] sm:$0x3f]
        %2162 = vrot.lane.b32.xlu0 %v2150, 127
        %v2163 = vpop.permute.xlu0 %2162
        %2164 = vrot.lane.b32.xlu0 %v2151, 127
        %v2165 = vpop.permute.xlu0 %2164
        %2166 = vrot.lane.b32.xlu0 %v2152, 127
        %v2167 = vpop.permute.xlu0 %2166
        %2168 = vrot.lane.b32.xlu0 %v2153, 127
        %v2169 = vpop.permute.xlu0 %2168
        %2170 = vrot.lane.b32.xlu0 %v2154, 127
        %v2171 = vpop.permute.xlu0 %2170
        %2172 = vrot.lane.b32.xlu0 %v2155, 127
        %v2173 = vpop.permute.xlu0 %2172
        %v2174 = vsel %vm608, %v2163, %v2165
        %v2175 = vsel %vm608, %v2167, %v2169
        %v2176 = vsel %vm608, %v2171, %v2173
        %s2183 = scalar_lea.vmem [#allocation3], 48
        %2184 = vst [vmem:[%s2183] sm:$0xff] %v2174
        %2185 = vst.msk [vmem:[%s2183 + $0x8] sm:$0xff] %vm2143, %v2165
        %2186 = vst [vmem:[%s2183 + $0x10] sm:$0xff] %v2175
        %2187 = vst.msk [vmem:[%s2183 + $0x18] sm:$0xff] %vm2143, %v2169
        %2188 = vst [vmem:[%s2183 + $0x20] sm:$0x3f] %v2176
        %2189 = vst.msk [vmem:[%s2183 + $0x28] sm:$0x3f] %vm2148, %v2173
        %v2190 = vld [vmem:[#allocation2] sm:$0xff]
        %v2191 = vld [vmem:[#allocation2 + $0x8] sm:$0xff]
        %v2192 = vld [vmem:[#allocation2 + $0x10] sm:$0xff]
        %v2193 = vld [vmem:[#allocation2 + $0x18] sm:$0xff]
        %v2194 = vld [vmem:[#allocation2 + $0x20] sm:$0x3f]
        %v2195 = vld [vmem:[#allocation2 + $0x28] sm:$0x3f]
        %2202 = vrot.lane.b32.xlu0 %v2190, 126
        %v2203 = vpop.permute.xlu0 %2202
        %2204 = vrot.lane.b32.xlu0 %v2191, 126
        %v2205 = vpop.permute.xlu0 %2204
        %2206 = vrot.lane.b32.xlu0 %v2192, 126
        %v2207 = vpop.permute.xlu0 %2206
        %2208 = vrot.lane.b32.xlu0 %v2193, 126
        %v2209 = vpop.permute.xlu0 %2208
        %2210 = vrot.lane.b32.xlu0 %v2194, 126
        %v2211 = vpop.permute.xlu0 %2210
        %2212 = vrot.lane.b32.xlu0 %v2195, 126
        %v2213 = vpop.permute.xlu0 %2212
        %v2214 = vsel %vm634, %v2203, %v2205
        %v2215 = vsel %vm634, %v2207, %v2209
        %v2216 = vsel %vm634, %v2211, %v2213
        %s2223 = scalar_lea.vmem [#allocation3], 96
        %2224 = vst [vmem:[%s2223] sm:$0xff] %v2214
        %2225 = vst.msk [vmem:[%s2223 + $0x8] sm:$0xff] %vm2143, %v2205
        %2226 = vst [vmem:[%s2223 + $0x10] sm:$0xff] %v2215
        %2227 = vst.msk [vmem:[%s2223 + $0x18] sm:$0xff] %vm2143, %v2209
        %2228 = vst [vmem:[%s2223 + $0x20] sm:$0x3f] %v2216
        %2229 = vst.msk [vmem:[%s2223 + $0x28] sm:$0x3f] %vm2148, %v2213
        %v2230 = vld [vmem:[#allocation2] sm:$0xff]
        %v2231 = vld [vmem:[#allocation2 + $0x8] sm:$0xff]
        %v2232 = vld [vmem:[#allocation2 + $0x10] sm:$0xff]
        %v2233 = vld [vmem:[#allocation2 + $0x18] sm:$0xff]
        %v2234 = vld [vmem:[#allocation2 + $0x20] sm:$0x3f]
        %v2235 = vld [vmem:[#allocation2 + $0x28] sm:$0x3f]
        %2242 = vrot.lane.b32.xlu0 %v2230, 125
        %v2243 = vpop.permute.xlu0 %2242
        %2244 = vrot.lane.b32.xlu0 %v2231, 125
        %v2245 = vpop.permute.xlu0 %2244
        %2246 = vrot.lane.b32.xlu0 %v2232, 125
        %v2247 = vpop.permute.xlu0 %2246
        %2248 = vrot.lane.b32.xlu0 %v2233, 125
        %v2249 = vpop.permute.xlu0 %2248
        %2250 = vrot.lane.b32.xlu0 %v2234, 125
        %v2251 = vpop.permute.xlu0 %2250
        %2252 = vrot.lane.b32.xlu0 %v2235, 125
        %v2253 = vpop.permute.xlu0 %2252
        %vm2254 = vcmask 1022976
        %v2255 = vsel %vm2254, %v2243, %v2245
        %v2256 = vsel %vm2254, %v2247, %v2249
        %v2257 = vsel %vm2254, %v2251, %v2253
        %s2264 = scalar_lea.vmem [#allocation3], 144
        %2265 = vst [vmem:[%s2264] sm:$0xff] %v2255
        %2266 = vst.msk [vmem:[%s2264 + $0x8] sm:$0xff] %vm2143, %v2245
        %2267 = vst [vmem:[%s2264 + $0x10] sm:$0xff] %v2256
        %2268 = vst.msk [vmem:[%s2264 + $0x18] sm:$0xff] %vm2143, %v2249
        %2269 = vst [vmem:[%s2264 + $0x20] sm:$0x3f] %v2257
        %2270 = vst.msk [vmem:[%s2264 + $0x28] sm:$0x3f] %vm2148, %v2253
        %v2271 = vld [vmem:[#allocation2] sm:$0xff]
        %v2272 = vld [vmem:[#allocation2 + $0x8] sm:$0xff]
        %v2273 = vld [vmem:[#allocation2 + $0x10] sm:$0xff]
        %v2274 = vld [vmem:[#allocation2 + $0x18] sm:$0xff]
        %v2275 = vld [vmem:[#allocation2 + $0x20] sm:$0x3f]
        %v2276 = vld [vmem:[#allocation2 + $0x28] sm:$0x3f]
        %2283 = vrot.lane.b32.xlu0 %v2271, 124
        %v2284 = vpop.permute.xlu0 %2283
        %2285 = vrot.lane.b32.xlu0 %v2272, 124
        %v2286 = vpop.permute.xlu0 %2285
        %2287 = vrot.lane.b32.xlu0 %v2273, 124
        %v2288 = vpop.permute.xlu0 %2287
        %2289 = vrot.lane.b32.xlu0 %v2274, 124
        %v2290 = vpop.permute.xlu0 %2289
        %2291 = vrot.lane.b32.xlu0 %v2275, 124
        %v2292 = vpop.permute.xlu0 %2291
        %2293 = vrot.lane.b32.xlu0 %v2276, 124
        %v2294 = vpop.permute.xlu0 %2293
        %v2295 = vsel %vm660, %v2284, %v2286
        %v2296 = vsel %vm660, %v2288, %v2290
        %v2297 = vsel %vm660, %v2292, %v2294
        %s2304 = scalar_lea.vmem [#allocation3], 192
        %2305 = vst [vmem:[%s2304] sm:$0xff] %v2295
        %2306 = vst.msk [vmem:[%s2304 + $0x8] sm:$0xff] %vm2143, %v2286
        %2307 = vst [vmem:[%s2304 + $0x10] sm:$0xff] %v2296
        %2308 = vst.msk [vmem:[%s2304 + $0x18] sm:$0xff] %vm2143, %v2290
        %2309 = vst [vmem:[%s2304 + $0x20] sm:$0x3f] %v2297
        %2310 = vst.msk [vmem:[%s2304 + $0x28] sm:$0x3f] %vm2148, %v2294
        %v2311 = vld [vmem:[#allocation2] sm:$0xff]
        %v2312 = vld [vmem:[#allocation2 + $0x8] sm:$0xff]
        %v2313 = vld [vmem:[#allocation2 + $0x10] sm:$0xff]
        %v2314 = vld [vmem:[#allocation2 + $0x18] sm:$0xff]
        %v2315 = vld [vmem:[#allocation2 + $0x20] sm:$0x3f]
        %v2316 = vld [vmem:[#allocation2 + $0x28] sm:$0x3f]
        %2323 = vrot.lane.b32.xlu0 %v2311, 123
        %v2324 = vpop.permute.xlu0 %2323
        %2325 = vrot.lane.b32.xlu0 %v2312, 123
        %v2326 = vpop.permute.xlu0 %2325
        %2327 = vrot.lane.b32.xlu0 %v2313, 123
        %v2328 = vpop.permute.xlu0 %2327
        %2329 = vrot.lane.b32.xlu0 %v2314, 123
        %v2330 = vpop.permute.xlu0 %2329
        %2331 = vrot.lane.b32.xlu0 %v2315, 123
        %v2332 = vpop.permute.xlu0 %2331
        %2333 = vrot.lane.b32.xlu0 %v2316, 123
        %v2334 = vpop.permute.xlu0 %2333
        %vm2335 = vcmask 1006592
        %v2336 = vsel %vm2335, %v2324, %v2326
        %v2337 = vsel %vm2335, %v2328, %v2330
        %v2338 = vsel %vm2335, %v2332, %v2334
        %s2345 = scalar_lea.vmem [#allocation3], 240
        %2346 = vst [vmem:[%s2345] sm:$0xff] %v2336
        %2347 = vst.msk [vmem:[%s2345 + $0x8] sm:$0xff] %vm2143, %v2326
        %2348 = vst [vmem:[%s2345 + $0x10] sm:$0xff] %v2337
        %2349 = vst.msk [vmem:[%s2345 + $0x18] sm:$0xff] %vm2143, %v2330
        %2350 = vst [vmem:[%s2345 + $0x20] sm:$0x3f] %v2338
        %2351 = vst.msk [vmem:[%s2345 + $0x28] sm:$0x3f] %vm2148, %v2334
        %v2352 = vld [vmem:[#allocation2] sm:$0xff]
        %v2353 = vld [vmem:[#allocation2 + $0x8] sm:$0xff]
        %v2354 = vld [vmem:[#allocation2 + $0x10] sm:$0xff]
        %v2355 = vld [vmem:[#allocation2 + $0x18] sm:$0xff]
        %v2356 = vld [vmem:[#allocation2 + $0x20] sm:$0x3f]
        %v2357 = vld [vmem:[#allocation2 + $0x28] sm:$0x3f]
        %2364 = vrot.lane.b32.xlu0 %v2352, 122
        %v2365 = vpop.permute.xlu0 %2364
        %2366 = vrot.lane.b32.xlu0 %v2353, 122
        %v2367 = vpop.permute.xlu0 %2366
        %2368 = vrot.lane.b32.xlu0 %v2354, 122
        %v2369 = vpop.permute.xlu0 %2368
        %2370 = vrot.lane.b32.xlu0 %v2355, 122
        %v2371 = vpop.permute.xlu0 %2370
        %2372 = vrot.lane.b32.xlu0 %v2356, 122
        %v2373 = vpop.permute.xlu0 %2372
        %2374 = vrot.lane.b32.xlu0 %v2357, 122
        %v2375 = vpop.permute.xlu0 %2374
        %vm2376 = vcmask 998400
        %v2377 = vsel %vm2376, %v2365, %v2367
        %v2378 = vsel %vm2376, %v2369, %v2371
        %v2379 = vsel %vm2376, %v2373, %v2375
        %s2386 = scalar_lea.vmem [#allocation3], 288
        %2387 = vst [vmem:[%s2386] sm:$0xff] %v2377
        %2388 = vst.msk [vmem:[%s2386 + $0x8] sm:$0xff] %vm2143, %v2367
        %2389 = vst [vmem:[%s2386 + $0x10] sm:$0xff] %v2378
        %2390 = vst.msk [vmem:[%s2386 + $0x18] sm:$0xff] %vm2143, %v2371
        %2391 = vst [vmem:[%s2386 + $0x20] sm:$0x3f] %v2379
        %2392 = vst.msk [vmem:[%s2386 + $0x28] sm:$0x3f] %vm2148, %v2375
        %v2393 = vld [vmem:[#allocation3] sm:$0xff]
        %v2394 = vld [vmem:[#allocation3 + $0x8] sm:$0xff]
        %v2395 = vld [vmem:[#allocation3 + $0x10] sm:$0xff]
        %v2396 = vld [vmem:[#allocation3 + $0x18] sm:$0xff]
        %v2397 = vld [vmem:[%s7] ss:$8 sm:$0x3]
        %v2399 = vlaneseq
        %v2400 = vshrl.u32 %v2399, 7
        %v2401 = vsub.s32 0, %v2400
        %v2402 = vrot.slane %v2397, %v2401
        %v2403 = vlaneseq
        %v2404 = vshrl.u32 %v2403, 7
        %v2405 = vsub.s32 1, %v2404
        %v2406 = vrot.slane %v2397, %v2405
        %v2409 = vmul.f32 %v2393, %v2402
        %v2410 = vmul.f32 %v2394, %v2406
        %v2411 = vmul.f32 %v2395, %v2402
        %v2412 = vmul.f32 %v2396, %v2406
        %v2413 = vadd.f32 %v2409, 0.0
        %v2414 = vadd.f32 %v2410, 0.0
        %v2415 = vadd.f32 %v2411, 0.0
        %v2416 = vadd.f32 %v2412, 0.0
        %v2417 = vld [vmem:[%s2183] sm:$0xff]
        %v2418 = vld [vmem:[%s2183 + $0x8] sm:$0xff]
        %v2419 = vld [vmem:[%s2183 + $0x10] sm:$0xff]
        %v2420 = vld [vmem:[%s2183 + $0x18] sm:$0xff]
        %s2421 = scalar_lea.vmem %s7, 1
        %v2422 = vld [vmem:[%s2421] ss:$8 sm:$0x3]
        %v2424 = vlaneseq
        %v2425 = vshrl.u32 %v2424, 7
        %v2426 = vsub.s32 0, %v2425
        %v2427 = vrot.slane %v2422, %v2426
        %v2428 = vlaneseq
        %v2429 = vshrl.u32 %v2428, 7
        %v2430 = vsub.s32 1, %v2429
        %v2431 = vrot.slane %v2422, %v2430
        %v2434 = vmul.f32 %v2417, %v2427
        %v2435 = vmul.f32 %v2418, %v2431
        %v2436 = vmul.f32 %v2419, %v2427
        %v2437 = vmul.f32 %v2420, %v2431
        %v2438 = vadd.f32 %v2434, 0.0
        %v2439 = vadd.f32 %v2435, 0.0
        %v2440 = vadd.f32 %v2436, 0.0
        %v2441 = vadd.f32 %v2437, 0.0
        %v2442 = vld [vmem:[%s2223] sm:$0xff]
        %v2443 = vld [vmem:[%s2223 + $0x8] sm:$0xff]
        %v2444 = vld [vmem:[%s2223 + $0x10] sm:$0xff]
        %v2445 = vld [vmem:[%s2223 + $0x18] sm:$0xff]
        %s2446 = scalar_lea.vmem %s7, 2
        %v2447 = vld [vmem:[%s2446] ss:$8 sm:$0x3]
        %v2449 = vlaneseq
        %v2450 = vshrl.u32 %v2449, 7
        %v2451 = vsub.s32 0, %v2450
        %v2452 = vrot.slane %v2447, %v2451
        %v2453 = vlaneseq
        %v2454 = vshrl.u32 %v2453, 7
        %v2455 = vsub.s32 1, %v2454
        %v2456 = vrot.slane %v2447, %v2455
        %v2459 = vmul.f32 %v2442, %v2452
        %v2460 = vmul.f32 %v2443, %v2456
        %v2461 = vmul.f32 %v2444, %v2452
        %v2462 = vmul.f32 %v2445, %v2456
        %v2463 = vadd.f32 %v2459, 0.0
        %v2464 = vadd.f32 %v2460, 0.0
        %v2465 = vadd.f32 %v2461, 0.0
        %v2466 = vadd.f32 %v2462, 0.0
        %v2467 = vld [vmem:[%s2264] sm:$0xff]
        %v2468 = vld [vmem:[%s2264 + $0x8] sm:$0xff]
        %v2469 = vld [vmem:[%s2264 + $0x10] sm:$0xff]
        %v2470 = vld [vmem:[%s2264 + $0x18] sm:$0xff]
        %s2471 = scalar_lea.vmem %s7, 3
        %v2472 = vld [vmem:[%s2471] ss:$8 sm:$0x3]
        %v2474 = vlaneseq
        %v2475 = vshrl.u32 %v2474, 7
        %v2476 = vsub.s32 0, %v2475
        %v2477 = vrot.slane %v2472, %v2476
        %v2478 = vlaneseq
        %v2479 = vshrl.u32 %v2478, 7
        %v2480 = vsub.s32 1, %v2479
        %v2481 = vrot.slane %v2472, %v2480
        %v2484 = vmul.f32 %v2467, %v2477
        %v2485 = vmul.f32 %v2468, %v2481
        %v2486 = vmul.f32 %v2469, %v2477
        %v2487 = vmul.f32 %v2470, %v2481
        %v2488 = vadd.f32 %v2484, 0.0
        %v2489 = vadd.f32 %v2485, 0.0
        %v2490 = vadd.f32 %v2486, 0.0
        %v2491 = vadd.f32 %v2487, 0.0
        %v2492 = vld [vmem:[%s2304] sm:$0xff]
        %v2493 = vld [vmem:[%s2304 + $0x8] sm:$0xff]
        %v2494 = vld [vmem:[%s2304 + $0x10] sm:$0xff]
        %v2495 = vld [vmem:[%s2304 + $0x18] sm:$0xff]
        %s2496 = scalar_lea.vmem %s7, 4
        %v2497 = vld [vmem:[%s2496] ss:$8 sm:$0x3]
        %v2499 = vlaneseq
        %v2500 = vshrl.u32 %v2499, 7
        %v2501 = vsub.s32 0, %v2500
        %v2502 = vrot.slane %v2497, %v2501
        %v2503 = vlaneseq
        %v2504 = vshrl.u32 %v2503, 7
        %v2505 = vsub.s32 1, %v2504
        %v2506 = vrot.slane %v2497, %v2505
        %v2509 = vmul.f32 %v2492, %v2502
        %v2510 = vmul.f32 %v2493, %v2506
        %v2511 = vmul.f32 %v2494, %v2502
        %v2512 = vmul.f32 %v2495, %v2506
        %v2513 = vadd.f32 %v2413, %v2509
        %v2514 = vadd.f32 %v2414, %v2510
        %v2515 = vadd.f32 %v2415, %v2511
        %v2516 = vadd.f32 %v2416, %v2512
        %v2517 = vld [vmem:[%s2345] sm:$0xff]
        %v2518 = vld [vmem:[%s2345 + $0x8] sm:$0xff]
        %v2519 = vld [vmem:[%s2345 + $0x10] sm:$0xff]
        %v2520 = vld [vmem:[%s2345 + $0x18] sm:$0xff]
        %s2521 = scalar_lea.vmem %s7, 5
        %v2522 = vld [vmem:[%s2521] ss:$8 sm:$0x3]
        %v2524 = vlaneseq
        %v2525 = vshrl.u32 %v2524, 7
        %v2526 = vsub.s32 0, %v2525
        %v2527 = vrot.slane %v2522, %v2526
        %v2528 = vlaneseq
        %v2529 = vshrl.u32 %v2528, 7
        %v2530 = vsub.s32 1, %v2529
        %v2531 = vrot.slane %v2522, %v2530
        %v2534 = vmul.f32 %v2517, %v2527
        %v2535 = vmul.f32 %v2518, %v2531
        %v2536 = vmul.f32 %v2519, %v2527
        %v2537 = vmul.f32 %v2520, %v2531
        %v2538 = vadd.f32 %v2438, %v2534
        %v2539 = vadd.f32 %v2439, %v2535
        %v2540 = vadd.f32 %v2440, %v2536
        %v2541 = vadd.f32 %v2441, %v2537
        %v2542 = vld [vmem:[%s2386] sm:$0xff]
        %v2543 = vld [vmem:[%s2386 + $0x8] sm:$0xff]
        %v2544 = vld [vmem:[%s2386 + $0x10] sm:$0xff]
        %v2545 = vld [vmem:[%s2386 + $0x18] sm:$0xff]
        %s2546 = scalar_lea.vmem %s7, 6
        %v2547 = vld [vmem:[%s2546] ss:$8 sm:$0x3]
        %v2549 = vlaneseq
        %v2550 = vshrl.u32 %v2549, 7
        %v2551 = vsub.s32 0, %v2550
        %v2552 = vrot.slane %v2547, %v2551
        %v2553 = vlaneseq
        %v2554 = vshrl.u32 %v2553, 7
        %v2555 = vsub.s32 1, %v2554
        %v2556 = vrot.slane %v2547, %v2555
        %v2559 = vmul.f32 %v2542, %v2552
        %v2560 = vmul.f32 %v2543, %v2556
        %v2561 = vmul.f32 %v2544, %v2552
        %v2562 = vmul.f32 %v2545, %v2556
        %v2563 = vadd.f32 %v2463, %v2559
        %v2564 = vadd.f32 %v2464, %v2560
        %v2565 = vadd.f32 %v2465, %v2561
        %v2566 = vadd.f32 %v2466, %v2562
        %v2567 = vld [vmem:[#allocation3] sm:$0xfe]
        %v2568 = vld [vmem:[#allocation3 + $0x8] sm:$0xfe]
        %v2569 = vld [vmem:[#allocation3 + $0x20] sm:$0x1]
        %v2570 = vld [vmem:[#allocation3 + $0x28] sm:$0x1]
        %s2571 = scalar_lea.vmem %s7, 7
        %v2572 = vld [vmem:[%s2571] ss:$8 sm:$0x3]
        %v2574 = vlaneseq
        %v2575 = vshrl.u32 %v2574, 7
        %v2576 = vsub.s32 0, %v2575
        %v2577 = vrot.slane %v2572, %v2576
        %v2578 = vlaneseq
        %v2579 = vshrl.u32 %v2578, 7
        %v2580 = vsub.s32 1, %v2579
        %v2581 = vrot.slane %v2572, %v2580
        %v2584 = vmul.f32 %v2567, %v2577
        %v2585 = vmul.f32 %v2568, %v2581
        %v2586 = vmul.f32 %v2395, %v2577
        %v2587 = vmul.f32 %v2396, %v2581
        %v2588 = vmul.f32 %v2569, %v2577
        %v2589 = vmul.f32 %v2570, %v2581
        %vm2596 = vcmask 1046528
        %v2597 = vrot.slane %v2584, 1
        %v2598 = vrot.slane %v2586, 1
        %v2599 = vsel %vm2596, %v2597, %v2598
        %v2600 = vrot.slane %v2585, 1
        %v2601 = vrot.slane %v2587, 1
        %v2602 = vsel %vm2596, %v2600, %v2601
        %v2603 = vrot.slane %v2588, 1
        %v2604 = vsel %vm2596, %v2598, %v2603
        %v2605 = vrot.slane %v2589, 1
        %v2606 = vsel %vm2596, %v2601, %v2605
        %v2611 = vadd.f32 %v2488, %v2599
        %v2612 = vadd.f32 %v2489, %v2602
        %v2613 = vadd.f32 %v2490, %v2604
        %v2614 = vadd.f32 %v2491, %v2606
        %v2615 = vld [vmem:[%s2183] sm:$0xfe]
        %v2616 = vld [vmem:[%s2183 + $0x8] sm:$0xfe]
        %v2617 = vld [vmem:[%s2183 + $0x20] sm:$0x1]
        %v2618 = vld [vmem:[%s2183 + $0x28] sm:$0x1]
        %s2619 = scalar_lea.vmem %s7, 16
        %v2620 = vld [vmem:[%s2619] ss:$8 sm:$0x3]
        %v2622 = vlaneseq
        %v2623 = vshrl.u32 %v2622, 7
        %v2624 = vsub.s32 0, %v2623
        %v2625 = vrot.slane %v2620, %v2624
        %v2626 = vlaneseq
        %v2627 = vshrl.u32 %v2626, 7
        %v2628 = vsub.s32 1, %v2627
        %v2629 = vrot.slane %v2620, %v2628
        %v2632 = vmul.f32 %v2615, %v2625
        %v2633 = vmul.f32 %v2616, %v2629
        %v2634 = vmul.f32 %v2419, %v2625
        %v2635 = vmul.f32 %v2420, %v2629
        %v2636 = vmul.f32 %v2617, %v2625
        %v2637 = vmul.f32 %v2618, %v2629
        %v2644 = vrot.slane %v2632, 1
        %v2645 = vrot.slane %v2634, 1
        %v2646 = vsel %vm2596, %v2644, %v2645
        %v2647 = vrot.slane %v2633, 1
        %v2648 = vrot.slane %v2635, 1
        %v2649 = vsel %vm2596, %v2647, %v2648
        %v2650 = vrot.slane %v2636, 1
        %v2651 = vsel %vm2596, %v2645, %v2650
        %v2652 = vrot.slane %v2637, 1
        %v2653 = vsel %vm2596, %v2648, %v2652
        %v2658 = vadd.f32 %v2513, %v2646
        %v2659 = vadd.f32 %v2514, %v2649
        %v2660 = vadd.f32 %v2515, %v2651
        %v2661 = vadd.f32 %v2516, %v2653
        %v2662 = vld [vmem:[%s2223] sm:$0xfe]
        %v2663 = vld [vmem:[%s2223 + $0x8] sm:$0xfe]
        %v2664 = vld [vmem:[%s2223 + $0x20] sm:$0x1]
        %v2665 = vld [vmem:[%s2223 + $0x28] sm:$0x1]
        %s2666 = scalar_lea.vmem %s7, 17
        %v2667 = vld [vmem:[%s2666] ss:$8 sm:$0x3]
        %v2669 = vlaneseq
        %v2670 = vshrl.u32 %v2669, 7
        %v2671 = vsub.s32 0, %v2670
        %v2672 = vrot.slane %v2667, %v2671
        %v2673 = vlaneseq
        %v2674 = vshrl.u32 %v2673, 7
        %v2675 = vsub.s32 1, %v2674
        %v2676 = vrot.slane %v2667, %v2675
        %v2679 = vmul.f32 %v2662, %v2672
        %v2680 = vmul.f32 %v2663, %v2676
        %v2681 = vmul.f32 %v2444, %v2672
        %v2682 = vmul.f32 %v2445, %v2676
        %v2683 = vmul.f32 %v2664, %v2672
        %v2684 = vmul.f32 %v2665, %v2676
        %v2691 = vrot.slane %v2679, 1
        %v2692 = vrot.slane %v2681, 1
        %v2693 = vsel %vm2596, %v2691, %v2692
        %v2694 = vrot.slane %v2680, 1
        %v2695 = vrot.slane %v2682, 1
        %v2696 = vsel %vm2596, %v2694, %v2695
        %v2697 = vrot.slane %v2683, 1
        %v2698 = vsel %vm2596, %v2692, %v2697
        %v2699 = vrot.slane %v2684, 1
        %v2700 = vsel %vm2596, %v2695, %v2699
        %v2705 = vadd.f32 %v2538, %v2693
        %v2706 = vadd.f32 %v2539, %v2696
        %v2707 = vadd.f32 %v2540, %v2698
        %v2708 = vadd.f32 %v2541, %v2700
        %v2709 = vld [vmem:[%s2264] sm:$0xfe]
        %v2710 = vld [vmem:[%s2264 + $0x8] sm:$0xfe]
        %v2711 = vld [vmem:[%s2264 + $0x20] sm:$0x1]
        %v2712 = vld [vmem:[%s2264 + $0x28] sm:$0x1]
        %s2713 = scalar_lea.vmem %s7, 18
        %v2714 = vld [vmem:[%s2713] ss:$8 sm:$0x3]
        %v2716 = vlaneseq
        %v2717 = vshrl.u32 %v2716, 7
        %v2718 = vsub.s32 0, %v2717
        %v2719 = vrot.slane %v2714, %v2718
        %v2720 = vlaneseq
        %v2721 = vshrl.u32 %v2720, 7
        %v2722 = vsub.s32 1, %v2721
        %v2723 = vrot.slane %v2714, %v2722
        %v2726 = vmul.f32 %v2709, %v2719
        %v2727 = vmul.f32 %v2710, %v2723
        %v2728 = vmul.f32 %v2469, %v2719
        %v2729 = vmul.f32 %v2470, %v2723
        %v2730 = vmul.f32 %v2711, %v2719
        %v2731 = vmul.f32 %v2712, %v2723
        %v2738 = vrot.slane %v2726, 1
        %v2739 = vrot.slane %v2728, 1
        %v2740 = vsel %vm2596, %v2738, %v2739
        %v2741 = vrot.slane %v2727, 1
        %v2742 = vrot.slane %v2729, 1
        %v2743 = vsel %vm2596, %v2741, %v2742
        %v2744 = vrot.slane %v2730, 1
        %v2745 = vsel %vm2596, %v2739, %v2744
        %v2746 = vrot.slane %v2731, 1
        %v2747 = vsel %vm2596, %v2742, %v2746
        %v2752 = vadd.f32 %v2563, %v2740
        %v2753 = vadd.f32 %v2564, %v2743
        %v2754 = vadd.f32 %v2565, %v2745
        %v2755 = vadd.f32 %v2566, %v2747
        %v2756 = vld [vmem:[%s2304] sm:$0xfe]
        %v2757 = vld [vmem:[%s2304 + $0x8] sm:$0xfe]
        %v2758 = vld [vmem:[%s2304 + $0x20] sm:$0x1]
        %v2759 = vld [vmem:[%s2304 + $0x28] sm:$0x1]
        %s2760 = scalar_lea.vmem %s7, 19
        %v2761 = vld [vmem:[%s2760] ss:$8 sm:$0x3]
        %v2763 = vlaneseq
        %v2764 = vshrl.u32 %v2763, 7
        %v2765 = vsub.s32 0, %v2764
        %v2766 = vrot.slane %v2761, %v2765
        %v2767 = vlaneseq
        %v2768 = vshrl.u32 %v2767, 7
        %v2769 = vsub.s32 1, %v2768
        %v2770 = vrot.slane %v2761, %v2769
        %v2773 = vmul.f32 %v2756, %v2766
        %v2774 = vmul.f32 %v2757, %v2770
        %v2775 = vmul.f32 %v2494, %v2766
        %v2776 = vmul.f32 %v2495, %v2770
        %v2777 = vmul.f32 %v2758, %v2766
        %v2778 = vmul.f32 %v2759, %v2770
        %v2785 = vrot.slane %v2773, 1
        %v2786 = vrot.slane %v2775, 1
        %v2787 = vsel %vm2596, %v2785, %v2786
        %v2788 = vrot.slane %v2774, 1
        %v2789 = vrot.slane %v2776, 1
        %v2790 = vsel %vm2596, %v2788, %v2789
        %v2791 = vrot.slane %v2777, 1
        %v2792 = vsel %vm2596, %v2786, %v2791
        %v2793 = vrot.slane %v2778, 1
        %v2794 = vsel %vm2596, %v2789, %v2793
        %v2799 = vadd.f32 %v2611, %v2787
        %v2800 = vadd.f32 %v2612, %v2790
        %v2801 = vadd.f32 %v2613, %v2792
        %v2802 = vadd.f32 %v2614, %v2794
        %v2803 = vld [vmem:[%s2345] sm:$0xfe]
        %v2804 = vld [vmem:[%s2345 + $0x8] sm:$0xfe]
        %v2805 = vld [vmem:[%s2345 + $0x20] sm:$0x1]
        %v2806 = vld [vmem:[%s2345 + $0x28] sm:$0x1]
        %s2807 = scalar_lea.vmem %s7, 20
        %v2808 = vld [vmem:[%s2807] ss:$8 sm:$0x3]
        %v2810 = vlaneseq
        %v2811 = vshrl.u32 %v2810, 7
        %v2812 = vsub.s32 0, %v2811
        %v2813 = vrot.slane %v2808, %v2812
        %v2814 = vlaneseq
        %v2815 = vshrl.u32 %v2814, 7
        %v2816 = vsub.s32 1, %v2815
        %v2817 = vrot.slane %v2808, %v2816
        %v2820 = vmul.f32 %v2803, %v2813
        %v2821 = vmul.f32 %v2804, %v2817
        %v2822 = vmul.f32 %v2519, %v2813
        %v2823 = vmul.f32 %v2520, %v2817
        %v2824 = vmul.f32 %v2805, %v2813
        %v2825 = vmul.f32 %v2806, %v2817
        %v2832 = vrot.slane %v2820, 1
        %v2833 = vrot.slane %v2822, 1
        %v2834 = vsel %vm2596, %v2832, %v2833
        %v2835 = vrot.slane %v2821, 1
        %v2836 = vrot.slane %v2823, 1
        %v2837 = vsel %vm2596, %v2835, %v2836
        %v2838 = vrot.slane %v2824, 1
        %v2839 = vsel %vm2596, %v2833, %v2838
        %v2840 = vrot.slane %v2825, 1
        %v2841 = vsel %vm2596, %v2836, %v2840
        %v2846 = vadd.f32 %v2658, %v2834
        %v2847 = vadd.f32 %v2659, %v2837
        %v2848 = vadd.f32 %v2660, %v2839
        %v2849 = vadd.f32 %v2661, %v2841
        %v2850 = vld [vmem:[%s2386] sm:$0xfe]
        %v2851 = vld [vmem:[%s2386 + $0x8] sm:$0xfe]
        %v2852 = vld [vmem:[%s2386 + $0x20] sm:$0x1]
        %v2853 = vld [vmem:[%s2386 + $0x28] sm:$0x1]
        %s2854 = scalar_lea.vmem %s7, 21
        %v2855 = vld [vmem:[%s2854] ss:$8 sm:$0x3]
        %v2857 = vlaneseq
        %v2858 = vshrl.u32 %v2857, 7
        %v2859 = vsub.s32 0, %v2858
        %v2860 = vrot.slane %v2855, %v2859
        %v2861 = vlaneseq
        %v2862 = vshrl.u32 %v2861, 7
        %v2863 = vsub.s32 1, %v2862
        %v2864 = vrot.slane %v2855, %v2863
        %v2867 = vmul.f32 %v2850, %v2860
        %v2868 = vmul.f32 %v2851, %v2864
        %v2869 = vmul.f32 %v2544, %v2860
        %v2870 = vmul.f32 %v2545, %v2864
        %v2871 = vmul.f32 %v2852, %v2860
        %v2872 = vmul.f32 %v2853, %v2864
        %v2879 = vrot.slane %v2867, 1
        %v2880 = vrot.slane %v2869, 1
        %v2881 = vsel %vm2596, %v2879, %v2880
        %v2882 = vrot.slane %v2868, 1
        %v2883 = vrot.slane %v2870, 1
        %v2884 = vsel %vm2596, %v2882, %v2883
        %v2885 = vrot.slane %v2871, 1
        %v2886 = vsel %vm2596, %v2880, %v2885
        %v2887 = vrot.slane %v2872, 1
        %v2888 = vsel %vm2596, %v2883, %v2887
        %v2893 = vadd.f32 %v2705, %v2881
        %v2894 = vadd.f32 %v2706, %v2884
        %v2895 = vadd.f32 %v2707, %v2886
        %v2896 = vadd.f32 %v2708, %v2888
        %v2897 = vld [vmem:[#allocation3] sm:$0xfc]
        %v2898 = vld [vmem:[#allocation3 + $0x8] sm:$0xfc]
        %v2899 = vld [vmem:[#allocation3 + $0x20] sm:$0x3]
        %v2900 = vld [vmem:[#allocation3 + $0x28] sm:$0x3]
        %s2901 = scalar_lea.vmem %s7, 22
        %v2902 = vld [vmem:[%s2901] ss:$8 sm:$0x3]
        %v2904 = vlaneseq
        %v2905 = vshrl.u32 %v2904, 7
        %v2906 = vsub.s32 0, %v2905
        %v2907 = vrot.slane %v2902, %v2906
        %v2908 = vlaneseq
        %v2909 = vshrl.u32 %v2908, 7
        %v2910 = vsub.s32 1, %v2909
        %v2911 = vrot.slane %v2902, %v2910
        %v2914 = vmul.f32 %v2897, %v2907
        %v2915 = vmul.f32 %v2898, %v2911
        %v2916 = vmul.f32 %v2395, %v2907
        %v2917 = vmul.f32 %v2396, %v2911
        %v2918 = vmul.f32 %v2899, %v2907
        %v2919 = vmul.f32 %v2900, %v2911
        %vm2926 = vcmask 1045504
        %v2927 = vrot.slane %v2914, 2
        %v2928 = vrot.slane %v2916, 2
        %v2929 = vsel %vm2926, %v2927, %v2928
        %v2930 = vrot.slane %v2915, 2
        %v2931 = vrot.slane %v2917, 2
        %v2932 = vsel %vm2926, %v2930, %v2931
        %v2933 = vrot.slane %v2918, 2
        %v2934 = vsel %vm2926, %v2928, %v2933
        %v2935 = vrot.slane %v2919, 2
        %v2936 = vsel %vm2926, %v2931, %v2935
        %v2941 = vadd.f32 %v2752, %v2929
        %v2942 = vadd.f32 %v2753, %v2932
        %v2943 = vadd.f32 %v2754, %v2934
        %v2944 = vadd.f32 %v2755, %v2936
        %v2945 = vld [vmem:[%s2183] sm:$0xfc]
        %v2946 = vld [vmem:[%s2183 + $0x8] sm:$0xfc]
        %v2947 = vld [vmem:[%s2183 + $0x20] sm:$0x3]
        %v2948 = vld [vmem:[%s2183 + $0x28] sm:$0x3]
        %s2949 = scalar_lea.vmem %s7, 23
        %v2950 = vld [vmem:[%s2949] ss:$8 sm:$0x3]
        %v2952 = vlaneseq
        %v2953 = vshrl.u32 %v2952, 7
        %v2954 = vsub.s32 0, %v2953
        %v2955 = vrot.slane %v2950, %v2954
        %v2956 = vlaneseq
        %v2957 = vshrl.u32 %v2956, 7
        %v2958 = vsub.s32 1, %v2957
        %v2959 = vrot.slane %v2950, %v2958
        %v2962 = vmul.f32 %v2945, %v2955
        %v2963 = vmul.f32 %v2946, %v2959
        %v2964 = vmul.f32 %v2419, %v2955
        %v2965 = vmul.f32 %v2420, %v2959
        %v2966 = vmul.f32 %v2947, %v2955
        %v2967 = vmul.f32 %v2948, %v2959
        %v2974 = vrot.slane %v2962, 2
        %v2975 = vrot.slane %v2964, 2
        %v2976 = vsel %vm2926, %v2974, %v2975
        %v2977 = vrot.slane %v2963, 2
        %v2978 = vrot.slane %v2965, 2
        %v2979 = vsel %vm2926, %v2977, %v2978
        %v2980 = vrot.slane %v2966, 2
        %v2981 = vsel %vm2926, %v2975, %v2980
        %v2982 = vrot.slane %v2967, 2
        %v2983 = vsel %vm2926, %v2978, %v2982
        %v2988 = vadd.f32 %v2799, %v2976
        %v2989 = vadd.f32 %v2800, %v2979
        %v2990 = vadd.f32 %v2801, %v2981
        %v2991 = vadd.f32 %v2802, %v2983
        %v2992 = vld [vmem:[%s2223] sm:$0xfc]
        %v2993 = vld [vmem:[%s2223 + $0x8] sm:$0xfc]
        %v2994 = vld [vmem:[%s2223 + $0x20] sm:$0x3]
        %v2995 = vld [vmem:[%s2223 + $0x28] sm:$0x3]
        %s2996 = scalar_lea.vmem %s7, 32
        %v2997 = vld [vmem:[%s2996] ss:$8 sm:$0x3]
        %v2999 = vlaneseq
        %v3000 = vshrl.u32 %v2999, 7
        %v3001 = vsub.s32 0, %v3000
        %v3002 = vrot.slane %v2997, %v3001
        %v3003 = vlaneseq
        %v3004 = vshrl.u32 %v3003, 7
        %v3005 = vsub.s32 1, %v3004
        %v3006 = vrot.slane %v2997, %v3005
        %v3009 = vmul.f32 %v2992, %v3002
        %v3010 = vmul.f32 %v2993, %v3006
        %v3011 = vmul.f32 %v2444, %v3002
        %v3012 = vmul.f32 %v2445, %v3006
        %v3013 = vmul.f32 %v2994, %v3002
        %v3014 = vmul.f32 %v2995, %v3006
        %v3021 = vrot.slane %v3009, 2
        %v3022 = vrot.slane %v3011, 2
        %v3023 = vsel %vm2926, %v3021, %v3022
        %v3024 = vrot.slane %v3010, 2
        %v3025 = vrot.slane %v3012, 2
        %v3026 = vsel %vm2926, %v3024, %v3025
        %v3027 = vrot.slane %v3013, 2
        %v3028 = vsel %vm2926, %v3022, %v3027
        %v3029 = vrot.slane %v3014, 2
        %v3030 = vsel %vm2926, %v3025, %v3029
        %v3035 = vadd.f32 %v2846, %v3023
        %v3036 = vadd.f32 %v2847, %v3026
        %v3037 = vadd.f32 %v2848, %v3028
        %v3038 = vadd.f32 %v2849, %v3030
        %v3039 = vld [vmem:[%s2264] sm:$0xfc]
        %v3040 = vld [vmem:[%s2264 + $0x8] sm:$0xfc]
        %v3041 = vld [vmem:[%s2264 + $0x20] sm:$0x3]
        %v3042 = vld [vmem:[%s2264 + $0x28] sm:$0x3]
        %s3043 = scalar_lea.vmem %s7, 33
        %v3044 = vld [vmem:[%s3043] ss:$8 sm:$0x3]
        %v3046 = vlaneseq
        %v3047 = vshrl.u32 %v3046, 7
        %v3048 = vsub.s32 0, %v3047
        %v3049 = vrot.slane %v3044, %v3048
        %v3050 = vlaneseq
        %v3051 = vshrl.u32 %v3050, 7
        %v3052 = vsub.s32 1, %v3051
        %v3053 = vrot.slane %v3044, %v3052
        %v3056 = vmul.f32 %v3039, %v3049
        %v3057 = vmul.f32 %v3040, %v3053
        %v3058 = vmul.f32 %v2469, %v3049
        %v3059 = vmul.f32 %v2470, %v3053
        %v3060 = vmul.f32 %v3041, %v3049
        %v3061 = vmul.f32 %v3042, %v3053
        %v3068 = vrot.slane %v3056, 2
        %v3069 = vrot.slane %v3058, 2
        %v3070 = vsel %vm2926, %v3068, %v3069
        %v3071 = vrot.slane %v3057, 2
        %v3072 = vrot.slane %v3059, 2
        %v3073 = vsel %vm2926, %v3071, %v3072
        %v3074 = vrot.slane %v3060, 2
        %v3075 = vsel %vm2926, %v3069, %v3074
        %v3076 = vrot.slane %v3061, 2
        %v3077 = vsel %vm2926, %v3072, %v3076
        %v3082 = vadd.f32 %v2893, %v3070
        %v3083 = vadd.f32 %v2894, %v3073
        %v3084 = vadd.f32 %v2895, %v3075
        %v3085 = vadd.f32 %v2896, %v3077
        %v3086 = vld [vmem:[%s2304] sm:$0xfc]
        %v3087 = vld [vmem:[%s2304 + $0x8] sm:$0xfc]
        %v3088 = vld [vmem:[%s2304 + $0x20] sm:$0x3]
        %v3089 = vld [vmem:[%s2304 + $0x28] sm:$0x3]
        %s3090 = scalar_lea.vmem %s7, 34
        %v3091 = vld [vmem:[%s3090] ss:$8 sm:$0x3]
        %v3093 = vlaneseq
        %v3094 = vshrl.u32 %v3093, 7
        %v3095 = vsub.s32 0, %v3094
        %v3096 = vrot.slane %v3091, %v3095
        %v3097 = vlaneseq
        %v3098 = vshrl.u32 %v3097, 7
        %v3099 = vsub.s32 1, %v3098
        %v3100 = vrot.slane %v3091, %v3099
        %v3103 = vmul.f32 %v3086, %v3096
        %v3104 = vmul.f32 %v3087, %v3100
        %v3105 = vmul.f32 %v2494, %v3096
        %v3106 = vmul.f32 %v2495, %v3100
        %v3107 = vmul.f32 %v3088, %v3096
        %v3108 = vmul.f32 %v3089, %v3100
        %v3115 = vrot.slane %v3103, 2
        %v3116 = vrot.slane %v3105, 2
        %v3117 = vsel %vm2926, %v3115, %v3116
        %v3118 = vrot.slane %v3104, 2
        %v3119 = vrot.slane %v3106, 2
        %v3120 = vsel %vm2926, %v3118, %v3119
        %v3121 = vrot.slane %v3107, 2
        %v3122 = vsel %vm2926, %v3116, %v3121
        %v3123 = vrot.slane %v3108, 2
        %v3124 = vsel %vm2926, %v3119, %v3123
        %v3129 = vadd.f32 %v2941, %v3117
        %v3130 = vadd.f32 %v2942, %v3120
        %v3131 = vadd.f32 %v2943, %v3122
        %v3132 = vadd.f32 %v2944, %v3124
        %v3133 = vld [vmem:[%s2345] sm:$0xfc]
        %v3134 = vld [vmem:[%s2345 + $0x8] sm:$0xfc]
        %v3135 = vld [vmem:[%s2345 + $0x20] sm:$0x3]
        %v3136 = vld [vmem:[%s2345 + $0x28] sm:$0x3]
        %s3137 = scalar_lea.vmem %s7, 35
        %v3138 = vld [vmem:[%s3137] ss:$8 sm:$0x3]
        %v3140 = vlaneseq
        %v3141 = vshrl.u32 %v3140, 7
        %v3142 = vsub.s32 0, %v3141
        %v3143 = vrot.slane %v3138, %v3142
        %v3144 = vlaneseq
        %v3145 = vshrl.u32 %v3144, 7
        %v3146 = vsub.s32 1, %v3145
        %v3147 = vrot.slane %v3138, %v3146
        %v3150 = vmul.f32 %v3133, %v3143
        %v3151 = vmul.f32 %v3134, %v3147
        %v3152 = vmul.f32 %v2519, %v3143
        %v3153 = vmul.f32 %v2520, %v3147
        %v3154 = vmul.f32 %v3135, %v3143
        %v3155 = vmul.f32 %v3136, %v3147
        %v3162 = vrot.slane %v3150, 2
        %v3163 = vrot.slane %v3152, 2
        %v3164 = vsel %vm2926, %v3162, %v3163
        %v3165 = vrot.slane %v3151, 2
        %v3166 = vrot.slane %v3153, 2
        %v3167 = vsel %vm2926, %v3165, %v3166
        %v3168 = vrot.slane %v3154, 2
        %v3169 = vsel %vm2926, %v3163, %v3168
        %v3170 = vrot.slane %v3155, 2
        %v3171 = vsel %vm2926, %v3166, %v3170
        %v3176 = vadd.f32 %v2988, %v3164
        %v3177 = vadd.f32 %v2989, %v3167
        %v3178 = vadd.f32 %v2990, %v3169
        %v3179 = vadd.f32 %v2991, %v3171
        %v3180 = vld [vmem:[%s2386] sm:$0xfc]
        %v3181 = vld [vmem:[%s2386 + $0x8] sm:$0xfc]
        %v3182 = vld [vmem:[%s2386 + $0x20] sm:$0x3]
        %v3183 = vld [vmem:[%s2386 + $0x28] sm:$0x3]
        %s3184 = scalar_lea.vmem %s7, 36
        %v3185 = vld [vmem:[%s3184] ss:$8 sm:$0x3]
        %v3187 = vlaneseq
        %v3188 = vshrl.u32 %v3187, 7
        %v3189 = vsub.s32 0, %v3188
        %v3190 = vrot.slane %v3185, %v3189
        %v3191 = vlaneseq
        %v3192 = vshrl.u32 %v3191, 7
        %v3193 = vsub.s32 1, %v3192
        %v3194 = vrot.slane %v3185, %v3193
        %v3197 = vmul.f32 %v3180, %v3190
        %v3198 = vmul.f32 %v3181, %v3194
        %v3199 = vmul.f32 %v2544, %v3190
        %v3200 = vmul.f32 %v2545, %v3194
        %v3201 = vmul.f32 %v3182, %v3190
        %v3202 = vmul.f32 %v3183, %v3194
        %v3209 = vrot.slane %v3197, 2
        %v3210 = vrot.slane %v3199, 2
        %v3211 = vsel %vm2926, %v3209, %v3210
        %v3212 = vrot.slane %v3198, 2
        %v3213 = vrot.slane %v3200, 2
        %v3214 = vsel %vm2926, %v3212, %v3213
        %v3215 = vrot.slane %v3201, 2
        %v3216 = vsel %vm2926, %v3210, %v3215
        %v3217 = vrot.slane %v3202, 2
        %v3218 = vsel %vm2926, %v3213, %v3217
        %v3223 = vadd.f32 %v3035, %v3211
        %v3224 = vadd.f32 %v3036, %v3214
        %v3225 = vadd.f32 %v3037, %v3216
        %v3226 = vadd.f32 %v3038, %v3218
        %v3227 = vld [vmem:[#allocation3] sm:$0xf8]
        %v3228 = vld [vmem:[#allocation3 + $0x8] sm:$0xf8]
        %v3229 = vld [vmem:[#allocation3 + $0x20] sm:$0x7]
        %v3230 = vld [vmem:[#allocation3 + $0x28] sm:$0x7]
        %s3231 = scalar_lea.vmem %s7, 37
        %v3232 = vld [vmem:[%s3231] ss:$8 sm:$0x3]
        %v3234 = vlaneseq
        %v3235 = vshrl.u32 %v3234, 7
        %v3236 = vsub.s32 0, %v3235
        %v3237 = vrot.slane %v3232, %v3236
        %v3238 = vlaneseq
        %v3239 = vshrl.u32 %v3238, 7
        %v3240 = vsub.s32 1, %v3239
        %v3241 = vrot.slane %v3232, %v3240
        %v3244 = vmul.f32 %v3227, %v3237
        %v3245 = vmul.f32 %v3228, %v3241
        %v3246 = vmul.f32 %v2395, %v3237
        %v3247 = vmul.f32 %v2396, %v3241
        %v3248 = vmul.f32 %v3229, %v3237
        %v3249 = vmul.f32 %v3230, %v3241
        %vm3256 = vcmask 1044480
        %v3257 = vrot.slane %v3244, 3
        %v3258 = vrot.slane %v3246, 3
        %v3259 = vsel %vm3256, %v3257, %v3258
        %v3260 = vrot.slane %v3245, 3
        %v3261 = vrot.slane %v3247, 3
        %v3262 = vsel %vm3256, %v3260, %v3261
        %v3263 = vrot.slane %v3248, 3
        %v3264 = vsel %vm3256, %v3258, %v3263
        %v3265 = vrot.slane %v3249, 3
        %v3266 = vsel %vm3256, %v3261, %v3265
        %v3271 = vadd.f32 %v3082, %v3259
        %v3272 = vadd.f32 %v3083, %v3262
        %v3273 = vadd.f32 %v3084, %v3264
        %v3274 = vadd.f32 %v3085, %v3266
        %v3275 = vld [vmem:[%s2183] sm:$0xf8]
        %v3276 = vld [vmem:[%s2183 + $0x8] sm:$0xf8]
        %v3277 = vld [vmem:[%s2183 + $0x20] sm:$0x7]
        %v3278 = vld [vmem:[%s2183 + $0x28] sm:$0x7]
        %s3279 = scalar_lea.vmem %s7, 38
        %v3280 = vld [vmem:[%s3279] ss:$8 sm:$0x3]
        %v3282 = vlaneseq
        %v3283 = vshrl.u32 %v3282, 7
        %v3284 = vsub.s32 0, %v3283
        %v3285 = vrot.slane %v3280, %v3284
        %v3286 = vlaneseq
        %v3287 = vshrl.u32 %v3286, 7
        %v3288 = vsub.s32 1, %v3287
        %v3289 = vrot.slane %v3280, %v3288
        %v3292 = vmul.f32 %v3275, %v3285
        %v3293 = vmul.f32 %v3276, %v3289
        %v3294 = vmul.f32 %v2419, %v3285
        %v3295 = vmul.f32 %v2420, %v3289
        %v3296 = vmul.f32 %v3277, %v3285
        %v3297 = vmul.f32 %v3278, %v3289
        %v3304 = vrot.slane %v3292, 3
        %v3305 = vrot.slane %v3294, 3
        %v3306 = vsel %vm3256, %v3304, %v3305
        %v3307 = vrot.slane %v3293, 3
        %v3308 = vrot.slane %v3295, 3
        %v3309 = vsel %vm3256, %v3307, %v3308
        %v3310 = vrot.slane %v3296, 3
        %v3311 = vsel %vm3256, %v3305, %v3310
        %v3312 = vrot.slane %v3297, 3
        %v3313 = vsel %vm3256, %v3308, %v3312
        %v3318 = vadd.f32 %v3129, %v3306
        %v3319 = vadd.f32 %v3130, %v3309
        %v3320 = vadd.f32 %v3131, %v3311
        %v3321 = vadd.f32 %v3132, %v3313
        %v3322 = vld [vmem:[%s2223] sm:$0xf8]
        %v3323 = vld [vmem:[%s2223 + $0x8] sm:$0xf8]
        %v3324 = vld [vmem:[%s2223 + $0x20] sm:$0x7]
        %v3325 = vld [vmem:[%s2223 + $0x28] sm:$0x7]
        %s3326 = scalar_lea.vmem %s7, 39
        %v3327 = vld [vmem:[%s3326] ss:$8 sm:$0x3]
        %v3329 = vlaneseq
        %v3330 = vshrl.u32 %v3329, 7
        %v3331 = vsub.s32 0, %v3330
        %v3332 = vrot.slane %v3327, %v3331
        %v3333 = vlaneseq
        %v3334 = vshrl.u32 %v3333, 7
        %v3335 = vsub.s32 1, %v3334
        %v3336 = vrot.slane %v3327, %v3335
        %v3339 = vmul.f32 %v3322, %v3332
        %v3340 = vmul.f32 %v3323, %v3336
        %v3341 = vmul.f32 %v2444, %v3332
        %v3342 = vmul.f32 %v2445, %v3336
        %v3343 = vmul.f32 %v3324, %v3332
        %v3344 = vmul.f32 %v3325, %v3336
        %v3351 = vrot.slane %v3339, 3
        %v3352 = vrot.slane %v3341, 3
        %v3353 = vsel %vm3256, %v3351, %v3352
        %v3354 = vrot.slane %v3340, 3
        %v3355 = vrot.slane %v3342, 3
        %v3356 = vsel %vm3256, %v3354, %v3355
        %v3357 = vrot.slane %v3343, 3
        %v3358 = vsel %vm3256, %v3352, %v3357
        %v3359 = vrot.slane %v3344, 3
        %v3360 = vsel %vm3256, %v3355, %v3359
        %v3365 = vadd.f32 %v3176, %v3353
        %v3366 = vadd.f32 %v3177, %v3356
        %v3367 = vadd.f32 %v3178, %v3358
        %v3368 = vadd.f32 %v3179, %v3360
        %v3369 = vld [vmem:[%s2264] sm:$0xf8]
        %v3370 = vld [vmem:[%s2264 + $0x8] sm:$0xf8]
        %v3371 = vld [vmem:[%s2264 + $0x20] sm:$0x7]
        %v3372 = vld [vmem:[%s2264 + $0x28] sm:$0x7]
        %s3373 = scalar_lea.vmem %s7, 48
        %v3374 = vld [vmem:[%s3373] ss:$8 sm:$0x3]
        %v3376 = vlaneseq
        %v3377 = vshrl.u32 %v3376, 7
        %v3378 = vsub.s32 0, %v3377
        %v3379 = vrot.slane %v3374, %v3378
        %v3380 = vlaneseq
        %v3381 = vshrl.u32 %v3380, 7
        %v3382 = vsub.s32 1, %v3381
        %v3383 = vrot.slane %v3374, %v3382
        %v3386 = vmul.f32 %v3369, %v3379
        %v3387 = vmul.f32 %v3370, %v3383
        %v3388 = vmul.f32 %v2469, %v3379
        %v3389 = vmul.f32 %v2470, %v3383
        %v3390 = vmul.f32 %v3371, %v3379
        %v3391 = vmul.f32 %v3372, %v3383
        %v3398 = vrot.slane %v3386, 3
        %v3399 = vrot.slane %v3388, 3
        %v3400 = vsel %vm3256, %v3398, %v3399
        %v3401 = vrot.slane %v3387, 3
        %v3402 = vrot.slane %v3389, 3
        %v3403 = vsel %vm3256, %v3401, %v3402
        %v3404 = vrot.slane %v3390, 3
        %v3405 = vsel %vm3256, %v3399, %v3404
        %v3406 = vrot.slane %v3391, 3
        %v3407 = vsel %vm3256, %v3402, %v3406
        %v3412 = vadd.f32 %v3223, %v3400
        %v3413 = vadd.f32 %v3224, %v3403
        %v3414 = vadd.f32 %v3225, %v3405
        %v3415 = vadd.f32 %v3226, %v3407
        %v3416 = vld [vmem:[%s2304] sm:$0xf8]
        %v3417 = vld [vmem:[%s2304 + $0x8] sm:$0xf8]
        %v3418 = vld [vmem:[%s2304 + $0x20] sm:$0x7]
        %v3419 = vld [vmem:[%s2304 + $0x28] sm:$0x7]
        %s3420 = scalar_lea.vmem %s7, 49
        %v3421 = vld [vmem:[%s3420] ss:$8 sm:$0x3]
        %v3423 = vlaneseq
        %v3424 = vshrl.u32 %v3423, 7
        %v3425 = vsub.s32 0, %v3424
        %v3426 = vrot.slane %v3421, %v3425
        %v3427 = vlaneseq
        %v3428 = vshrl.u32 %v3427, 7
        %v3429 = vsub.s32 1, %v3428
        %v3430 = vrot.slane %v3421, %v3429
        %v3433 = vmul.f32 %v3416, %v3426
        %v3434 = vmul.f32 %v3417, %v3430
        %v3435 = vmul.f32 %v2494, %v3426
        %v3436 = vmul.f32 %v2495, %v3430
        %v3437 = vmul.f32 %v3418, %v3426
        %v3438 = vmul.f32 %v3419, %v3430
        %v3445 = vrot.slane %v3433, 3
        %v3446 = vrot.slane %v3435, 3
        %v3447 = vsel %vm3256, %v3445, %v3446
        %v3448 = vrot.slane %v3434, 3
        %v3449 = vrot.slane %v3436, 3
        %v3450 = vsel %vm3256, %v3448, %v3449
        %v3451 = vrot.slane %v3437, 3
        %v3452 = vsel %vm3256, %v3446, %v3451
        %v3453 = vrot.slane %v3438, 3
        %v3454 = vsel %vm3256, %v3449, %v3453
        %v3459 = vadd.f32 %v3271, %v3447
        %v3460 = vadd.f32 %v3272, %v3450
        %v3461 = vadd.f32 %v3273, %v3452
        %v3462 = vadd.f32 %v3274, %v3454
        %v3463 = vld [vmem:[%s2345] sm:$0xf8]
        %v3464 = vld [vmem:[%s2345 + $0x8] sm:$0xf8]
        %v3465 = vld [vmem:[%s2345 + $0x20] sm:$0x7]
        %v3466 = vld [vmem:[%s2345 + $0x28] sm:$0x7]
        %s3467 = scalar_lea.vmem %s7, 50
        %v3468 = vld [vmem:[%s3467] ss:$8 sm:$0x3]
        %v3470 = vlaneseq
        %v3471 = vshrl.u32 %v3470, 7
        %v3472 = vsub.s32 0, %v3471
        %v3473 = vrot.slane %v3468, %v3472
        %v3474 = vlaneseq
        %v3475 = vshrl.u32 %v3474, 7
        %v3476 = vsub.s32 1, %v3475
        %v3477 = vrot.slane %v3468, %v3476
        %v3480 = vmul.f32 %v3463, %v3473
        %v3481 = vmul.f32 %v3464, %v3477
        %v3482 = vmul.f32 %v2519, %v3473
        %v3483 = vmul.f32 %v2520, %v3477
        %v3484 = vmul.f32 %v3465, %v3473
        %v3485 = vmul.f32 %v3466, %v3477
        %v3492 = vrot.slane %v3480, 3
        %v3493 = vrot.slane %v3482, 3
        %v3494 = vsel %vm3256, %v3492, %v3493
        %v3495 = vrot.slane %v3481, 3
        %v3496 = vrot.slane %v3483, 3
        %v3497 = vsel %vm3256, %v3495, %v3496
        %v3498 = vrot.slane %v3484, 3
        %v3499 = vsel %vm3256, %v3493, %v3498
        %v3500 = vrot.slane %v3485, 3
        %v3501 = vsel %vm3256, %v3496, %v3500
        %v3506 = vadd.f32 %v3318, %v3494
        %v3507 = vadd.f32 %v3319, %v3497
        %v3508 = vadd.f32 %v3320, %v3499
        %v3509 = vadd.f32 %v3321, %v3501
        %v3510 = vld [vmem:[%s2386] sm:$0xf8]
        %v3511 = vld [vmem:[%s2386 + $0x8] sm:$0xf8]
        %v3512 = vld [vmem:[%s2386 + $0x20] sm:$0x7]
        %v3513 = vld [vmem:[%s2386 + $0x28] sm:$0x7]
        %s3514 = scalar_lea.vmem %s7, 51
        %v3515 = vld [vmem:[%s3514] ss:$8 sm:$0x3]
        %v3517 = vlaneseq
        %v3518 = vshrl.u32 %v3517, 7
        %v3519 = vsub.s32 0, %v3518
        %v3520 = vrot.slane %v3515, %v3519
        %v3521 = vlaneseq
        %v3522 = vshrl.u32 %v3521, 7
        %v3523 = vsub.s32 1, %v3522
        %v3524 = vrot.slane %v3515, %v3523
        %v3527 = vmul.f32 %v3510, %v3520
        %v3528 = vmul.f32 %v3511, %v3524
        %v3529 = vmul.f32 %v2544, %v3520
        %v3530 = vmul.f32 %v2545, %v3524
        %v3531 = vmul.f32 %v3512, %v3520
        %v3532 = vmul.f32 %v3513, %v3524
        %v3539 = vrot.slane %v3527, 3
        %v3540 = vrot.slane %v3529, 3
        %v3541 = vsel %vm3256, %v3539, %v3540
        %v3542 = vrot.slane %v3528, 3
        %v3543 = vrot.slane %v3530, 3
        %v3544 = vsel %vm3256, %v3542, %v3543
        %v3545 = vrot.slane %v3531, 3
        %v3546 = vsel %vm3256, %v3540, %v3545
        %v3547 = vrot.slane %v3532, 3
        %v3548 = vsel %vm3256, %v3543, %v3547
        %v3553 = vadd.f32 %v3365, %v3541
        %v3554 = vadd.f32 %v3366, %v3544
        %v3555 = vadd.f32 %v3367, %v3546
        %v3556 = vadd.f32 %v3368, %v3548
        %v3557 = vld [vmem:[#allocation3] sm:$0xf0]
        %v3558 = vld [vmem:[#allocation3 + $0x8] sm:$0xf0]
        %v3559 = vld [vmem:[#allocation3 + $0x20] sm:$0xf]
        %v3560 = vld [vmem:[#allocation3 + $0x28] sm:$0xf]
        %s3561 = scalar_lea.vmem %s7, 52
        %v3562 = vld [vmem:[%s3561] ss:$8 sm:$0x3]
        %v3564 = vlaneseq
        %v3565 = vshrl.u32 %v3564, 7
        %v3566 = vsub.s32 0, %v3565
        %v3567 = vrot.slane %v3562, %v3566
        %v3568 = vlaneseq
        %v3569 = vshrl.u32 %v3568, 7
        %v3570 = vsub.s32 1, %v3569
        %v3571 = vrot.slane %v3562, %v3570
        %v3574 = vmul.f32 %v3557, %v3567
        %v3575 = vmul.f32 %v3558, %v3571
        %v3576 = vmul.f32 %v2395, %v3567
        %v3577 = vmul.f32 %v2396, %v3571
        %v3578 = vmul.f32 %v3559, %v3567
        %v3579 = vmul.f32 %v3560, %v3571
        %vm3586 = vcmask 1043456
        %v3587 = vrot.slane %v3574, 4
        %v3588 = vrot.slane %v3576, 4
        %v3589 = vsel %vm3586, %v3587, %v3588
        %v3590 = vrot.slane %v3575, 4
        %v3591 = vrot.slane %v3577, 4
        %v3592 = vsel %vm3586, %v3590, %v3591
        %v3593 = vrot.slane %v3578, 4
        %v3594 = vsel %vm3586, %v3588, %v3593
        %v3595 = vrot.slane %v3579, 4
        %v3596 = vsel %vm3586, %v3591, %v3595
        %v3601 = vadd.f32 %v3412, %v3589
        %v3602 = vadd.f32 %v3413, %v3592
        %v3603 = vadd.f32 %v3414, %v3594
        %v3604 = vadd.f32 %v3415, %v3596
        %v3605 = vld [vmem:[%s2183] sm:$0xf0]
        %v3606 = vld [vmem:[%s2183 + $0x8] sm:$0xf0]
        %v3607 = vld [vmem:[%s2183 + $0x20] sm:$0xf]
        %v3608 = vld [vmem:[%s2183 + $0x28] sm:$0xf]
        %s3609 = scalar_lea.vmem %s7, 53
        %v3610 = vld [vmem:[%s3609] ss:$8 sm:$0x3]
        %v3612 = vlaneseq
        %v3613 = vshrl.u32 %v3612, 7
        %v3614 = vsub.s32 0, %v3613
        %v3615 = vrot.slane %v3610, %v3614
        %v3616 = vlaneseq
        %v3617 = vshrl.u32 %v3616, 7
        %v3618 = vsub.s32 1, %v3617
        %v3619 = vrot.slane %v3610, %v3618
        %v3622 = vmul.f32 %v3605, %v3615
        %v3623 = vmul.f32 %v3606, %v3619
        %v3624 = vmul.f32 %v2419, %v3615
        %v3625 = vmul.f32 %v2420, %v3619
        %v3626 = vmul.f32 %v3607, %v3615
        %v3627 = vmul.f32 %v3608, %v3619
        %v3634 = vrot.slane %v3622, 4
        %v3635 = vrot.slane %v3624, 4
        %v3636 = vsel %vm3586, %v3634, %v3635
        %v3637 = vrot.slane %v3623, 4
        %v3638 = vrot.slane %v3625, 4
        %v3639 = vsel %vm3586, %v3637, %v3638
        %v3640 = vrot.slane %v3626, 4
        %v3641 = vsel %vm3586, %v3635, %v3640
        %v3642 = vrot.slane %v3627, 4
        %v3643 = vsel %vm3586, %v3638, %v3642
        %v3648 = vadd.f32 %v3459, %v3636
        %v3649 = vadd.f32 %v3460, %v3639
        %v3650 = vadd.f32 %v3461, %v3641
        %v3651 = vadd.f32 %v3462, %v3643
        %v3652 = vld [vmem:[%s2223] sm:$0xf0]
        %v3653 = vld [vmem:[%s2223 + $0x8] sm:$0xf0]
        %v3654 = vld [vmem:[%s2223 + $0x20] sm:$0xf]
        %v3655 = vld [vmem:[%s2223 + $0x28] sm:$0xf]
        %s3656 = scalar_lea.vmem %s7, 54
        %v3657 = vld [vmem:[%s3656] ss:$8 sm:$0x3]
        %v3659 = vlaneseq
        %v3660 = vshrl.u32 %v3659, 7
        %v3661 = vsub.s32 0, %v3660
        %v3662 = vrot.slane %v3657, %v3661
        %v3663 = vlaneseq
        %v3664 = vshrl.u32 %v3663, 7
        %v3665 = vsub.s32 1, %v3664
        %v3666 = vrot.slane %v3657, %v3665
        %v3669 = vmul.f32 %v3652, %v3662
        %v3670 = vmul.f32 %v3653, %v3666
        %v3671 = vmul.f32 %v2444, %v3662
        %v3672 = vmul.f32 %v2445, %v3666
        %v3673 = vmul.f32 %v3654, %v3662
        %v3674 = vmul.f32 %v3655, %v3666
        %v3681 = vrot.slane %v3669, 4
        %v3682 = vrot.slane %v3671, 4
        %v3683 = vsel %vm3586, %v3681, %v3682
        %v3684 = vrot.slane %v3670, 4
        %v3685 = vrot.slane %v3672, 4
        %v3686 = vsel %vm3586, %v3684, %v3685
        %v3687 = vrot.slane %v3673, 4
        %v3688 = vsel %vm3586, %v3682, %v3687
        %v3689 = vrot.slane %v3674, 4
        %v3690 = vsel %vm3586, %v3685, %v3689
        %v3695 = vadd.f32 %v3506, %v3683
        %v3696 = vadd.f32 %v3507, %v3686
        %v3697 = vadd.f32 %v3508, %v3688
        %v3698 = vadd.f32 %v3509, %v3690
        %v3699 = vld [vmem:[%s2264] sm:$0xf0]
        %v3700 = vld [vmem:[%s2264 + $0x8] sm:$0xf0]
        %v3701 = vld [vmem:[%s2264 + $0x20] sm:$0xf]
        %v3702 = vld [vmem:[%s2264 + $0x28] sm:$0xf]
        %s3703 = scalar_lea.vmem %s7, 55
        %v3704 = vld [vmem:[%s3703] ss:$8 sm:$0x3]
        %v3706 = vlaneseq
        %v3707 = vshrl.u32 %v3706, 7
        %v3708 = vsub.s32 0, %v3707
        %v3709 = vrot.slane %v3704, %v3708
        %v3710 = vlaneseq
        %v3711 = vshrl.u32 %v3710, 7
        %v3712 = vsub.s32 1, %v3711
        %v3713 = vrot.slane %v3704, %v3712
        %v3716 = vmul.f32 %v3699, %v3709
        %v3717 = vmul.f32 %v3700, %v3713
        %v3718 = vmul.f32 %v2469, %v3709
        %v3719 = vmul.f32 %v2470, %v3713
        %v3720 = vmul.f32 %v3701, %v3709
        %v3721 = vmul.f32 %v3702, %v3713
        %v3728 = vrot.slane %v3716, 4
        %v3729 = vrot.slane %v3718, 4
        %v3730 = vsel %vm3586, %v3728, %v3729
        %v3731 = vrot.slane %v3717, 4
        %v3732 = vrot.slane %v3719, 4
        %v3733 = vsel %vm3586, %v3731, %v3732
        %v3734 = vrot.slane %v3720, 4
        %v3735 = vsel %vm3586, %v3729, %v3734
        %v3736 = vrot.slane %v3721, 4
        %v3737 = vsel %vm3586, %v3732, %v3736
        %v3742 = vadd.f32 %v3553, %v3730
        %v3743 = vadd.f32 %v3554, %v3733
        %v3744 = vadd.f32 %v3555, %v3735
        %v3745 = vadd.f32 %v3556, %v3737
        %v3746 = vld [vmem:[%s2304] sm:$0xf0]
        %v3747 = vld [vmem:[%s2304 + $0x8] sm:$0xf0]
        %v3748 = vld [vmem:[%s2304 + $0x20] sm:$0xf]
        %v3749 = vld [vmem:[%s2304 + $0x28] sm:$0xf]
        %s3750 = scalar_lea.vmem %s7, 64
        %v3751 = vld [vmem:[%s3750] ss:$8 sm:$0x3]
        %v3753 = vlaneseq
        %v3754 = vshrl.u32 %v3753, 7
        %v3755 = vsub.s32 0, %v3754
        %v3756 = vrot.slane %v3751, %v3755
        %v3757 = vlaneseq
        %v3758 = vshrl.u32 %v3757, 7
        %v3759 = vsub.s32 1, %v3758
        %v3760 = vrot.slane %v3751, %v3759
        %v3763 = vmul.f32 %v3746, %v3756
        %v3764 = vmul.f32 %v3747, %v3760
        %v3765 = vmul.f32 %v2494, %v3756
        %v3766 = vmul.f32 %v2495, %v3760
        %v3767 = vmul.f32 %v3748, %v3756
        %v3768 = vmul.f32 %v3749, %v3760
        %v3775 = vrot.slane %v3763, 4
        %v3776 = vrot.slane %v3765, 4
        %v3777 = vsel %vm3586, %v3775, %v3776
        %v3778 = vrot.slane %v3764, 4
        %v3779 = vrot.slane %v3766, 4
        %v3780 = vsel %vm3586, %v3778, %v3779
        %v3781 = vrot.slane %v3767, 4
        %v3782 = vsel %vm3586, %v3776, %v3781
        %v3783 = vrot.slane %v3768, 4
        %v3784 = vsel %vm3586, %v3779, %v3783
        %v3789 = vadd.f32 %v3601, %v3777
        %v3790 = vadd.f32 %v3602, %v3780
        %v3791 = vadd.f32 %v3603, %v3782
        %v3792 = vadd.f32 %v3604, %v3784
        %v3793 = vld [vmem:[%s2345] sm:$0xf0]
        %v3794 = vld [vmem:[%s2345 + $0x8] sm:$0xf0]
        %v3795 = vld [vmem:[%s2345 + $0x20] sm:$0xf]
        %v3796 = vld [vmem:[%s2345 + $0x28] sm:$0xf]
        %s3797 = scalar_lea.vmem %s7, 65
        %v3798 = vld [vmem:[%s3797] ss:$8 sm:$0x3]
        %v3800 = vlaneseq
        %v3801 = vshrl.u32 %v3800, 7
        %v3802 = vsub.s32 0, %v3801
        %v3803 = vrot.slane %v3798, %v3802
        %v3804 = vlaneseq
        %v3805 = vshrl.u32 %v3804, 7
        %v3806 = vsub.s32 1, %v3805
        %v3807 = vrot.slane %v3798, %v3806
        %v3810 = vmul.f32 %v3793, %v3803
        %v3811 = vmul.f32 %v3794, %v3807
        %v3812 = vmul.f32 %v2519, %v3803
        %v3813 = vmul.f32 %v2520, %v3807
        %v3814 = vmul.f32 %v3795, %v3803
        %v3815 = vmul.f32 %v3796, %v3807
        %v3822 = vrot.slane %v3810, 4
        %v3823 = vrot.slane %v3812, 4
        %v3824 = vsel %vm3586, %v3822, %v3823
        %v3825 = vrot.slane %v3811, 4
        %v3826 = vrot.slane %v3813, 4
        %v3827 = vsel %vm3586, %v3825, %v3826
        %v3828 = vrot.slane %v3814, 4
        %v3829 = vsel %vm3586, %v3823, %v3828
        %v3830 = vrot.slane %v3815, 4
        %v3831 = vsel %vm3586, %v3826, %v3830
        %v3836 = vadd.f32 %v3648, %v3824
        %v3837 = vadd.f32 %v3649, %v3827
        %v3838 = vadd.f32 %v3650, %v3829
        %v3839 = vadd.f32 %v3651, %v3831
        %v3840 = vld [vmem:[%s2386] sm:$0xf0]
        %v3841 = vld [vmem:[%s2386 + $0x8] sm:$0xf0]
        %v3842 = vld [vmem:[%s2386 + $0x20] sm:$0xf]
        %v3843 = vld [vmem:[%s2386 + $0x28] sm:$0xf]
        %s3844 = scalar_lea.vmem %s7, 66
        %v3845 = vld [vmem:[%s3844] ss:$8 sm:$0x3]
        %v3847 = vlaneseq
        %v3848 = vshrl.u32 %v3847, 7
        %v3849 = vsub.s32 0, %v3848
        %v3850 = vrot.slane %v3845, %v3849
        %v3851 = vlaneseq
        %v3852 = vshrl.u32 %v3851, 7
        %v3853 = vsub.s32 1, %v3852
        %v3854 = vrot.slane %v3845, %v3853
        %v3857 = vmul.f32 %v3840, %v3850
        %v3858 = vmul.f32 %v3841, %v3854
        %v3859 = vmul.f32 %v2544, %v3850
        %v3860 = vmul.f32 %v2545, %v3854
        %v3861 = vmul.f32 %v3842, %v3850
        %v3862 = vmul.f32 %v3843, %v3854
        %v3869 = vrot.slane %v3857, 4
        %v3870 = vrot.slane %v3859, 4
        %v3871 = vsel %vm3586, %v3869, %v3870
        %v3872 = vrot.slane %v3858, 4
        %v3873 = vrot.slane %v3860, 4
        %v3874 = vsel %vm3586, %v3872, %v3873
        %v3875 = vrot.slane %v3861, 4
        %v3876 = vsel %vm3586, %v3870, %v3875
        %v3877 = vrot.slane %v3862, 4
        %v3878 = vsel %vm3586, %v3873, %v3877
        %v3883 = vadd.f32 %v3695, %v3871
        %v3884 = vadd.f32 %v3696, %v3874
        %v3885 = vadd.f32 %v3697, %v3876
        %v3886 = vadd.f32 %v3698, %v3878
        %v3887 = vld [vmem:[#allocation3] sm:$0xe0]
        %v3888 = vld [vmem:[#allocation3 + $0x8] sm:$0xe0]
        %v3889 = vld [vmem:[#allocation3 + $0x20] sm:$0x1f]
        %v3890 = vld [vmem:[#allocation3 + $0x28] sm:$0x1f]
        %s3891 = scalar_lea.vmem %s7, 67
        %v3892 = vld [vmem:[%s3891] ss:$8 sm:$0x3]
        %v3894 = vlaneseq
        %v3895 = vshrl.u32 %v3894, 7
        %v3896 = vsub.s32 0, %v3895
        %v3897 = vrot.slane %v3892, %v3896
        %v3898 = vlaneseq
        %v3899 = vshrl.u32 %v3898, 7
        %v3900 = vsub.s32 1, %v3899
        %v3901 = vrot.slane %v3892, %v3900
        %v3904 = vmul.f32 %v3887, %v3897
        %v3905 = vmul.f32 %v3888, %v3901
        %v3906 = vmul.f32 %v2395, %v3897
        %v3907 = vmul.f32 %v2396, %v3901
        %v3908 = vmul.f32 %v3889, %v3897
        %v3909 = vmul.f32 %v3890, %v3901
        %v3916 = vrot.slane %v3904, 5
        %v3917 = vrot.slane %v3906, 5
        %v3918 = vsel %vm579, %v3916, %v3917
        %v3919 = vrot.slane %v3905, 5
        %v3920 = vrot.slane %v3907, 5
        %v3921 = vsel %vm579, %v3919, %v3920
        %v3922 = vrot.slane %v3908, 5
        %v3923 = vsel %vm579, %v3917, %v3922
        %v3924 = vrot.slane %v3909, 5
        %v3925 = vsel %vm579, %v3920, %v3924
        %v3930 = vadd.f32 %v3742, %v3918
        %v3931 = vadd.f32 %v3743, %v3921
        %v3932 = vadd.f32 %v3744, %v3923
        %v3933 = vadd.f32 %v3745, %v3925
        %v3934 = vld [vmem:[%s2183] sm:$0xe0]
        %v3935 = vld [vmem:[%s2183 + $0x8] sm:$0xe0]
        %v3936 = vld [vmem:[%s2183 + $0x20] sm:$0x1f]
        %v3937 = vld [vmem:[%s2183 + $0x28] sm:$0x1f]
        %s3938 = scalar_lea.vmem %s7, 68
        %v3939 = vld [vmem:[%s3938] ss:$8 sm:$0x3]
        %v3941 = vlaneseq
        %v3942 = vshrl.u32 %v3941, 7
        %v3943 = vsub.s32 0, %v3942
        %v3944 = vrot.slane %v3939, %v3943
        %v3945 = vlaneseq
        %v3946 = vshrl.u32 %v3945, 7
        %v3947 = vsub.s32 1, %v3946
        %v3948 = vrot.slane %v3939, %v3947
        %v3951 = vmul.f32 %v3934, %v3944
        %v3952 = vmul.f32 %v3935, %v3948
        %v3953 = vmul.f32 %v2419, %v3944
        %v3954 = vmul.f32 %v2420, %v3948
        %v3955 = vmul.f32 %v3936, %v3944
        %v3956 = vmul.f32 %v3937, %v3948
        %v3963 = vrot.slane %v3951, 5
        %v3964 = vrot.slane %v3953, 5
        %v3965 = vsel %vm579, %v3963, %v3964
        %v3966 = vrot.slane %v3952, 5
        %v3967 = vrot.slane %v3954, 5
        %v3968 = vsel %vm579, %v3966, %v3967
        %v3969 = vrot.slane %v3955, 5
        %v3970 = vsel %vm579, %v3964, %v3969
        %v3971 = vrot.slane %v3956, 5
        %v3972 = vsel %vm579, %v3967, %v3971
        %v3977 = vadd.f32 %v3789, %v3965
        %v3978 = vadd.f32 %v3790, %v3968
        %v3979 = vadd.f32 %v3791, %v3970
        %v3980 = vadd.f32 %v3792, %v3972
        %v3981 = vld [vmem:[%s2223] sm:$0xe0]
        %v3982 = vld [vmem:[%s2223 + $0x8] sm:$0xe0]
        %v3983 = vld [vmem:[%s2223 + $0x20] sm:$0x1f]
        %v3984 = vld [vmem:[%s2223 + $0x28] sm:$0x1f]
        %s3985 = scalar_lea.vmem %s7, 69
        %v3986 = vld [vmem:[%s3985] ss:$8 sm:$0x3]
        %v3988 = vlaneseq
        %v3989 = vshrl.u32 %v3988, 7
        %v3990 = vsub.s32 0, %v3989
        %v3991 = vrot.slane %v3986, %v3990
        %v3992 = vlaneseq
        %v3993 = vshrl.u32 %v3992, 7
        %v3994 = vsub.s32 1, %v3993
        %v3995 = vrot.slane %v3986, %v3994
        %v3998 = vmul.f32 %v3981, %v3991
        %v3999 = vmul.f32 %v3982, %v3995
        %v4000 = vmul.f32 %v2444, %v3991
        %v4001 = vmul.f32 %v2445, %v3995
        %v4002 = vmul.f32 %v3983, %v3991
        %v4003 = vmul.f32 %v3984, %v3995
        %v4010 = vrot.slane %v3998, 5
        %v4011 = vrot.slane %v4000, 5
        %v4012 = vsel %vm579, %v4010, %v4011
        %v4013 = vrot.slane %v3999, 5
        %v4014 = vrot.slane %v4001, 5
        %v4015 = vsel %vm579, %v4013, %v4014
        %v4016 = vrot.slane %v4002, 5
        %v4017 = vsel %vm579, %v4011, %v4016
        %v4018 = vrot.slane %v4003, 5
        %v4019 = vsel %vm579, %v4014, %v4018
        %v4024 = vadd.f32 %v3836, %v4012
        %v4025 = vadd.f32 %v3837, %v4015
        %v4026 = vadd.f32 %v3838, %v4017
        %v4027 = vadd.f32 %v3839, %v4019
        %v4028 = vld [vmem:[%s2264] sm:$0xe0]
        %v4029 = vld [vmem:[%s2264 + $0x8] sm:$0xe0]
        %v4030 = vld [vmem:[%s2264 + $0x20] sm:$0x1f]
        %v4031 = vld [vmem:[%s2264 + $0x28] sm:$0x1f]
        %s4032 = scalar_lea.vmem %s7, 70
        %v4033 = vld [vmem:[%s4032] ss:$8 sm:$0x3]
        %v4035 = vlaneseq
        %v4036 = vshrl.u32 %v4035, 7
        %v4037 = vsub.s32 0, %v4036
        %v4038 = vrot.slane %v4033, %v4037
        %v4039 = vlaneseq
        %v4040 = vshrl.u32 %v4039, 7
        %v4041 = vsub.s32 1, %v4040
        %v4042 = vrot.slane %v4033, %v4041
        %v4045 = vmul.f32 %v4028, %v4038
        %v4046 = vmul.f32 %v4029, %v4042
        %v4047 = vmul.f32 %v2469, %v4038
        %v4048 = vmul.f32 %v2470, %v4042
        %v4049 = vmul.f32 %v4030, %v4038
        %v4050 = vmul.f32 %v4031, %v4042
        %v4057 = vrot.slane %v4045, 5
        %v4058 = vrot.slane %v4047, 5
        %v4059 = vsel %vm579, %v4057, %v4058
        %v4060 = vrot.slane %v4046, 5
        %v4061 = vrot.slane %v4048, 5
        %v4062 = vsel %vm579, %v4060, %v4061
        %v4063 = vrot.slane %v4049, 5
        %v4064 = vsel %vm579, %v4058, %v4063
        %v4065 = vrot.slane %v4050, 5
        %v4066 = vsel %vm579, %v4061, %v4065
        %v4071 = vadd.f32 %v3883, %v4059
        %v4072 = vadd.f32 %v3884, %v4062
        %v4073 = vadd.f32 %v3885, %v4064
        %v4074 = vadd.f32 %v3886, %v4066
        %v4075 = vld [vmem:[%s2304] sm:$0xe0]
        %v4076 = vld [vmem:[%s2304 + $0x8] sm:$0xe0]
        %v4077 = vld [vmem:[%s2304 + $0x20] sm:$0x1f]
        %v4078 = vld [vmem:[%s2304 + $0x28] sm:$0x1f]
        %s4079 = scalar_lea.vmem %s7, 71
        %v4080 = vld [vmem:[%s4079] ss:$8 sm:$0x3]
        %v4082 = vlaneseq
        %v4083 = vshrl.u32 %v4082, 7
        %v4084 = vsub.s32 0, %v4083
        %v4085 = vrot.slane %v4080, %v4084
        %v4086 = vlaneseq
        %v4087 = vshrl.u32 %v4086, 7
        %v4088 = vsub.s32 1, %v4087
        %v4089 = vrot.slane %v4080, %v4088
        %v4092 = vmul.f32 %v4075, %v4085
        %v4093 = vmul.f32 %v4076, %v4089
        %v4094 = vmul.f32 %v2494, %v4085
        %v4095 = vmul.f32 %v2495, %v4089
        %v4096 = vmul.f32 %v4077, %v4085
        %v4097 = vmul.f32 %v4078, %v4089
        %v4104 = vrot.slane %v4092, 5
        %v4105 = vrot.slane %v4094, 5
        %v4106 = vsel %vm579, %v4104, %v4105
        %v4107 = vrot.slane %v4093, 5
        %v4108 = vrot.slane %v4095, 5
        %v4109 = vsel %vm579, %v4107, %v4108
        %v4110 = vrot.slane %v4096, 5
        %v4111 = vsel %vm579, %v4105, %v4110
        %v4112 = vrot.slane %v4097, 5
        %v4113 = vsel %vm579, %v4108, %v4112
        %v4118 = vadd.f32 %v3930, %v4106
        %v4119 = vadd.f32 %v3931, %v4109
        %v4120 = vadd.f32 %v3932, %v4111
        %v4121 = vadd.f32 %v3933, %v4113
        %v4122 = vld [vmem:[%s2345] sm:$0xe0]
        %v4123 = vld [vmem:[%s2345 + $0x8] sm:$0xe0]
        %v4124 = vld [vmem:[%s2345 + $0x20] sm:$0x1f]
        %v4125 = vld [vmem:[%s2345 + $0x28] sm:$0x1f]
        %s4126 = scalar_lea.vmem %s7, 80
        %v4127 = vld [vmem:[%s4126] ss:$8 sm:$0x3]
        %v4129 = vlaneseq
        %v4130 = vshrl.u32 %v4129, 7
        %v4131 = vsub.s32 0, %v4130
        %v4132 = vrot.slane %v4127, %v4131
        %v4133 = vlaneseq
        %v4134 = vshrl.u32 %v4133, 7
        %v4135 = vsub.s32 1, %v4134
        %v4136 = vrot.slane %v4127, %v4135
        %v4139 = vmul.f32 %v4122, %v4132
        %v4140 = vmul.f32 %v4123, %v4136
        %v4141 = vmul.f32 %v2519, %v4132
        %v4142 = vmul.f32 %v2520, %v4136
        %v4143 = vmul.f32 %v4124, %v4132
        %v4144 = vmul.f32 %v4125, %v4136
        %v4151 = vrot.slane %v4139, 5
        %v4152 = vrot.slane %v4141, 5
        %v4153 = vsel %vm579, %v4151, %v4152
        %v4154 = vrot.slane %v4140, 5
        %v4155 = vrot.slane %v4142, 5
        %v4156 = vsel %vm579, %v4154, %v4155
        %v4157 = vrot.slane %v4143, 5
        %v4158 = vsel %vm579, %v4152, %v4157
        %v4159 = vrot.slane %v4144, 5
        %v4160 = vsel %vm579, %v4155, %v4159
        %v4165 = vadd.f32 %v3977, %v4153
        %v4166 = vadd.f32 %v3978, %v4156
        %v4167 = vadd.f32 %v3979, %v4158
        %v4168 = vadd.f32 %v3980, %v4160
        %v4169 = vld [vmem:[%s2386] sm:$0xe0]
        %v4170 = vld [vmem:[%s2386 + $0x8] sm:$0xe0]
        %v4171 = vld [vmem:[%s2386 + $0x20] sm:$0x1f]
        %v4172 = vld [vmem:[%s2386 + $0x28] sm:$0x1f]
        %s4173 = scalar_lea.vmem %s7, 81
        %v4174 = vld [vmem:[%s4173] ss:$8 sm:$0x3]
        %v4176 = vlaneseq
        %v4177 = vshrl.u32 %v4176, 7
        %v4178 = vsub.s32 0, %v4177
        %v4179 = vrot.slane %v4174, %v4178
        %v4180 = vlaneseq
        %v4181 = vshrl.u32 %v4180, 7
        %v4182 = vsub.s32 1, %v4181
        %v4183 = vrot.slane %v4174, %v4182
        %v4186 = vmul.f32 %v4169, %v4179
        %v4187 = vmul.f32 %v4170, %v4183
        %v4188 = vmul.f32 %v2544, %v4179
        %v4189 = vmul.f32 %v2545, %v4183
        %v4190 = vmul.f32 %v4171, %v4179
        %v4191 = vmul.f32 %v4172, %v4183
        %v4198 = vrot.slane %v4186, 5
        %v4199 = vrot.slane %v4188, 5
        %v4200 = vsel %vm579, %v4198, %v4199
        %v4201 = vrot.slane %v4187, 5
        %v4202 = vrot.slane %v4189, 5
        %v4203 = vsel %vm579, %v4201, %v4202
        %v4204 = vrot.slane %v4190, 5
        %v4205 = vsel %vm579, %v4199, %v4204
        %v4206 = vrot.slane %v4191, 5
        %v4207 = vsel %vm579, %v4202, %v4206
        %v4212 = vadd.f32 %v4024, %v4200
        %v4213 = vadd.f32 %v4025, %v4203
        %v4214 = vadd.f32 %v4026, %v4205
        %v4215 = vadd.f32 %v4027, %v4207
        %v4216 = vld [vmem:[#allocation3] sm:$0xc0]
        %v4217 = vld [vmem:[#allocation3 + $0x8] sm:$0xc0]
        %v4218 = vld [vmem:[#allocation3 + $0x20] sm:$0x3f]
        %v4219 = vld [vmem:[#allocation3 + $0x28] sm:$0x3f]
        %s4220 = scalar_lea.vmem %s7, 82
        %v4221 = vld [vmem:[%s4220] ss:$8 sm:$0x3]
        %v4223 = vlaneseq
        %v4224 = vshrl.u32 %v4223, 7
        %v4225 = vsub.s32 0, %v4224
        %v4226 = vrot.slane %v4221, %v4225
        %v4227 = vlaneseq
        %v4228 = vshrl.u32 %v4227, 7
        %v4229 = vsub.s32 1, %v4228
        %v4230 = vrot.slane %v4221, %v4229
        %v4233 = vmul.f32 %v4216, %v4226
        %v4234 = vmul.f32 %v4217, %v4230
        %v4235 = vmul.f32 %v2395, %v4226
        %v4236 = vmul.f32 %v2396, %v4230
        %v4237 = vmul.f32 %v4218, %v4226
        %v4238 = vmul.f32 %v4219, %v4230
        %v4245 = vrot.slane %v4233, 6
        %v4246 = vrot.slane %v4235, 6
        %v4247 = vsel %vm574, %v4245, %v4246
        %v4248 = vrot.slane %v4234, 6
        %v4249 = vrot.slane %v4236, 6
        %v4250 = vsel %vm574, %v4248, %v4249
        %v4251 = vrot.slane %v4237, 6
        %v4252 = vsel %vm574, %v4246, %v4251
        %v4253 = vrot.slane %v4238, 6
        %v4254 = vsel %vm574, %v4249, %v4253
        %v4259 = vadd.f32 %v4071, %v4247
        %v4260 = vadd.f32 %v4072, %v4250
        %v4261 = vadd.f32 %v4073, %v4252
        %v4262 = vadd.f32 %v4074, %v4254
        %v4263 = vld [vmem:[%s2183] sm:$0xc0]
        %v4264 = vld [vmem:[%s2183 + $0x8] sm:$0xc0]
        %v4265 = vld [vmem:[%s2183 + $0x20] sm:$0x3f]
        %v4266 = vld [vmem:[%s2183 + $0x28] sm:$0x3f]
        %s4267 = scalar_lea.vmem %s7, 83
        %v4268 = vld [vmem:[%s4267] ss:$8 sm:$0x3]
        %v4270 = vlaneseq
        %v4271 = vshrl.u32 %v4270, 7
        %v4272 = vsub.s32 0, %v4271
        %v4273 = vrot.slane %v4268, %v4272
        %v4274 = vlaneseq
        %v4275 = vshrl.u32 %v4274, 7
        %v4276 = vsub.s32 1, %v4275
        %v4277 = vrot.slane %v4268, %v4276
        %v4280 = vmul.f32 %v4263, %v4273
        %v4281 = vmul.f32 %v4264, %v4277
        %v4282 = vmul.f32 %v2419, %v4273
        %v4283 = vmul.f32 %v2420, %v4277
        %v4284 = vmul.f32 %v4265, %v4273
        %v4285 = vmul.f32 %v4266, %v4277
        %v4292 = vrot.slane %v4280, 6
        %v4293 = vrot.slane %v4282, 6
        %v4294 = vsel %vm574, %v4292, %v4293
        %v4295 = vrot.slane %v4281, 6
        %v4296 = vrot.slane %v4283, 6
        %v4297 = vsel %vm574, %v4295, %v4296
        %v4298 = vrot.slane %v4284, 6
        %v4299 = vsel %vm574, %v4293, %v4298
        %v4300 = vrot.slane %v4285, 6
        %v4301 = vsel %vm574, %v4296, %v4300
        %v4306 = vadd.f32 %v4118, %v4294
        %v4307 = vadd.f32 %v4119, %v4297
        %v4308 = vadd.f32 %v4120, %v4299
        %v4309 = vadd.f32 %v4121, %v4301
        %v4310 = vld [vmem:[%s2223] sm:$0xc0]
        %v4311 = vld [vmem:[%s2223 + $0x8] sm:$0xc0]
        %v4312 = vld [vmem:[%s2223 + $0x20] sm:$0x3f]
        %v4313 = vld [vmem:[%s2223 + $0x28] sm:$0x3f]
        %s4314 = scalar_lea.vmem %s7, 84
        %v4315 = vld [vmem:[%s4314] ss:$8 sm:$0x3]
        %v4317 = vlaneseq
        %v4318 = vshrl.u32 %v4317, 7
        %v4319 = vsub.s32 0, %v4318
        %v4320 = vrot.slane %v4315, %v4319
        %v4321 = vlaneseq
        %v4322 = vshrl.u32 %v4321, 7
        %v4323 = vsub.s32 1, %v4322
        %v4324 = vrot.slane %v4315, %v4323
        %v4327 = vmul.f32 %v4310, %v4320
        %v4328 = vmul.f32 %v4311, %v4324
        %v4329 = vmul.f32 %v2444, %v4320
        %v4330 = vmul.f32 %v2445, %v4324
        %v4331 = vmul.f32 %v4312, %v4320
        %v4332 = vmul.f32 %v4313, %v4324
        %v4339 = vrot.slane %v4327, 6
        %v4340 = vrot.slane %v4329, 6
        %v4341 = vsel %vm574, %v4339, %v4340
        %v4342 = vrot.slane %v4328, 6
        %v4343 = vrot.slane %v4330, 6
        %v4344 = vsel %vm574, %v4342, %v4343
        %v4345 = vrot.slane %v4331, 6
        %v4346 = vsel %vm574, %v4340, %v4345
        %v4347 = vrot.slane %v4332, 6
        %v4348 = vsel %vm574, %v4343, %v4347
        %v4353 = vadd.f32 %v4165, %v4341
        %v4354 = vadd.f32 %v4166, %v4344
        %v4355 = vadd.f32 %v4167, %v4346
        %v4356 = vadd.f32 %v4168, %v4348
        %v4357 = vld [vmem:[%s2264] sm:$0xc0]
        %v4358 = vld [vmem:[%s2264 + $0x8] sm:$0xc0]
        %v4359 = vld [vmem:[%s2264 + $0x20] sm:$0x3f]
        %v4360 = vld [vmem:[%s2264 + $0x28] sm:$0x3f]
        %s4361 = scalar_lea.vmem %s7, 85
        %v4362 = vld [vmem:[%s4361] ss:$8 sm:$0x3]
        %v4364 = vlaneseq
        %v4365 = vshrl.u32 %v4364, 7
        %v4366 = vsub.s32 0, %v4365
        %v4367 = vrot.slane %v4362, %v4366
        %v4368 = vlaneseq
        %v4369 = vshrl.u32 %v4368, 7
        %v4370 = vsub.s32 1, %v4369
        %v4371 = vrot.slane %v4362, %v4370
        %v4374 = vmul.f32 %v4357, %v4367
        %v4375 = vmul.f32 %v4358, %v4371
        %v4376 = vmul.f32 %v2469, %v4367
        %v4377 = vmul.f32 %v2470, %v4371
        %v4378 = vmul.f32 %v4359, %v4367
        %v4379 = vmul.f32 %v4360, %v4371
        %v4386 = vrot.slane %v4374, 6
        %v4387 = vrot.slane %v4376, 6
        %v4388 = vsel %vm574, %v4386, %v4387
        %v4389 = vrot.slane %v4375, 6
        %v4390 = vrot.slane %v4377, 6
        %v4391 = vsel %vm574, %v4389, %v4390
        %v4392 = vrot.slane %v4378, 6
        %v4393 = vsel %vm574, %v4387, %v4392
        %v4394 = vrot.slane %v4379, 6
        %v4395 = vsel %vm574, %v4390, %v4394
        %v4400 = vadd.f32 %v4212, %v4388
        %v4401 = vadd.f32 %v4213, %v4391
        %v4402 = vadd.f32 %v4214, %v4393
        %v4403 = vadd.f32 %v4215, %v4395
        %v4404 = vld [vmem:[%s2304] sm:$0xc0]
        %v4405 = vld [vmem:[%s2304 + $0x8] sm:$0xc0]
        %v4406 = vld [vmem:[%s2304 + $0x20] sm:$0x3f]
        %v4407 = vld [vmem:[%s2304 + $0x28] sm:$0x3f]
        %s4408 = scalar_lea.vmem %s7, 86
        %v4409 = vld [vmem:[%s4408] ss:$8 sm:$0x3]
        %v4411 = vlaneseq
        %v4412 = vshrl.u32 %v4411, 7
        %v4413 = vsub.s32 0, %v4412
        %v4414 = vrot.slane %v4409, %v4413
        %v4415 = vlaneseq
        %v4416 = vshrl.u32 %v4415, 7
        %v4417 = vsub.s32 1, %v4416
        %v4418 = vrot.slane %v4409, %v4417
        %v4421 = vmul.f32 %v4404, %v4414
        %v4422 = vmul.f32 %v4405, %v4418
        %v4423 = vmul.f32 %v2494, %v4414
        %v4424 = vmul.f32 %v2495, %v4418
        %v4425 = vmul.f32 %v4406, %v4414
        %v4426 = vmul.f32 %v4407, %v4418
        %v4433 = vrot.slane %v4421, 6
        %v4434 = vrot.slane %v4423, 6
        %v4435 = vsel %vm574, %v4433, %v4434
        %v4436 = vrot.slane %v4422, 6
        %v4437 = vrot.slane %v4424, 6
        %v4438 = vsel %vm574, %v4436, %v4437
        %v4439 = vrot.slane %v4425, 6
        %v4440 = vsel %vm574, %v4434, %v4439
        %v4441 = vrot.slane %v4426, 6
        %v4442 = vsel %vm574, %v4437, %v4441
        %v4447 = vadd.f32 %v4259, %v4435
        %v4448 = vadd.f32 %v4260, %v4438
        %v4449 = vadd.f32 %v4261, %v4440
        %v4450 = vadd.f32 %v4262, %v4442
        %v4451 = vld [vmem:[%s2345] sm:$0xc0]
        %v4452 = vld [vmem:[%s2345 + $0x8] sm:$0xc0]
        %v4453 = vld [vmem:[%s2345 + $0x20] sm:$0x3f]
        %v4454 = vld [vmem:[%s2345 + $0x28] sm:$0x3f]
        %s4455 = scalar_lea.vmem %s7, 87
        %v4456 = vld [vmem:[%s4455] ss:$8 sm:$0x3]
        %v4458 = vlaneseq
        %v4459 = vshrl.u32 %v4458, 7
        %v4460 = vsub.s32 0, %v4459
        %v4461 = vrot.slane %v4456, %v4460
        %v4462 = vlaneseq
        %v4463 = vshrl.u32 %v4462, 7
        %v4464 = vsub.s32 1, %v4463
        %v4465 = vrot.slane %v4456, %v4464
        %v4468 = vmul.f32 %v4451, %v4461
        %v4469 = vmul.f32 %v4452, %v4465
        %v4470 = vmul.f32 %v2519, %v4461
        %v4471 = vmul.f32 %v2520, %v4465
        %v4472 = vmul.f32 %v4453, %v4461
        %v4473 = vmul.f32 %v4454, %v4465
        %v4480 = vrot.slane %v4468, 6
        %v4481 = vrot.slane %v4470, 6
        %v4482 = vsel %vm574, %v4480, %v4481
        %v4483 = vrot.slane %v4469, 6
        %v4484 = vrot.slane %v4471, 6
        %v4485 = vsel %vm574, %v4483, %v4484
        %v4486 = vrot.slane %v4472, 6
        %v4487 = vsel %vm574, %v4481, %v4486
        %v4488 = vrot.slane %v4473, 6
        %v4489 = vsel %vm574, %v4484, %v4488
        %v4494 = vadd.f32 %v4306, %v4482
        %v4495 = vadd.f32 %v4307, %v4485
        %v4496 = vadd.f32 %v4308, %v4487
        %v4497 = vadd.f32 %v4309, %v4489
        %v4498 = vld [vmem:[%s2386] sm:$0xc0]
        %v4499 = vld [vmem:[%s2386 + $0x8] sm:$0xc0]
        %v4500 = vld [vmem:[%s2386 + $0x20] sm:$0x3f]
        %v4501 = vld [vmem:[%s2386 + $0x28] sm:$0x3f]
        %s4502 = scalar_lea.vmem %s7, 96
        %v4503 = vld [vmem:[%s4502] ss:$8 sm:$0x3]
        %v4505 = vlaneseq
        %v4506 = vshrl.u32 %v4505, 7
        %v4507 = vsub.s32 0, %v4506
        %v4508 = vrot.slane %v4503, %v4507
        %v4509 = vlaneseq
        %v4510 = vshrl.u32 %v4509, 7
        %v4511 = vsub.s32 1, %v4510
        %v4512 = vrot.slane %v4503, %v4511
        %v4515 = vmul.f32 %v4498, %v4508
        %v4516 = vmul.f32 %v4499, %v4512
        %v4517 = vmul.f32 %v2544, %v4508
        %v4518 = vmul.f32 %v2545, %v4512
        %v4519 = vmul.f32 %v4500, %v4508
        %v4520 = vmul.f32 %v4501, %v4512
        %v4527 = vrot.slane %v4515, 6
        %v4528 = vrot.slane %v4517, 6
        %v4529 = vsel %vm574, %v4527, %v4528
        %v4530 = vrot.slane %v4516, 6
        %v4531 = vrot.slane %v4518, 6
        %v4532 = vsel %vm574, %v4530, %v4531
        %v4533 = vrot.slane %v4519, 6
        %v4534 = vsel %vm574, %v4528, %v4533
        %v4535 = vrot.slane %v4520, 6
        %v4536 = vsel %vm574, %v4531, %v4535
        %v4541 = vadd.f32 %v4353, %v4529
        %v4542 = vadd.f32 %v4354, %v4532
        %v4543 = vadd.f32 %v4355, %v4534
        %v4544 = vadd.f32 %v4356, %v4536
        %v4545 = vadd.f32 %v4541, %v4400
        %v4546 = vadd.f32 %v4542, %v4401
        %v4547 = vadd.f32 %v4543, %v4402
        %v4548 = vadd.f32 %v4544, %v4403
        %v4549 = vadd.f32 %v4447, %v4494
        %v4550 = vadd.f32 %v4448, %v4495
        %v4551 = vadd.f32 %v4449, %v4496
        %v4552 = vadd.f32 %v4450, %v4497
        %v4553 = vadd.f32 %v4545, %v4549
        %v4554 = vadd.f32 %v4546, %v4550
        %v4555 = vadd.f32 %v4547, %v4551
        %v4556 = vadd.f32 %v4548, %v4552
        %4559 = vrot.lane.b32.xlu0 %v4553, 106
        %v4560 = vpop.permute.xlu0 %4559
        %4561 = vrot.lane.b32.xlu0 %v4555, 106
        %v4562 = vpop.permute.xlu0 %4561
        %v4565 = vadd.f32 %v4553, %v4560
        %v4566 = vadd.f32 %v4555, %v4562
        %4569 = vrot.lane.b32.xlu0 %v4554, 106
        %v4570 = vpop.permute.xlu0 %4569
        %4571 = vrot.lane.b32.xlu0 %v4556, 106
        %v4572 = vpop.permute.xlu0 %4571
        %v4575 = vadd.f32 %v4554, %v4570
        %v4576 = vadd.f32 %v4556, %v4572
        %4579 = vrot.lane.b32.xlu0 %v4565, 84
        %v4580 = vpop.permute.xlu0 %4579
        %4581 = vrot.lane.b32.xlu0 %v4566, 84
        %v4582 = vpop.permute.xlu0 %4581
        %4585 = vrot.lane.b32.xlu0 %v4565, 40
        %v4586 = vpop.permute.xlu0 %4585
        %4587 = vrot.lane.b32.xlu0 %v4566, 40
        %v4588 = vpop.permute.xlu0 %4587
        %4593 = vrot.lane.b32.xlu0 %v4575, 124
        %v4594 = vpop.permute.xlu0 %4593
        %4595 = vrot.lane.b32.xlu0 %v4576, 124
        %v4596 = vpop.permute.xlu0 %4595
        %v4599 = vxor.u32 %v4565, 2147483648
        %v4600 = vxor.u32 %v4566, 2147483648
        %v4601 = vxor.u32 %v4580, 2147483648
        %v4602 = vxor.u32 %v4582, 2147483648
        %v4603 = vxor.u32 %v4586, 2147483648
        %v4604 = vxor.u32 %v4588, 2147483648
        %v4605 = vxor.u32 %v4594, 2147483648
        %v4606 = vxor.u32 %v4596, 2147483648
        %v4607 = vmul.f32 %v4599, 1.442695
        %v4608 = vpow.pop %v4607
        %v4609 = vmul.f32 %v4600, 1.442695
        %v4610 = vpow.pop %v4609
        %v4611 = vmul.f32 %v4601, 1.442695
        %v4612 = vpow.pop %v4611
        %v4613 = vmul.f32 %v4602, 1.442695
        %v4614 = vpow.pop %v4613
        %v4615 = vmul.f32 %v4603, 1.442695
        %v4616 = vpow.pop %v4615
        %v4617 = vmul.f32 %v4604, 1.442695
        %v4618 = vpow.pop %v4617
        %v4619 = vmul.f32 %v4605, 1.442695
        %v4620 = vpow.pop %v4619
        %v4621 = vmul.f32 %v4606, 1.442695
        %v4622 = vpow.pop %v4621
        %v4623 = vadd.f32 %v4608, 1.0
        %v4624 = vadd.f32 %v4610, 1.0
        %v4625 = vadd.f32 %v4612, 1.0
        %v4626 = vadd.f32 %v4614, 1.0
        %v4627 = vadd.f32 %v4616, 1.0
        %v4628 = vadd.f32 %v4618, 1.0
        %v4629 = vadd.f32 %v4620, 1.0
        %v4630 = vadd.f32 %v4622, 1.0
        %v4631 = vrcp.pop %v4623
        %v4632 = vmul.f32 1.0, %v4631
        %v4633 = vrcp.pop %v4624
        %v4634 = vmul.f32 1.0, %v4633
        %v4635 = vrcp.pop %v4625
        %v4636 = vmul.f32 1.0, %v4635
        %v4637 = vrcp.pop %v4626
        %v4638 = vmul.f32 1.0, %v4637
        %v4639 = vrcp.pop %v4627
        %v4640 = vmul.f32 1.0, %v4639
        %v4641 = vrcp.pop %v4628
        %v4642 = vmul.f32 1.0, %v4641
        %v4643 = vrcp.pop %v4629
        %v4644 = vmul.f32 1.0, %v4643
        %v4645 = vrcp.pop %v4630
        %v4646 = vmul.f32 1.0, %v4645
        %v4647 = vld [vmem:[%s6] sm:$0xff]
        %v4648 = vld [vmem:[%s6 + $0x8] sm:$0xff]
        %v4649 = vld [vmem:[%s6 + $0x10] sm:$0xff]
        %v4650 = vld [vmem:[%s6 + $0x18] sm:$0xff]
        %v4651 = vld [vmem:[%s6 + $0x20] sm:$0xff]
        %v4652 = vld [vmem:[%s6 + $0x28] sm:$0xff]
        %v4653 = vld [vmem:[%s6 + $0x30] sm:$0xff]
        %v4654 = vld [vmem:[%s6 + $0x38] sm:$0xff]
        %vm4655 = vcmask 130048
        %v4657 = vsel %vm4655, %v4632, 0
        %v4660 = vsel %vm4655, %v4634, 0
        %v4663 = vsel %vm4655, %v4636, 0
        %v4666 = vsel %vm4655, %v4638, 0
        %v4669 = vsel %vm4655, %v4640, 0
        %v4672 = vsel %vm4655, %v4642, 0
        %v4675 = vsel %vm4655, %v4644, 0
        %v4678 = vsel %vm4655, %v4646, 0
        %4680 = vmatprep.subr.mxu0 0.0
        %4681 = vmatpush1.msra.mxu0 0.0
        %4682 = vmatprep.subr.mxu0 0.0
        %4683 = vmatpush1.msra.mxu0 0.0
        %4684 = vmatprep.subr.mxu0 0.0
        %4685 = vmatpush1.msra.mxu0 0.0
        %4686 = vmatprep.subr.mxu0 0.0
        %4687 = vmatpush1.msra.mxu0 0.0
        %4688 = vmatprep.subr.mxu0 0.0
        %4689 = vmatpush1.msra.mxu0 0.0
        %4690 = vmatprep.subr.mxu0 0.0
        %4691 = vmatpush1.msra.mxu0 0.0
        %4692 = vmatprep.subr.mxu0 0.0
        %4693 = vmatpush1.msra.mxu0 0.0
        %4694 = vmatprep.subr.mxu0 0.0
        %4695 = vmatpush1.msra.mxu0 0.0
        %4696 = vmatprep.subr.mxu0 0.0
        %4697 = vmatpush1.msra.mxu0 0.0
        %4698 = vmatprep.subr.mxu0 0.0
        %4699 = vmatpush1.msra.mxu0 0.0
        %4700 = vmatprep.subr.mxu0 0.0
        %4701 = vmatpush1.msra.mxu0 0.0
        %4702 = vmatprep.subr.mxu0 0.0
        %4703 = vmatpush1.msra.mxu0 0.0
        %4704 = vmatprep.subr.mxu0 0.0
        %4705 = vmatpush1.msra.mxu0 0.0
        %4706 = vmatprep.subr.mxu0 0.0
        %4707 = vmatpush1.msra.mxu0 0.0
        %4708 = vmatprep.subr.mxu0 %v4652
        %4709 = vmatpush1.msra.mxu0 %v4651
        %4710 = vmatprep.subr.mxu0 %v4648
        %4711 = vmatpush1.msra.mxu0 %v4647
        %4712 = vmatprep.subr.mxu0 0.0
        %4713 = vmatpush2.msra.mxu0 0.0
        %4714 = vmatprep.subr.mxu0 0.0
        %4715 = vmatpush2.msra.mxu0 0.0
        %4716 = vmatprep.subr.mxu0 0.0
        %4717 = vmatpush2.msra.mxu0 0.0
        %4718 = vmatprep.subr.mxu0 0.0
        %4719 = vmatpush2.msra.mxu0 0.0
        %4720 = vmatprep.subr.mxu0 0.0
        %4721 = vmatpush2.msra.mxu0 0.0
        %4722 = vmatprep.subr.mxu0 0.0
        %4723 = vmatpush2.msra.mxu0 0.0
        %4724 = vmatprep.subr.mxu0 0.0
        %4725 = vmatpush2.msra.mxu0 0.0
        %4726 = vmatprep.subr.mxu0 0.0
        %4727 = vmatpush2.msra.mxu0 0.0
        %4728 = vmatprep.subr.mxu0 0.0
        %4729 = vmatpush2.msra.mxu0 0.0
        %4730 = vmatprep.subr.mxu0 0.0
        %4731 = vmatpush2.msra.mxu0 0.0
        %4732 = vmatprep.subr.mxu0 0.0
        %4733 = vmatpush2.msra.mxu0 0.0
        %4734 = vmatprep.subr.mxu0 0.0
        %4735 = vmatpush2.msra.mxu0 0.0
        %4736 = vmatprep.subr.mxu0 0.0
        %4737 = vmatpush2.msra.mxu0 0.0
        %4738 = vmatprep.subr.mxu0 0.0
        %4739 = vmatpush2.msra.mxu0 0.0
        %4740 = vmatprep.subr.mxu0 0.0
        %4741 = vmatpush2.msra.mxu0 0.0
        %4742 = vmatprep.subr.mxu0 0.0
        %4743 = vmatpush2.msra.mxu0 0.0
        %4744 = vmatprep.mubr.f32.mxu0 0.0
        %4745 = vmatmul.mubr.f32.gmra.mxu0 %v4657
        %v4746 = vpop.f32.mrf.mxu0
        %v4747 = vadd.f32 0.0, %v4746
        %v4748 = vpop.f32.mrf.mxu0
        %v4749 = vadd.f32 0.0, %v4748
        %4750 = vmatprep.mubr.f32.mxu0 0.0
        %4751 = vmatmul.mubr.f32.gmra.mxu0 %v4660
        %v4752 = vpop.f32.mrf.mxu0
        %v4753 = vadd.f32 0.0, %v4752
        %v4754 = vpop.f32.mrf.mxu0
        %v4755 = vadd.f32 0.0, %v4754
        %4756 = vmatprep.mubr.f32.mxu0 0.0
        %4757 = vmatmul.mubr.f32.gmra.mxu0 %v4663
        %v4758 = vpop.f32.mrf.mxu0
        %v4759 = vadd.f32 0.0, %v4758
        %v4760 = vpop.f32.mrf.mxu0
        %v4761 = vadd.f32 0.0, %v4760
        %4762 = vmatprep.mubr.f32.mxu0 0.0
        %4763 = vmatmul.mubr.f32.gmra.mxu0 %v4666
        %v4764 = vpop.f32.mrf.mxu0
        %v4765 = vadd.f32 0.0, %v4764
        %v4766 = vpop.f32.mrf.mxu0
        %v4767 = vadd.f32 0.0, %v4766
        %4768 = vmatprep.mubr.f32.mxu0 0.0
        %4769 = vmatmul.mubr.f32.gmra.mxu0 %v4669
        %v4770 = vpop.f32.mrf.mxu0
        %v4771 = vadd.f32 0.0, %v4770
        %v4772 = vpop.f32.mrf.mxu0
        %v4773 = vadd.f32 0.0, %v4772
        %4774 = vmatprep.mubr.f32.mxu0 0.0
        %4775 = vmatmul.mubr.f32.gmra.mxu0 %v4672
        %v4776 = vpop.f32.mrf.mxu0
        %v4777 = vadd.f32 0.0, %v4776
        %v4778 = vpop.f32.mrf.mxu0
        %v4779 = vadd.f32 0.0, %v4778
        %4780 = vmatprep.mubr.f32.mxu0 0.0
        %4781 = vmatmul.mubr.f32.gmra.mxu0 %v4675
        %v4782 = vpop.f32.mrf.mxu0
        %v4783 = vadd.f32 0.0, %v4782
        %v4784 = vpop.f32.mrf.mxu0
        %v4785 = vadd.f32 0.0, %v4784
        %4786 = vmatprep.mubr.f32.mxu0 0.0
        %4787 = vmatmul.mubr.f32.gmra.mxu0 %v4678
        %v4788 = vpop.f32.mrf.mxu0
        %v4789 = vadd.f32 0.0, %v4788
        %v4790 = vpop.f32.mrf.mxu0
        %v4791 = vadd.f32 0.0, %v4790
        %4792 = vdwg.mxu0
        %4793 = vmatprep.subr.mxu0 0.0
        %4794 = vmatpush1.msra.mxu0 0.0
        %4795 = vmatprep.subr.mxu0 0.0
        %4796 = vmatpush1.msra.mxu0 0.0
        %4797 = vmatprep.subr.mxu0 0.0
        %4798 = vmatpush1.msra.mxu0 0.0
        %4799 = vmatprep.subr.mxu0 0.0
        %4800 = vmatpush1.msra.mxu0 0.0
        %4801 = vmatprep.subr.mxu0 0.0
        %4802 = vmatpush1.msra.mxu0 0.0
        %4803 = vmatprep.subr.mxu0 0.0
        %4804 = vmatpush1.msra.mxu0 0.0
        %4805 = vmatprep.subr.mxu0 0.0
        %4806 = vmatpush1.msra.mxu0 0.0
        %4807 = vmatprep.subr.mxu0 0.0
        %4808 = vmatpush1.msra.mxu0 0.0
        %4809 = vmatprep.subr.mxu0 0.0
        %4810 = vmatpush1.msra.mxu0 0.0
        %4811 = vmatprep.subr.mxu0 0.0
        %4812 = vmatpush1.msra.mxu0 0.0
        %4813 = vmatprep.subr.mxu0 0.0
        %4814 = vmatpush1.msra.mxu0 0.0
        %4815 = vmatprep.subr.mxu0 0.0
        %4816 = vmatpush1.msra.mxu0 0.0
        %4817 = vmatprep.subr.mxu0 0.0
        %4818 = vmatpush1.msra.mxu0 0.0
        %4819 = vmatprep.subr.mxu0 0.0
        %4820 = vmatpush1.msra.mxu0 0.0
        %4821 = vmatprep.subr.mxu0 %v4654
        %4822 = vmatpush1.msra.mxu0 %v4653
        %4823 = vmatprep.subr.mxu0 %v4650
        %4824 = vmatpush1.msra.mxu0 %v4649
        %4825 = vmatprep.subr.mxu0 0.0
        %4826 = vmatpush2.msra.mxu0 0.0
        %4827 = vmatprep.subr.mxu0 0.0
        %4828 = vmatpush2.msra.mxu0 0.0
        %4829 = vmatprep.subr.mxu0 0.0
        %4830 = vmatpush2.msra.mxu0 0.0
        %4831 = vmatprep.subr.mxu0 0.0
        %4832 = vmatpush2.msra.mxu0 0.0
        %4833 = vmatprep.subr.mxu0 0.0
        %4834 = vmatpush2.msra.mxu0 0.0
        %4835 = vmatprep.subr.mxu0 0.0
        %4836 = vmatpush2.msra.mxu0 0.0
        %4837 = vmatprep.subr.mxu0 0.0
        %4838 = vmatpush2.msra.mxu0 0.0
        %4839 = vmatprep.subr.mxu0 0.0
        %4840 = vmatpush2.msra.mxu0 0.0
        %4841 = vmatprep.subr.mxu0 0.0
        %4842 = vmatpush2.msra.mxu0 0.0
        %4843 = vmatprep.subr.mxu0 0.0
        %4844 = vmatpush2.msra.mxu0 0.0
        %4845 = vmatprep.subr.mxu0 0.0
        %4846 = vmatpush2.msra.mxu0 0.0
        %4847 = vmatprep.subr.mxu0 0.0
        %4848 = vmatpush2.msra.mxu0 0.0
        %4849 = vmatprep.subr.mxu0 0.0
        %4850 = vmatpush2.msra.mxu0 0.0
        %4851 = vmatprep.subr.mxu0 0.0
        %4852 = vmatpush2.msra.mxu0 0.0
        %4853 = vmatprep.subr.mxu0 0.0
        %4854 = vmatpush2.msra.mxu0 0.0
        %4855 = vmatprep.subr.mxu0 0.0
        %4856 = vmatpush2.msra.mxu0 0.0
        %4857 = vmatprep.mubr.f32.mxu0 0.0
        %4858 = vmatmul.mubr.f32.gmra.mxu0 %v4657
        %v4859 = vpop.f32.mrf.mxu0
        %v4860 = vadd.f32 0.0, %v4859
        %v4861 = vpop.f32.mrf.mxu0
        %v4862 = vadd.f32 0.0, %v4861
        %4863 = vmatprep.mubr.f32.mxu0 0.0
        %4864 = vmatmul.mubr.f32.gmra.mxu0 %v4660
        %v4865 = vpop.f32.mrf.mxu0
        %v4866 = vadd.f32 0.0, %v4865
        %v4867 = vpop.f32.mrf.mxu0
        %v4868 = vadd.f32 0.0, %v4867
        %4869 = vmatprep.mubr.f32.mxu0 0.0
        %4870 = vmatmul.mubr.f32.gmra.mxu0 %v4663
        %v4871 = vpop.f32.mrf.mxu0
        %v4872 = vadd.f32 0.0, %v4871
        %v4873 = vpop.f32.mrf.mxu0
        %v4874 = vadd.f32 0.0, %v4873
        %4875 = vmatprep.mubr.f32.mxu0 0.0
        %4876 = vmatmul.mubr.f32.gmra.mxu0 %v4666
        %v4877 = vpop.f32.mrf.mxu0
        %v4878 = vadd.f32 0.0, %v4877
        %v4879 = vpop.f32.mrf.mxu0
        %v4880 = vadd.f32 0.0, %v4879
        %4881 = vmatprep.mubr.f32.mxu0 0.0
        %4882 = vmatmul.mubr.f32.gmra.mxu0 %v4669
        %v4883 = vpop.f32.mrf.mxu0
        %v4884 = vadd.f32 0.0, %v4883
        %v4885 = vpop.f32.mrf.mxu0
        %v4886 = vadd.f32 0.0, %v4885
        %4887 = vmatprep.mubr.f32.mxu0 0.0
        %4888 = vmatmul.mubr.f32.gmra.mxu0 %v4672
        %v4889 = vpop.f32.mrf.mxu0
        %v4890 = vadd.f32 0.0, %v4889
        %v4891 = vpop.f32.mrf.mxu0
        %v4892 = vadd.f32 0.0, %v4891
        %4893 = vmatprep.mubr.f32.mxu0 0.0
        %4894 = vmatmul.mubr.f32.gmra.mxu0 %v4675
        %v4895 = vpop.f32.mrf.mxu0
        %v4896 = vadd.f32 0.0, %v4895
        %v4897 = vpop.f32.mrf.mxu0
        %v4898 = vadd.f32 0.0, %v4897
        %4899 = vmatprep.mubr.f32.mxu0 0.0
        %4900 = vmatmul.mubr.f32.gmra.mxu0 %v4678
        %v4901 = vpop.f32.mrf.mxu0
        %v4902 = vadd.f32 0.0, %v4901
        %v4903 = vpop.f32.mrf.mxu0
        %v4904 = vadd.f32 0.0, %v4903
        %4905 = vdwg.mxu0
        %v4906 = vld [vmem:[%s301] sm:$0xff]
        %v4907 = vld [vmem:[%s301 + $0x8] sm:$0xff]
        %v4908 = vld [vmem:[%s301 + $0x10] sm:$0xff]
        %v4909 = vld [vmem:[%s301 + $0x18] sm:$0xff]
        %v4910 = vld [vmem:[%s301 + $0x20] sm:$0xff]
        %v4911 = vld [vmem:[%s301 + $0x28] sm:$0xff]
        %v4912 = vld [vmem:[%s301 + $0x30] sm:$0xff]
        %v4913 = vld [vmem:[%s301 + $0x38] sm:$0xff]
        %v4914 = vmul.f32 %v4906, %v4747
        %v4915 = vmul.f32 %v4907, %v4749
        %v4916 = vmul.f32 %v4908, %v4860
        %v4917 = vmul.f32 %v4909, %v4862
        %v4918 = vmul.f32 %v4910, %v4753
        %v4919 = vmul.f32 %v4911, %v4755
        %v4920 = vmul.f32 %v4912, %v4866
        %v4921 = vmul.f32 %v4913, %v4868
        %4922 = vst [vmem:[%s301] sm:$0xff] %v4914
        %4923 = vst [vmem:[%s301 + $0x8] sm:$0xff] %v4915
        %4924 = vst [vmem:[%s301 + $0x10] sm:$0xff] %v4916
        %4925 = vst [vmem:[%s301 + $0x18] sm:$0xff] %v4917
        %4926 = vst [vmem:[%s301 + $0x20] sm:$0xff] %v4918
        %4927 = vst [vmem:[%s301 + $0x28] sm:$0xff] %v4919
        %4928 = vst [vmem:[%s301 + $0x30] sm:$0xff] %v4920
        %4929 = vst [vmem:[%s301 + $0x38] sm:$0xff] %v4921
        %v4930 = vld [vmem:[%s1421] sm:$0xff]
        %v4931 = vld [vmem:[%s1421 + $0x8] sm:$0xff]
        %v4932 = vld [vmem:[%s1421 + $0x10] sm:$0xff]
        %v4933 = vld [vmem:[%s1421 + $0x18] sm:$0xff]
        %v4934 = vld [vmem:[%s1421 + $0x20] sm:$0xff]
        %v4935 = vld [vmem:[%s1421 + $0x28] sm:$0xff]
        %v4936 = vld [vmem:[%s1421 + $0x30] sm:$0xff]
        %v4937 = vld [vmem:[%s1421 + $0x38] sm:$0xff]
        %v4938 = vmul.f32 %v4930, %v4759
        %v4939 = vmul.f32 %v4931, %v4761
        %v4940 = vmul.f32 %v4932, %v4872
        %v4941 = vmul.f32 %v4933, %v4874
        %v4942 = vmul.f32 %v4934, %v4765
        %v4943 = vmul.f32 %v4935, %v4767
        %v4944 = vmul.f32 %v4936, %v4878
        %v4945 = vmul.f32 %v4937, %v4880
        %4946 = vst [vmem:[%s1421] sm:$0xff] %v4938
        %4947 = vst [vmem:[%s1421 + $0x8] sm:$0xff] %v4939
        %4948 = vst [vmem:[%s1421 + $0x10] sm:$0xff] %v4940
        %4949 = vst [vmem:[%s1421 + $0x18] sm:$0xff] %v4941
        %4950 = vst [vmem:[%s1421 + $0x20] sm:$0xff] %v4942
        %4951 = vst [vmem:[%s1421 + $0x28] sm:$0xff] %v4943
        %4952 = vst [vmem:[%s1421 + $0x30] sm:$0xff] %v4944
        %4953 = vst [vmem:[%s1421 + $0x38] sm:$0xff] %v4945
        %v4954 = vld [vmem:[%s1462] sm:$0xff]
        %v4955 = vld [vmem:[%s1462 + $0x8] sm:$0xff]
        %v4956 = vld [vmem:[%s1462 + $0x10] sm:$0xff]
        %v4957 = vld [vmem:[%s1462 + $0x18] sm:$0xff]
        %v4958 = vld [vmem:[%s1462 + $0x20] sm:$0xff]
        %v4959 = vld [vmem:[%s1462 + $0x28] sm:$0xff]
        %v4960 = vld [vmem:[%s1462 + $0x30] sm:$0xff]
        %v4961 = vld [vmem:[%s1462 + $0x38] sm:$0xff]
        %v4962 = vmul.f32 %v4954, %v4771
        %v4963 = vmul.f32 %v4955, %v4773
        %v4964 = vmul.f32 %v4956, %v4884
        %v4965 = vmul.f32 %v4957, %v4886
        %v4966 = vmul.f32 %v4958, %v4777
        %v4967 = vmul.f32 %v4959, %v4779
        %v4968 = vmul.f32 %v4960, %v4890
        %v4969 = vmul.f32 %v4961, %v4892
        %4970 = vst [vmem:[%s1462] sm:$0xff] %v4962
        %4971 = vst [vmem:[%s1462 + $0x8] sm:$0xff] %v4963
        %4972 = vst [vmem:[%s1462 + $0x10] sm:$0xff] %v4964
        %4973 = vst [vmem:[%s1462 + $0x18] sm:$0xff] %v4965
        %4974 = vst [vmem:[%s1462 + $0x20] sm:$0xff] %v4966
        %4975 = vst [vmem:[%s1462 + $0x28] sm:$0xff] %v4967
        %4976 = vst [vmem:[%s1462 + $0x30] sm:$0xff] %v4968
        %4977 = vst [vmem:[%s1462 + $0x38] sm:$0xff] %v4969
        %v4978 = vld [vmem:[%s1503] sm:$0xff]
        %v4979 = vld [vmem:[%s1503 + $0x8] sm:$0xff]
        %v4980 = vld [vmem:[%s1503 + $0x10] sm:$0xff]
        %v4981 = vld [vmem:[%s1503 + $0x18] sm:$0xff]
        %v4982 = vld [vmem:[%s1503 + $0x20] sm:$0xff]
        %v4983 = vld [vmem:[%s1503 + $0x28] sm:$0xff]
        %v4984 = vld [vmem:[%s1503 + $0x30] sm:$0xff]
        %v4985 = vld [vmem:[%s1503 + $0x38] sm:$0xff]
        %v4986 = vmul.f32 %v4978, %v4783
        %v4987 = vmul.f32 %v4979, %v4785
        %v4988 = vmul.f32 %v4980, %v4896
        %v4989 = vmul.f32 %v4981, %v4898
        %v4990 = vmul.f32 %v4982, %v4789
        %v4991 = vmul.f32 %v4983, %v4791
        %v4992 = vmul.f32 %v4984, %v4902
        %v4993 = vmul.f32 %v4985, %v4904
        %4994 = vst [vmem:[%s1503] sm:$0xff] %v4986
        %4995 = vst [vmem:[%s1503 + $0x8] sm:$0xff] %v4987
        %4996 = vst [vmem:[%s1503 + $0x10] sm:$0xff] %v4988
        %4997 = vst [vmem:[%s1503 + $0x18] sm:$0xff] %v4989
        %4998 = vst [vmem:[%s1503 + $0x20] sm:$0xff] %v4990
        %4999 = vst [vmem:[%s1503 + $0x28] sm:$0xff] %v4991
        %5000 = vst [vmem:[%s1503 + $0x30] sm:$0xff] %v4992
        %5001 = vst [vmem:[%s1503 + $0x38] sm:$0xff] %v4993
        %s5002 = sand.u32 %s203, 1
        %s5003 = scalar_lea.sflag [#allocation5], %s5002
        %s5004 = sand.u32 %s203, 1
        %s5005 = smul.addr %s5004, 256
        %s5006 = scalar_lea.vmem [#allocation4], %s5005
        // Predicated region
        $region53: #{tpu_custom_call.1} parent=51 // pred_check
          %p5007 = pneg %p213
        $region54: #{tpu_custom_call.1} parent=51 // pred_check_branch
          %5009 = sbr.rel (%p5007) target = $region56
        $region55: #{tpu_custom_call.1} parent=51 // pred_region
          %s5010 = smul.u32 4, %s22
          %s5012 = ssub.s32 4096, 4096
          %5013 = vsyncadd %s5003, %s5012
          %s5014 = smul.addr %s5010, 8
          %s5015 = smul.addr %s5014, 128
          %s5016 = scalar_lea.hbm %s8, %s5015
          %s5017 = sshll.u32 %s5006, 4
          %s5018 = int_to_ptr.vmem [resolvable:$true] %s5017
          %5023 = dma.vmem_to_hbm [thread:$0]  %s5018, 4096, %s5016, %s5003, 512, 512, 32
        $region56: #{tpu_custom_call.1} parent=51 // pred_fallthru
          _
      $region52: #{tpu_custom_call.1} parent=5 // pred_fallthru
        _
      %p5024 = scmp.le.s32.totalorder 2, %s17
      // Predicated region
      $region57: #{tpu_custom_call.1} parent=5 // pred_check
        %p5025 = pneg %p5024
      $region58: #{tpu_custom_call.1} parent=5 // pred_check_branch
        %5027 = sbr.rel (%p5025) target = $region60
      $region59: #{tpu_custom_call.1} parent=5 // pred_region
        %s5028 = ssub.s32 %s17, 2
        // Predicated region
        $region61: #{tpu_custom_call.1} parent=59 // pred_check
          %p5029 = pneg %p219
        $region62: #{tpu_custom_call.1} parent=59 // pred_check_branch
          %5031 = sbr.rel (%p5029) target = $region64
        $region63: #{tpu_custom_call.1} parent=59 // pred_region
          %s5032 = sand.u32 %s204, 1
          %s5033 = scalar_lea.sflag [#allocation5], %s5032
          %s5034 = sand.u32 %s204, 1
          %s5035 = smul.addr %s5034, 256
          %s5036 = scalar_lea.vmem [#allocation4], %s5035
          %5037 = dma.done %s5033, 4096
        $region64: #{tpu_custom_call.1} parent=59 // pred_fallthru
          _
      $region60: #{tpu_custom_call.1} parent=5 // pred_fallthru
        _
    $region6: #{tpu_custom_call.1} parent=1 // loop_footer
      %s21 = sadd.s32 1, %s17
    $region7: #{tpu_custom_call.1} parent=1 // loop_footer_branch
      %16 = sbr.rel target = $region3
    $region8: #{tpu_custom_call.1} parent=1 // loop_exit
      _
    %5038 = vsyncpa [#allocation5], 1
    %s5039 = scalar_lea.sflag [#allocation5], 1
    %5040 = vsyncpa %s5039, 1

</llo_original>
